<compile_context>
chip_gen: v7x
topology: tpu7x:2x2x1
jax: 0.10.0
libtpu: 0.0.40
codegen_flags: <defaults>
</compile_context>

<pallas_src>
import math
import functools

import numpy as np
import jax
import jax.numpy as jnp
from jax.experimental import pallas as pl
from jax.experimental.pallas import tpu as pltpu


# ----------------------------------------------------------------------------
# Fused encoder kernel (conv + pos + N encoder layers + penalty multiply)
# ----------------------------------------------------------------------------

def _encoder_kernel(x_ref, pos_ref, pm_ref,
                    conv_w_ref, conv_b_ref,
                    wqk_ref, bqk_ref, wv_ref, bv_ref, wo_ref, bo_ref,
                    w1_ref, b1_ref, w2_ref, b2_ref,
                    ln1g_ref, ln1b_ref, ln2g_ref, ln2b_ref,
                    xout_ref, sattn_ref, pattn_ref,
                    *, num_layers, scale, eps):
    f32 = jnp.float32

    def layer_norm(v, g, b):
        mu = jnp.mean(v, axis=-1, keepdims=True)
        var = jnp.mean((v - mu) * (v - mu), axis=-1, keepdims=True)
        return (v - mu) * jax.lax.rsqrt(var + eps) * g + b

    # Backbone 1x1 conv == channel matmul, with the 0.4 src scale folded in.
    x = 0.4 * (jnp.dot(x_ref[...], conv_w_ref[...], preferred_element_type=f32)
               + conv_b_ref[...])                                   # (S, D)
    pos = pos_ref[...]                                              # (S, D)
    D = pos.shape[-1]

    # TODO(synk): key-padding mask is all-False in this config and is not applied;
    # a non-trivial mask would be added as -inf bias to `s` before the softmax.

    p = None
    for l in range(num_layers):                                     # unrolled, L=2
        qk_in = x + pos
        # Fused Q/K projection: one (D, 2D) matmul, split in-VMEM.
        qk = jnp.dot(qk_in, wqk_ref[l], preferred_element_type=f32) + bqk_ref[l]
        q = qk[:, :D]
        k = qk[:, D:]
        v = jnp.dot(x, wv_ref[l], preferred_element_type=f32) + bv_ref[l]

        # Scores: contract the last dim of both operands (no k.T materialized).
        s = jax.lax.dot_general(q, k, (((1,), (1,)), ((), ())),
                                preferred_element_type=f32) * scale  # (S, S)
        s = s - jnp.max(s, axis=-1, keepdims=True)
        e = jnp.exp(s)
        p = e * pl.reciprocal(jnp.sum(e, axis=-1, keepdims=True), approx=True)

        attn = jnp.dot(p, v, preferred_element_type=f32)             # (S, D)
        attn = jnp.dot(attn, wo_ref[l], preferred_element_type=f32) + bo_ref[l]
        x = layer_norm(x + attn, ln1g_ref[l], ln1b_ref[l])

        ff = jnp.maximum(
            jnp.dot(x, w1_ref[l], preferred_element_type=f32) + b1_ref[l], 0.0)
        ff = jnp.dot(ff, w2_ref[l], preferred_element_type=f32) + b2_ref[l]
        x = layer_norm(x + ff, ln2g_ref[l], ln2b_ref[l])

    xout_ref[...] = x.astype(xout_ref.dtype)

    # Last layer's attention, emitted directly in the PyTorch-permuted
    # orientation: sattn_perm[b, key, query] = p[b, query, key].
    pt = p.T                                                        # (S, S)
    sattn_ref[...] = pt.astype(sattn_ref.dtype)
    pattn_ref[...] = (pt * pm_ref[...]).astype(pattn_ref.dtype)


def _classifier_kernel(x_ref, w_ref, b_ref, o_ref):
    o_ref[...] = (jnp.dot(x_ref[...], w_ref[...], preferred_element_type=jnp.float32)
                  + b_ref[...]).astype(o_ref.dtype)


# ----------------------------------------------------------------------------
# Parameter construction (deterministic, synthetic)
# ----------------------------------------------------------------------------

def positionalencoding2d(batch, d_model, height, width):
    """Standard 2D sinusoidal positional encoding, shape (batch, d_model, H, W)."""
    pe = np.zeros((d_model, height, width), dtype=np.float32)
    half = d_model // 2
    div_term = np.exp(np.arange(0.0, half, 2) * -(math.log(10000.0) / half))
    pos_w = np.arange(0.0, width)[:, None]
    pos_h = np.arange(0.0, height)[:, None]
    pe[0:half:2, :, :] = np.repeat(np.sin(pos_w * div_term).T[:, None, :], height, axis=1)
    pe[1:half:2, :, :] = np.repeat(np.cos(pos_w * div_term).T[:, None, :], height, axis=1)
    pe[half::2, :, :] = np.repeat(np.sin(pos_h * div_term).T[:, :, None], width, axis=2)
    pe[half + 1::2, :, :] = np.repeat(np.cos(pos_h * div_term).T[:, :, None], width, axis=2)
    return jnp.asarray(np.broadcast_to(pe[None], (batch, d_model, height, width)).copy())


def make_penalty_mask(batch, height, width, alpha=1.0):
    """Deterministic distance-based penalty, shape (batch, H, W, H, W)."""
    ys, xs = np.meshgrid(np.arange(height), np.arange(width), indexing="ij")
    coords = np.stack([ys.ravel(), xs.ravel()], axis=-1).astype(np.float32)   # (HW, 2)
    d = np.linalg.norm(coords[:, None, :] - coords[None, :, :], axis=-1)       # (HW, HW)
    pen = (1.0 / (1.0 + alpha * d)).astype(np.float32)
    pen = pen.reshape(height, width, height, width)
    return jnp.asarray(np.broadcast_to(pen[None], (batch, height, width, height, width)).copy())


def init_params(key, *, batch_size, hidden_dim, h, w, num_layers, ffn_dim, num_classes):
    D = hidden_dim
    keys = jax.random.split(key, 4 + 6 * num_layers)
    ki = iter(keys)

    def dense(kk, fan_in, fan_out):
        bound = 1.0 / math.sqrt(fan_in)
        return jax.random.uniform(kk, (fan_in, fan_out), jnp.float32, -bound, bound)

    conv_w = dense(next(ki), 3, D)
    conv_b = jax.random.uniform(next(ki), (D,), jnp.float32, -0.5, 0.5)
    fc1_w = dense(next(ki), D * h * w, num_classes)
    fc1_b = jax.random.uniform(next(ki), (num_classes,), jnp.float32, -0.05, 0.05)

    wq, wk, wv, wo, w1, w2 = [], [], [], [], [], []
    for _ in range(num_layers):
        wq.append(dense(next(ki), D, D))
        wk.append(dense(next(ki), D, D))
        wv.append(dense(next(ki), D, D))
        wo.append(dense(next(ki), D, D))
        w1.append(dense(next(ki), D, ffn_dim))
        w2.append(dense(next(ki), ffn_dim, D))

    L = num_layers
    params = {
        "conv_w": conv_w,
        "conv_b": conv_b.reshape(1, D),
        "fc1_w": fc1_w,
        "fc1_b": fc1_b,
        "pos": positionalencoding2d(batch_size, D, h, w),
        "mask": jnp.zeros((batch_size, h, w), dtype=bool),       # all-False => no key padding
        "penalty_mask": make_penalty_mask(batch_size, h, w, alpha=1.0),
        # Stacked per-layer weights (leading layer axis), Q/K fused to (D, 2D).
        "wqk": jnp.stack([jnp.concatenate([wq[l], wk[l]], axis=1) for l in range(L)]),
        "bqk": jnp.zeros((L, 1, 2 * D), jnp.float32),
        "wv": jnp.stack(wv), "bv": jnp.zeros((L, 1, D), jnp.float32),
        "wo": jnp.stack(wo), "bo": jnp.zeros((L, 1, D), jnp.float32),
        "w1": jnp.stack(w1), "b1": jnp.zeros((L, 1, ffn_dim), jnp.float32),
        "w2": jnp.stack(w2), "b2": jnp.zeros((L, 1, D), jnp.float32),
        "ln1_g": jnp.ones((L, 1, D), jnp.float32), "ln1_b": jnp.zeros((L, 1, D), jnp.float32),
        "ln2_g": jnp.ones((L, 1, D), jnp.float32), "ln2_b": jnp.zeros((L, 1, D), jnp.float32),
    }
    return params


# ----------------------------------------------------------------------------
# Joiner forward (thin glue around the two Pallas kernels)
# ----------------------------------------------------------------------------

def joiner_forward(params, inputs):
    B, Cin, H, W = inputs.shape
    D = params["conv_w"].shape[1]
    F = params["w1"].shape[-1]
    L = params["wqk"].shape[0]
    C = params["fc1_w"].shape[1]
    S = H * W

    # Token-major input (B, S, Cin) — NCHW -> NHWC flatten (tiny XLA glue).
    x_tok = jnp.transpose(inputs, (0, 2, 3, 1)).reshape(B, S, Cin)

    # Positional encoding / penalty mask, sliced to the runtime batch like PyTorch.
    pos_seq = jnp.transpose(params["pos"][:B].reshape(B, D, S), (0, 2, 1))   # (B, S, D)
    pm_flat = params["penalty_mask"][:B].reshape(B, S, S)

    per_batch_SD = pl.BlockSpec((None, S, D), lambda b: (b, 0, 0))
    per_batch_SS = pl.BlockSpec((None, S, S), lambda b: (b, 0, 0))
    resident3 = lambda shp: pl.BlockSpec(shp, lambda b: (0, 0, 0))
    resident2 = lambda shp: pl.BlockSpec(shp, lambda b: (0, 0))

    kern = functools.partial(_encoder_kernel, num_layers=L,
                             scale=1.0 / math.sqrt(D), eps=1e-5)

    x_out, sattn_flat, pattn_flat = pl.pallas_call(
        kern,
        grid=(B,),
        in_specs=[
            pl.BlockSpec((None, S, Cin), lambda b: (b, 0, 0)),   # x tokens
            per_batch_SD,                                        # pos
            per_batch_SS,                                        # penalty mask (flat)
            resident2((Cin, D)),                                 # conv_w
            resident2((1, D)),                                   # conv_b
            resident3((L, D, 2 * D)),                            # wqk
            resident3((L, 1, 2 * D)),                            # bqk
            resident3((L, D, D)),                                # wv
            resident3((L, 1, D)),                                # bv
            resident3((L, D, D)),                                # wo
            resident3((L, 1, D)),                                # bo
            resident3((L, D, F)),                                # w1
            resident3((L, 1, F)),                                # b1
            resident3((L, F, D)),                                # w2
            resident3((L, 1, D)),                                # b2
            resident3((L, 1, D)),                                # ln1_g
            resident3((L, 1, D)),                                # ln1_b
            resident3((L, 1, D)),                                # ln2_g
            resident3((L, 1, D)),                                # ln2_b
        ],
        out_specs=(per_batch_SD, per_batch_SS, per_batch_SS),
        out_shape=(jax.ShapeDtypeStruct((B, S, D), jnp.float32),
                   jax.ShapeDtypeStruct((B, S, S), jnp.float32),
                   jax.ShapeDtypeStruct((B, S, S), jnp.float32)),
        compiler_params=pltpu.CompilerParams(dimension_semantics=("parallel",)),
    )(x_tok, pos_seq, pm_flat,
      params["conv_w"], params["conv_b"],
      params["wqk"], params["bqk"], params["wv"], params["bv"],
      params["wo"], params["bo"], params["w1"], params["b1"],
      params["w2"], params["b2"],
      params["ln1_g"], params["ln1_b"], params["ln2_g"], params["ln2_b"])

    # Outputs are already in the permuted orientation -> only free reshapes here.
    sattn5 = sattn_flat.reshape(B, H, W, H, W)
    pattn5 = pattn_flat.reshape(B, H, W, H, W)

    # Classifier: att.flatten(1) @ fc1_w.  fc1_w is re-laid-out (param-only, 80 KB)
    # so the token-major encoder output flattens for free (no activation transpose).
    xf = x_out.reshape(B, S * D)                                  # xf[b, s*D+d] = x[b,s,d]
    w_cls = jnp.transpose(params["fc1_w"].reshape(D, S, C), (1, 0, 2)).reshape(S * D, C)
    logits = pl.pallas_call(
        _classifier_kernel,
        out_shape=jax.ShapeDtypeStruct((B, C), jnp.float32),
        in_specs=[pl.BlockSpec(memory_space=pltpu.MemorySpace.VMEM)] * 3,
        out_specs=pl.BlockSpec(memory_space=pltpu.MemorySpace.VMEM),
    )(xf, w_cls, params["fc1_b"].reshape(1, C))

    return logits, sattn5, pattn5


# ----------------------------------------------------------------------------
# Main
# ----------------------------------------------------------------------------

if __name__ == "__main__":
    B = 2
    image_h = image_w = 8        # backbone=False => f_map = image size, S = 64
    hidden_dim = 32
    num_encoder_layers = 2
    ffn_dim = 64
    num_classes = 10
    param_batch_size = 4         # Joiner's stored pos/mask/penalty batch (sliced in forward)

    key = jax.random.PRNGKey(0)
    k_params, k_input = jax.random.split(key)

    params = init_params(
        k_params,
        batch_size=param_batch_size,
        hidden_dim=hidden_dim,
        h=image_h, w=image_w,
        num_layers=num_encoder_layers,
        ffn_dim=ffn_dim,
        num_classes=num_classes,
    )

    inputs = jax.random.normal(k_input, (B, 3, image_h, image_w), dtype=jnp.float32)  # NCHW

    fwd = jax.jit(joiner_forward)
    logits, sattn, pattn = fwd(params, inputs)
    jax.block_until_ready((logits, sattn, pattn))

    assert logits.shape == (B, num_classes)
    assert sattn.shape == (B, image_h, image_w, image_h, image_w)
    assert pattn.shape == (B, image_h, image_w, image_h, image_w)
    assert bool(jnp.all(jnp.isfinite(logits)))
    assert bool(jnp.all(jnp.isfinite(sattn)))
    assert bool(jnp.all(jnp.isfinite(pattn)))

    print("KERNEL_OK")
</pallas_src>

<mosaic_0001>
module attributes {stable_mosaic.version = 11 : i64} {
  func.func @_encoder_kernel(%arg0: i32, %arg1: memref<1x64x3xf32, #tpu.memory_space<vmem>>, %arg2: memref<1x64x32xf32, #tpu.memory_space<vmem>>, %arg3: memref<1x64x64xf32, #tpu.memory_space<vmem>>, %arg4: memref<3x32xf32, #tpu.memory_space<vmem>>, %arg5: memref<1x32xf32, #tpu.memory_space<vmem>>, %arg6: memref<2x32x64xf32, #tpu.memory_space<vmem>>, %arg7: memref<2x1x64xf32, #tpu.memory_space<vmem>>, %arg8: memref<2x32x32xf32, #tpu.memory_space<vmem>>, %arg9: memref<2x1x32xf32, #tpu.memory_space<vmem>>, %arg10: memref<2x32x32xf32, #tpu.memory_space<vmem>>, %arg11: memref<2x1x32xf32, #tpu.memory_space<vmem>>, %arg12: memref<2x32x64xf32, #tpu.memory_space<vmem>>, %arg13: memref<2x1x64xf32, #tpu.memory_space<vmem>>, %arg14: memref<2x64x32xf32, #tpu.memory_space<vmem>>, %arg15: memref<2x1x32xf32, #tpu.memory_space<vmem>>, %arg16: memref<2x1x32xf32, #tpu.memory_space<vmem>>, %arg17: memref<2x1x32xf32, #tpu.memory_space<vmem>>, %arg18: memref<2x1x32xf32, #tpu.memory_space<vmem>>, %arg19: memref<2x1x32xf32, #tpu.memory_space<vmem>>, %arg20: memref<1x64x32xf32, #tpu.memory_space<vmem>>, %arg21: memref<1x64x64xf32, #tpu.memory_space<vmem>>, %arg22: memref<1x64x64xf32, #tpu.memory_space<vmem>>) attributes {dimension_semantics = [#tpu.dimension_semantics<parallel>], iteration_bounds = array<i64: 2>, scalar_prefetch = 0 : i64, scratch_operands = 0 : i64, tpu.core_type = #tpu.core_type<tc>, window_params = [{transform_indices = @transform_0, window_bounds = array<i64: 1, 64, 3>}, {transform_indices = @transform_1, window_bounds = array<i64: 1, 64, 32>}, {transform_indices = @transform_2, window_bounds = array<i64: 1, 64, 64>}, {pipeline_mode = #tpu.pipeline_mode<synchronous>, transform_indices = @transform_3, window_bounds = array<i64: 3, 32>}, {pipeline_mode = #tpu.pipeline_mode<synchronous>, transform_indices = @transform_4, window_bounds = array<i64: 1, 32>}, {pipeline_mode = #tpu.pipeline_mode<synchronous>, transform_indices = @transform_5, window_bounds = array<i64: 2, 32, 64>}, {pipeline_mode = #tpu.pipeline_mode<synchronous>, transform_indices = @transform_6, window_bounds = array<i64: 2, 1, 64>}, {pipeline_mode = #tpu.pipeline_mode<synchronous>, transform_indices = @transform_7, window_bounds = array<i64: 2, 32, 32>}, {pipeline_mode = #tpu.pipeline_mode<synchronous>, transform_indices = @transform_8, window_bounds = array<i64: 2, 1, 32>}, {pipeline_mode = #tpu.pipeline_mode<synchronous>, transform_indices = @transform_9, window_bounds = array<i64: 2, 32, 32>}, {pipeline_mode = #tpu.pipeline_mode<synchronous>, transform_indices = @transform_10, window_bounds = array<i64: 2, 1, 32>}, {pipeline_mode = #tpu.pipeline_mode<synchronous>, transform_indices = @transform_11, window_bounds = array<i64: 2, 32, 64>}, {pipeline_mode = #tpu.pipeline_mode<synchronous>, transform_indices = @transform_12, window_bounds = array<i64: 2, 1, 64>}, {pipeline_mode = #tpu.pipeline_mode<synchronous>, transform_indices = @transform_13, window_bounds = array<i64: 2, 64, 32>}, {pipeline_mode = #tpu.pipeline_mode<synchronous>, transform_indices = @transform_14, window_bounds = array<i64: 2, 1, 32>}, {pipeline_mode = #tpu.pipeline_mode<synchronous>, transform_indices = @transform_15, window_bounds = array<i64: 2, 1, 32>}, {pipeline_mode = #tpu.pipeline_mode<synchronous>, transform_indices = @transform_16, window_bounds = array<i64: 2, 1, 32>}, {pipeline_mode = #tpu.pipeline_mode<synchronous>, transform_indices = @transform_17, window_bounds = array<i64: 2, 1, 32>}, {pipeline_mode = #tpu.pipeline_mode<synchronous>, transform_indices = @transform_18, window_bounds = array<i64: 2, 1, 32>}, {transform_indices = @transform_19, window_bounds = array<i64: 1, 64, 32>}, {transform_indices = @transform_20, window_bounds = array<i64: 1, 64, 64>}, {transform_indices = @transform_21, window_bounds = array<i64: 1, 64, 64>}]} {
    %c0 = arith.constant 0 : index
    %c0_0 = arith.constant 0 : index
    %c0_1 = arith.constant 0 : index
    %0 = vector.load %arg1[%c0, %c0_0, %c0_1] : memref<1x64x3xf32, #tpu.memory_space<vmem>>, vector<1x64x3xf32>
    %1 = vector.shape_cast %0 : vector<1x64x3xf32> to vector<64x3xf32>
    %c0_2 = arith.constant 0 : index
    %c0_3 = arith.constant 0 : index
    %2 = vector.load %arg4[%c0_2, %c0_3] : memref<3x32xf32, #tpu.memory_space<vmem>>, vector<3x32xf32>
    %cst = arith.constant dense<0.000000e+00> : vector<64x32xf32>
    %3 = tpu.matmul %1, %2, %cst {dimension_numbers = #tpu.dot_dimension_numbers<[1], [0], [0], [1], [0, 0, 1, 1], [], []>} : vector<64x3xf32>, vector<3x32xf32>, vector<64x32xf32> -> vector<64x32xf32>
    %c0_4 = arith.constant 0 : index
    %c0_5 = arith.constant 0 : index
    %4 = vector.load %arg5[%c0_4, %c0_5] : memref<1x32xf32, #tpu.memory_space<vmem>>, vector<1x32xf32>
    %5 = vector.broadcast %4 : vector<1x32xf32> to vector<64x32xf32>
    %6 = arith.addf %3, %5 : vector<64x32xf32>
    %cst_6 = arith.constant 4.000000e-01 : f32
    %7 = vector.broadcast %cst_6 : f32 to vector<64x32xf32>
    %8 = arith.mulf %7, %6 : vector<64x32xf32>
    %c0_7 = arith.constant 0 : index
    %c0_8 = arith.constant 0 : index
    %c0_9 = arith.constant 0 : index
    %9 = vector.load %arg2[%c0_7, %c0_8, %c0_9] : memref<1x64x32xf32, #tpu.memory_space<vmem>>, vector<1x64x32xf32>
    %10 = vector.shape_cast %9 : vector<1x64x32xf32> to vector<64x32xf32>
    %11 = arith.addf %8, %10 : vector<64x32xf32>
    %c0_10 = arith.constant 0 : index
    %c0_11 = arith.constant 0 : index
    %c0_12 = arith.constant 0 : index
    %12 = vector.load %arg6[%c0_10, %c0_11, %c0_12] : memref<2x32x64xf32, #tpu.memory_space<vmem>>, vector<1x32x64xf32>
    %13 = vector.shape_cast %12 : vector<1x32x64xf32> to vector<32x64xf32>
    %cst_13 = arith.constant dense<0.000000e+00> : vector<64x64xf32>
    %14 = tpu.matmul %11, %13, %cst_13 {dimension_numbers = #tpu.dot_dimension_numbers<[1], [0], [0], [1], [0, 0, 1, 1], [], []>} : vector<64x32xf32>, vector<32x64xf32>, vector<64x64xf32> -> vector<64x64xf32>
    %c0_14 = arith.constant 0 : index
    %c0_15 = arith.constant 0 : index
    %c0_16 = arith.constant 0 : index
    %15 = vector.load %arg7[%c0_14, %c0_15, %c0_16] : memref<2x1x64xf32, #tpu.memory_space<vmem>>, vector<1x1x64xf32>
    %16 = vector.shape_cast %15 : vector<1x1x64xf32> to vector<1x64xf32>
    %17 = vector.broadcast %16 : vector<1x64xf32> to vector<64x64xf32>
    %18 = arith.addf %14, %17 : vector<64x64xf32>
    %19 = vector.extract_strided_slice %18 {offsets = [0, 0], sizes = [64, 32], strides = [1, 1]} : vector<64x64xf32> to vector<64x32xf32>
    %20 = vector.extract_strided_slice %18 {offsets = [0, 32], sizes = [64, 32], strides = [1, 1]} : vector<64x64xf32> to vector<64x32xf32>
    %c0_17 = arith.constant 0 : index
    %c0_18 = arith.constant 0 : index
    %c0_19 = arith.constant 0 : index
    %21 = vector.load %arg8[%c0_17, %c0_18, %c0_19] : memref<2x32x32xf32, #tpu.memory_space<vmem>>, vector<1x32x32xf32>
    %22 = vector.shape_cast %21 : vector<1x32x32xf32> to vector<32x32xf32>
    %cst_20 = arith.constant dense<0.000000e+00> : vector<64x32xf32>
    %23 = tpu.matmul %8, %22, %cst_20 {dimension_numbers = #tpu.dot_dimension_numbers<[1], [0], [0], [1], [0, 0, 1, 1], [], []>} : vector<64x32xf32>, vector<32x32xf32>, vector<64x32xf32> -> vector<64x32xf32>
    %c0_21 = arith.constant 0 : index
    %c0_22 = arith.constant 0 : index
    %c0_23 = arith.constant 0 : index
    %24 = vector.load %arg9[%c0_21, %c0_22, %c0_23] : memref<2x1x32xf32, #tpu.memory_space<vmem>>, vector<1x1x32xf32>
    %25 = vector.shape_cast %24 : vector<1x1x32xf32> to vector<1x32xf32>
    %26 = vector.broadcast %25 : vector<1x32xf32> to vector<64x32xf32>
    %27 = arith.addf %23, %26 : vector<64x32xf32>
    %cst_24 = arith.constant dense<0.000000e+00> : vector<64x64xf32>
    %28 = tpu.matmul %19, %20, %cst_24 {dimension_numbers = #tpu.dot_dimension_numbers<[1], [1], [0], [0], [0, 0, 1, 0], [], []>} : vector<64x32xf32>, vector<64x32xf32>, vector<64x64xf32> -> vector<64x64xf32>
    %cst_25 = arith.constant 0.176776692 : f32
    %29 = vector.broadcast %cst_25 : f32 to vector<64x64xf32>
    %30 = arith.mulf %28, %29 : vector<64x64xf32>
    %cst_26 = arith.constant dense<0xFF800000> : vector<64xf32>
    %31 = vector.multi_reduction <maximumf>, %30, %cst_26 [1] : vector<64x64xf32> to vector<64xf32>
    %32 = vector.shape_cast %31 : vector<64xf32> to vector<64x1xf32>
    %33 = vector.broadcast %32 : vector<64x1xf32> to vector<64x64xf32>
    %34 = arith.subf %30, %33 : vector<64x64xf32>
    %35 = math.exp %34 : vector<64x64xf32>
    %cst_27 = arith.constant dense<0.000000e+00> : vector<64xf32>
    %36 = vector.multi_reduction <add>, %35, %cst_27 [1] : vector<64x64xf32> to vector<64xf32>
    %37 = vector.shape_cast %36 : vector<64xf32> to vector<64x1xf32>
    %38 = tpu.reciprocal %37 {approx = true} : vector<64x1xf32> -> vector<64x1xf32>
    %39 = vector.broadcast %38 : vector<64x1xf32> to vector<64x64xf32>
    %40 = arith.mulf %35, %39 : vector<64x64xf32>
    %cst_28 = arith.constant dense<0.000000e+00> : vector<64x32xf32>
    %41 = tpu.matmul %40, %27, %cst_28 {dimension_numbers = #tpu.dot_dimension_numbers<[1], [0], [0], [1], [0, 0, 1, 1], [], []>} : vector<64x64xf32>, vector<64x32xf32>, vector<64x32xf32> -> vector<64x32xf32>
    %c0_29 = arith.constant 0 : index
    %c0_30 = arith.constant 0 : index
    %c0_31 = arith.constant 0 : index
    %42 = vector.load %arg10[%c0_29, %c0_30, %c0_31] : memref<2x32x32xf32, #tpu.memory_space<vmem>>, vector<1x32x32xf32>
    %43 = vector.shape_cast %42 : vector<1x32x32xf32> to vector<32x32xf32>
    %cst_32 = arith.constant dense<0.000000e+00> : vector<64x32xf32>
    %44 = tpu.matmul %41, %43, %cst_32 {dimension_numbers = #tpu.dot_dimension_numbers<[1], [0], [0], [1], [0, 0, 1, 1], [], []>} : vector<64x32xf32>, vector<32x32xf32>, vector<64x32xf32> -> vector<64x32xf32>
    %c0_33 = arith.constant 0 : index
    %c0_34 = arith.constant 0 : index
    %c0_35 = arith.constant 0 : index
    %45 = vector.load %arg11[%c0_33, %c0_34, %c0_35] : memref<2x1x32xf32, #tpu.memory_space<vmem>>, vector<1x1x32xf32>
    %46 = vector.shape_cast %45 : vector<1x1x32xf32> to vector<1x32xf32>
    %47 = vector.broadcast %46 : vector<1x32xf32> to vector<64x32xf32>
    %48 = arith.addf %44, %47 : vector<64x32xf32>
    %49 = arith.addf %8, %48 : vector<64x32xf32>
    %c0_36 = arith.constant 0 : index
    %c0_37 = arith.constant 0 : index
    %c0_38 = arith.constant 0 : index
    %50 = vector.load %arg16[%c0_36, %c0_37, %c0_38] : memref<2x1x32xf32, #tpu.memory_space<vmem>>, vector<1x1x32xf32>
    %51 = vector.shape_cast %50 : vector<1x1x32xf32> to vector<1x32xf32>
    %c0_39 = arith.constant 0 : index
    %c0_40 = arith.constant 0 : index
    %c0_41 = arith.constant 0 : index
    %52 = vector.load %arg17[%c0_39, %c0_40, %c0_41] : memref<2x1x32xf32, #tpu.memory_space<vmem>>, vector<1x1x32xf32>
    %53 = vector.shape_cast %52 : vector<1x1x32xf32> to vector<1x32xf32>
    %cst_42 = arith.constant dense<0.000000e+00> : vector<64xf32>
    %54 = vector.multi_reduction <add>, %49, %cst_42 [1] : vector<64x32xf32> to vector<64xf32>
    %55 = vector.shape_cast %54 : vector<64xf32> to vector<64x1xf32>
    %cst_43 = arith.constant 3.200000e+01 : f32
    %56 = vector.broadcast %cst_43 : f32 to vector<64x1xf32>
    %57 = arith.divf %55, %56 : vector<64x1xf32>
    %58 = vector.broadcast %57 : vector<64x1xf32> to vector<64x32xf32>
    %59 = arith.subf %49, %58 : vector<64x32xf32>
    %60 = vector.broadcast %57 : vector<64x1xf32> to vector<64x32xf32>
    %61 = arith.subf %49, %60 : vector<64x32xf32>
    %62 = arith.mulf %59, %61 : vector<64x32xf32>
    %cst_44 = arith.constant dense<0.000000e+00> : vector<64xf32>
    %63 = vector.multi_reduction <add>, %62, %cst_44 [1] : vector<64x32xf32> to vector<64xf32>
    %64 = vector.shape_cast %63 : vector<64xf32> to vector<64x1xf32>
    %cst_45 = arith.constant 3.200000e+01 : f32
    %65 = vector.broadcast %cst_45 : f32 to vector<64x1xf32>
    %66 = arith.divf %64, %65 : vector<64x1xf32>
    %67 = vector.broadcast %57 : vector<64x1xf32> to vector<64x32xf32>
    %68 = arith.subf %49, %67 : vector<64x32xf32>
    %cst_46 = arith.constant 9.99999974E-6 : f32
    %69 = vector.broadcast %cst_46 : f32 to vector<64x1xf32>
    %70 = arith.addf %66, %69 : vector<64x1xf32>
    %71 = math.rsqrt %70 : vector<64x1xf32>
    %72 = vector.broadcast %71 : vector<64x1xf32> to vector<64x32xf32>
    %73 = arith.mulf %68, %72 : vector<64x32xf32>
    %74 = vector.broadcast %51 : vector<1x32xf32> to vector<64x32xf32>
    %75 = arith.mulf %73, %74 : vector<64x32xf32>
    %76 = vector.broadcast %53 : vector<1x32xf32> to vector<64x32xf32>
    %77 = arith.addf %75, %76 : vector<64x32xf32>
    %c0_47 = arith.constant 0 : index
    %c0_48 = arith.constant 0 : index
    %c0_49 = arith.constant 0 : index
    %78 = vector.load %arg12[%c0_47, %c0_48, %c0_49] : memref<2x32x64xf32, #tpu.memory_space<vmem>>, vector<1x32x64xf32>
    %79 = vector.shape_cast %78 : vector<1x32x64xf32> to vector<32x64xf32>
    %cst_50 = arith.constant dense<0.000000e+00> : vector<64x64xf32>
    %80 = tpu.matmul %77, %79, %cst_50 {dimension_numbers = #tpu.dot_dimension_numbers<[1], [0], [0], [1], [0, 0, 1, 1], [], []>} : vector<64x32xf32>, vector<32x64xf32>, vector<64x64xf32> -> vector<64x64xf32>
    %c0_51 = arith.constant 0 : index
    %c0_52 = arith.constant 0 : index
    %c0_53 = arith.constant 0 : index
    %81 = vector.load %arg13[%c0_51, %c0_52, %c0_53] : memref<2x1x64xf32, #tpu.memory_space<vmem>>, vector<1x1x64xf32>
    %82 = vector.shape_cast %81 : vector<1x1x64xf32> to vector<1x64xf32>
    %83 = vector.broadcast %82 : vector<1x64xf32> to vector<64x64xf32>
    %84 = arith.addf %80, %83 : vector<64x64xf32>
    %cst_54 = arith.constant 0.000000e+00 : f32
    %85 = vector.broadcast %cst_54 : f32 to vector<64x64xf32>
    %86 = arith.maximumf %84, %85 : vector<64x64xf32>
    %c0_55 = arith.constant 0 : index
    %c0_56 = arith.constant 0 : index
    %c0_57 = arith.constant 0 : index
    %87 = vector.load %arg14[%c0_55, %c0_56, %c0_57] : memref<2x64x32xf32, #tpu.memory_space<vmem>>, vector<1x64x32xf32>
    %88 = vector.shape_cast %87 : vector<1x64x32xf32> to vector<64x32xf32>
    %cst_58 = arith.constant dense<0.000000e+00> : vector<64x32xf32>
    %89 = tpu.matmul %86, %88, %cst_58 {dimension_numbers = #tpu.dot_dimension_numbers<[1], [0], [0], [1], [0, 0, 1, 1], [], []>} : vector<64x64xf32>, vector<64x32xf32>, vector<64x32xf32> -> vector<64x32xf32>
    %c0_59 = arith.constant 0 : index
    %c0_60 = arith.constant 0 : index
    %c0_61 = arith.constant 0 : index
    %90 = vector.load %arg15[%c0_59, %c0_60, %c0_61] : memref<2x1x32xf32, #tpu.memory_space<vmem>>, vector<1x1x32xf32>
    %91 = vector.shape_cast %90 : vector<1x1x32xf32> to vector<1x32xf32>
    %92 = vector.broadcast %91 : vector<1x32xf32> to vector<64x32xf32>
    %93 = arith.addf %89, %92 : vector<64x32xf32>
    %94 = arith.addf %77, %93 : vector<64x32xf32>
    %c0_62 = arith.constant 0 : index
    %c0_63 = arith.constant 0 : index
    %c0_64 = arith.constant 0 : index
    %95 = vector.load %arg18[%c0_62, %c0_63, %c0_64] : memref<2x1x32xf32, #tpu.memory_space<vmem>>, vector<1x1x32xf32>
    %96 = vector.shape_cast %95 : vector<1x1x32xf32> to vector<1x32xf32>
    %c0_65 = arith.constant 0 : index
    %c0_66 = arith.constant 0 : index
    %c0_67 = arith.constant 0 : index
    %97 = vector.load %arg19[%c0_65, %c0_66, %c0_67] : memref<2x1x32xf32, #tpu.memory_space<vmem>>, vector<1x1x32xf32>
    %98 = vector.shape_cast %97 : vector<1x1x32xf32> to vector<1x32xf32>
    %cst_68 = arith.constant dense<0.000000e+00> : vector<64xf32>
    %99 = vector.multi_reduction <add>, %94, %cst_68 [1] : vector<64x32xf32> to vector<64xf32>
    %100 = vector.shape_cast %99 : vector<64xf32> to vector<64x1xf32>
    %cst_69 = arith.constant 3.200000e+01 : f32
    %101 = vector.broadcast %cst_69 : f32 to vector<64x1xf32>
    %102 = arith.divf %100, %101 : vector<64x1xf32>
    %103 = vector.broadcast %102 : vector<64x1xf32> to vector<64x32xf32>
    %104 = arith.subf %94, %103 : vector<64x32xf32>
    %105 = vector.broadcast %102 : vector<64x1xf32> to vector<64x32xf32>
    %106 = arith.subf %94, %105 : vector<64x32xf32>
    %107 = arith.mulf %104, %106 : vector<64x32xf32>
    %cst_70 = arith.constant dense<0.000000e+00> : vector<64xf32>
    %108 = vector.multi_reduction <add>, %107, %cst_70 [1] : vector<64x32xf32> to vector<64xf32>
    %109 = vector.shape_cast %108 : vector<64xf32> to vector<64x1xf32>
    %cst_71 = arith.constant 3.200000e+01 : f32
    %110 = vector.broadcast %cst_71 : f32 to vector<64x1xf32>
    %111 = arith.divf %109, %110 : vector<64x1xf32>
    %112 = vector.broadcast %102 : vector<64x1xf32> to vector<64x32xf32>
    %113 = arith.subf %94, %112 : vector<64x32xf32>
    %cst_72 = arith.constant 9.99999974E-6 : f32
    %114 = vector.broadcast %cst_72 : f32 to vector<64x1xf32>
    %115 = arith.addf %111, %114 : vector<64x1xf32>
    %116 = math.rsqrt %115 : vector<64x1xf32>
    %117 = vector.broadcast %116 : vector<64x1xf32> to vector<64x32xf32>
    %118 = arith.mulf %113, %117 : vector<64x32xf32>
    %119 = vector.broadcast %96 : vector<1x32xf32> to vector<64x32xf32>
    %120 = arith.mulf %118, %119 : vector<64x32xf32>
    %121 = vector.broadcast %98 : vector<1x32xf32> to vector<64x32xf32>
    %122 = arith.addf %120, %121 : vector<64x32xf32>
    %123 = arith.addf %122, %10 : vector<64x32xf32>
    %c1 = arith.constant 1 : index
    %c0_73 = arith.constant 0 : index
    %c0_74 = arith.constant 0 : index
    %124 = vector.load %arg6[%c1, %c0_73, %c0_74] : memref<2x32x64xf32, #tpu.memory_space<vmem>>, vector<1x32x64xf32>
    %125 = vector.shape_cast %124 : vector<1x32x64xf32> to vector<32x64xf32>
    %cst_75 = arith.constant dense<0.000000e+00> : vector<64x64xf32>
    %126 = tpu.matmul %123, %125, %cst_75 {dimension_numbers = #tpu.dot_dimension_numbers<[1], [0], [0], [1], [0, 0, 1, 1], [], []>} : vector<64x32xf32>, vector<32x64xf32>, vector<64x64xf32> -> vector<64x64xf32>
    %c1_76 = arith.constant 1 : index
    %c0_77 = arith.constant 0 : index
    %c0_78 = arith.constant 0 : index
    %127 = vector.load %arg7[%c1_76, %c0_77, %c0_78] : memref<2x1x64xf32, #tpu.memory_space<vmem>>, vector<1x1x64xf32>
    %128 = vector.shape_cast %127 : vector<1x1x64xf32> to vector<1x64xf32>
    %129 = vector.broadcast %128 : vector<1x64xf32> to vector<64x64xf32>
    %130 = arith.addf %126, %129 : vector<64x64xf32>
    %131 = vector.extract_strided_slice %130 {offsets = [0, 0], sizes = [64, 32], strides = [1, 1]} : vector<64x64xf32> to vector<64x32xf32>
    %132 = vector.extract_strided_slice %130 {offsets = [0, 32], sizes = [64, 32], strides = [1, 1]} : vector<64x64xf32> to vector<64x32xf32>
    %c1_79 = arith.constant 1 : index
    %c0_80 = arith.constant 0 : index
    %c0_81 = arith.constant 0 : index
    %133 = vector.load %arg8[%c1_79, %c0_80, %c0_81] : memref<2x32x32xf32, #tpu.memory_space<vmem>>, vector<1x32x32xf32>
    %134 = vector.shape_cast %133 : vector<1x32x32xf32> to vector<32x32xf32>
    %cst_82 = arith.constant dense<0.000000e+00> : vector<64x32xf32>
    %135 = tpu.matmul %122, %134, %cst_82 {dimension_numbers = #tpu.dot_dimension_numbers<[1], [0], [0], [1], [0, 0, 1, 1], [], []>} : vector<64x32xf32>, vector<32x32xf32>, vector<64x32xf32> -> vector<64x32xf32>
    %c1_83 = arith.constant 1 : index
    %c0_84 = arith.constant 0 : index
    %c0_85 = arith.constant 0 : index
    %136 = vector.load %arg9[%c1_83, %c0_84, %c0_85] : memref<2x1x32xf32, #tpu.memory_space<vmem>>, vector<1x1x32xf32>
    %137 = vector.shape_cast %136 : vector<1x1x32xf32> to vector<1x32xf32>
    %138 = vector.broadcast %137 : vector<1x32xf32> to vector<64x32xf32>
    %139 = arith.addf %135, %138 : vector<64x32xf32>
    %cst_86 = arith.constant dense<0.000000e+00> : vector<64x64xf32>
    %140 = tpu.matmul %131, %132, %cst_86 {dimension_numbers = #tpu.dot_dimension_numbers<[1], [1], [0], [0], [0, 0, 1, 0], [], []>} : vector<64x32xf32>, vector<64x32xf32>, vector<64x64xf32> -> vector<64x64xf32>
    %cst_87 = arith.constant 0.176776692 : f32
    %141 = vector.broadcast %cst_87 : f32 to vector<64x64xf32>
    %142 = arith.mulf %140, %141 : vector<64x64xf32>
    %cst_88 = arith.constant dense<0xFF800000> : vector<64xf32>
    %143 = vector.multi_reduction <maximumf>, %142, %cst_88 [1] : vector<64x64xf32> to vector<64xf32>
    %144 = vector.shape_cast %143 : vector<64xf32> to vector<64x1xf32>
    %145 = vector.broadcast %144 : vector<64x1xf32> to vector<64x64xf32>
    %146 = arith.subf %142, %145 : vector<64x64xf32>
    %147 = math.exp %146 : vector<64x64xf32>
    %cst_89 = arith.constant dense<0.000000e+00> : vector<64xf32>
    %148 = vector.multi_reduction <add>, %147, %cst_89 [1] : vector<64x64xf32> to vector<64xf32>
    %149 = vector.shape_cast %148 : vector<64xf32> to vector<64x1xf32>
    %150 = tpu.reciprocal %149 {approx = true} : vector<64x1xf32> -> vector<64x1xf32>
    %151 = vector.broadcast %150 : vector<64x1xf32> to vector<64x64xf32>
    %152 = arith.mulf %147, %151 : vector<64x64xf32>
    %cst_90 = arith.constant dense<0.000000e+00> : vector<64x32xf32>
    %153 = tpu.matmul %152, %139, %cst_90 {dimension_numbers = #tpu.dot_dimension_numbers<[1], [0], [0], [1], [0, 0, 1, 1], [], []>} : vector<64x64xf32>, vector<64x32xf32>, vector<64x32xf32> -> vector<64x32xf32>
    %c1_91 = arith.constant 1 : index
    %c0_92 = arith.constant 0 : index
    %c0_93 = arith.constant 0 : index
    %154 = vector.load %arg10[%c1_91, %c0_92, %c0_93] : memref<2x32x32xf32, #tpu.memory_space<vmem>>, vector<1x32x32xf32>
    %155 = vector.shape_cast %154 : vector<1x32x32xf32> to vector<32x32xf32>
    %cst_94 = arith.constant dense<0.000000e+00> : vector<64x32xf32>
    %156 = tpu.matmul %153, %155, %cst_94 {dimension_numbers = #tpu.dot_dimension_numbers<[1], [0], [0], [1], [0, 0, 1, 1], [], []>} : vector<64x32xf32>, vector<32x32xf32>, vector<64x32xf32> -> vector<64x32xf32>
    %c1_95 = arith.constant 1 : index
    %c0_96 = arith.constant 0 : index
    %c0_97 = arith.constant 0 : index
    %157 = vector.load %arg11[%c1_95, %c0_96, %c0_97] : memref<2x1x32xf32, #tpu.memory_space<vmem>>, vector<1x1x32xf32>
    %158 = vector.shape_cast %157 : vector<1x1x32xf32> to vector<1x32xf32>
    %159 = vector.broadcast %158 : vector<1x32xf32> to vector<64x32xf32>
    %160 = arith.addf %156, %159 : vector<64x32xf32>
    %161 = arith.addf %122, %160 : vector<64x32xf32>
    %c1_98 = arith.constant 1 : index
    %c0_99 = arith.constant 0 : index
    %c0_100 = arith.constant 0 : index
    %162 = vector.load %arg16[%c1_98, %c0_99, %c0_100] : memref<2x1x32xf32, #tpu.memory_space<vmem>>, vector<1x1x32xf32>
    %163 = vector.shape_cast %162 : vector<1x1x32xf32> to vector<1x32xf32>
    %c1_101 = arith.constant 1 : index
    %c0_102 = arith.constant 0 : index
    %c0_103 = arith.constant 0 : index
    %164 = vector.load %arg17[%c1_101, %c0_102, %c0_103] : memref<2x1x32xf32, #tpu.memory_space<vmem>>, vector<1x1x32xf32>
    %165 = vector.shape_cast %164 : vector<1x1x32xf32> to vector<1x32xf32>
    %cst_104 = arith.constant dense<0.000000e+00> : vector<64xf32>
    %166 = vector.multi_reduction <add>, %161, %cst_104 [1] : vector<64x32xf32> to vector<64xf32>
    %167 = vector.shape_cast %166 : vector<64xf32> to vector<64x1xf32>
    %cst_105 = arith.constant 3.200000e+01 : f32
    %168 = vector.broadcast %cst_105 : f32 to vector<64x1xf32>
    %169 = arith.divf %167, %168 : vector<64x1xf32>
    %170 = vector.broadcast %169 : vector<64x1xf32> to vector<64x32xf32>
    %171 = arith.subf %161, %170 : vector<64x32xf32>
    %172 = vector.broadcast %169 : vector<64x1xf32> to vector<64x32xf32>
    %173 = arith.subf %161, %172 : vector<64x32xf32>
    %174 = arith.mulf %171, %173 : vector<64x32xf32>
    %cst_106 = arith.constant dense<0.000000e+00> : vector<64xf32>
    %175 = vector.multi_reduction <add>, %174, %cst_106 [1] : vector<64x32xf32> to vector<64xf32>
    %176 = vector.shape_cast %175 : vector<64xf32> to vector<64x1xf32>
    %cst_107 = arith.constant 3.200000e+01 : f32
    %177 = vector.broadcast %cst_107 : f32 to vector<64x1xf32>
    %178 = arith.divf %176, %177 : vector<64x1xf32>
    %179 = vector.broadcast %169 : vector<64x1xf32> to vector<64x32xf32>
    %180 = arith.subf %161, %179 : vector<64x32xf32>
    %cst_108 = arith.constant 9.99999974E-6 : f32
    %181 = vector.broadcast %cst_108 : f32 to vector<64x1xf32>
    %182 = arith.addf %178, %181 : vector<64x1xf32>
    %183 = math.rsqrt %182 : vector<64x1xf32>
    %184 = vector.broadcast %183 : vector<64x1xf32> to vector<64x32xf32>
    %185 = arith.mulf %180, %184 : vector<64x32xf32>
    %186 = vector.broadcast %163 : vector<1x32xf32> to vector<64x32xf32>
    %187 = arith.mulf %185, %186 : vector<64x32xf32>
    %188 = vector.broadcast %165 : vector<1x32xf32> to vector<64x32xf32>
    %189 = arith.addf %187, %188 : vector<64x32xf32>
    %c1_109 = arith.constant 1 : index
    %c0_110 = arith.constant 0 : index
    %c0_111 = arith.constant 0 : index
    %190 = vector.load %arg12[%c1_109, %c0_110, %c0_111] : memref<2x32x64xf32, #tpu.memory_space<vmem>>, vector<1x32x64xf32>
    %191 = vector.shape_cast %190 : vector<1x32x64xf32> to vector<32x64xf32>
    %cst_112 = arith.constant dense<0.000000e+00> : vector<64x64xf32>
    %192 = tpu.matmul %189, %191, %cst_112 {dimension_numbers = #tpu.dot_dimension_numbers<[1], [0], [0], [1], [0, 0, 1, 1], [], []>} : vector<64x32xf32>, vector<32x64xf32>, vector<64x64xf32> -> vector<64x64xf32>
    %c1_113 = arith.constant 1 : index
    %c0_114 = arith.constant 0 : index
    %c0_115 = arith.constant 0 : index
    %193 = vector.load %arg13[%c1_113, %c0_114, %c0_115] : memref<2x1x64xf32, #tpu.memory_space<vmem>>, vector<1x1x64xf32>
    %194 = vector.shape_cast %193 : vector<1x1x64xf32> to vector<1x64xf32>
    %195 = vector.broadcast %194 : vector<1x64xf32> to vector<64x64xf32>
    %196 = arith.addf %192, %195 : vector<64x64xf32>
    %cst_116 = arith.constant 0.000000e+00 : f32
    %197 = vector.broadcast %cst_116 : f32 to vector<64x64xf32>
    %198 = arith.maximumf %196, %197 : vector<64x64xf32>
    %c1_117 = arith.constant 1 : index
    %c0_118 = arith.constant 0 : index
    %c0_119 = arith.constant 0 : index
    %199 = vector.load %arg14[%c1_117, %c0_118, %c0_119] : memref<2x64x32xf32, #tpu.memory_space<vmem>>, vector<1x64x32xf32>
    %200 = vector.shape_cast %199 : vector<1x64x32xf32> to vector<64x32xf32>
    %cst_120 = arith.constant dense<0.000000e+00> : vector<64x32xf32>
    %201 = tpu.matmul %198, %200, %cst_120 {dimension_numbers = #tpu.dot_dimension_numbers<[1], [0], [0], [1], [0, 0, 1, 1], [], []>} : vector<64x64xf32>, vector<64x32xf32>, vector<64x32xf32> -> vector<64x32xf32>
    %c1_121 = arith.constant 1 : index
    %c0_122 = arith.constant 0 : index
    %c0_123 = arith.constant 0 : index
    %202 = vector.load %arg15[%c1_121, %c0_122, %c0_123] : memref<2x1x32xf32, #tpu.memory_space<vmem>>, vector<1x1x32xf32>
    %203 = vector.shape_cast %202 : vector<1x1x32xf32> to vector<1x32xf32>
    %204 = vector.broadcast %203 : vector<1x32xf32> to vector<64x32xf32>
    %205 = arith.addf %201, %204 : vector<64x32xf32>
    %206 = arith.addf %189, %205 : vector<64x32xf32>
    %c1_124 = arith.constant 1 : index
    %c0_125 = arith.constant 0 : index
    %c0_126 = arith.constant 0 : index
    %207 = vector.load %arg18[%c1_124, %c0_125, %c0_126] : memref<2x1x32xf32, #tpu.memory_space<vmem>>, vector<1x1x32xf32>
    %208 = vector.shape_cast %207 : vector<1x1x32xf32> to vector<1x32xf32>
    %c1_127 = arith.constant 1 : index
    %c0_128 = arith.constant 0 : index
    %c0_129 = arith.constant 0 : index
    %209 = vector.load %arg19[%c1_127, %c0_128, %c0_129] : memref<2x1x32xf32, #tpu.memory_space<vmem>>, vector<1x1x32xf32>
    %210 = vector.shape_cast %209 : vector<1x1x32xf32> to vector<1x32xf32>
    %cst_130 = arith.constant dense<0.000000e+00> : vector<64xf32>
    %211 = vector.multi_reduction <add>, %206, %cst_130 [1] : vector<64x32xf32> to vector<64xf32>
    %212 = vector.shape_cast %211 : vector<64xf32> to vector<64x1xf32>
    %cst_131 = arith.constant 3.200000e+01 : f32
    %213 = vector.broadcast %cst_131 : f32 to vector<64x1xf32>
    %214 = arith.divf %212, %213 : vector<64x1xf32>
    %215 = vector.broadcast %214 : vector<64x1xf32> to vector<64x32xf32>
    %216 = arith.subf %206, %215 : vector<64x32xf32>
    %217 = vector.broadcast %214 : vector<64x1xf32> to vector<64x32xf32>
    %218 = arith.subf %206, %217 : vector<64x32xf32>
    %219 = arith.mulf %216, %218 : vector<64x32xf32>
    %cst_132 = arith.constant dense<0.000000e+00> : vector<64xf32>
    %220 = vector.multi_reduction <add>, %219, %cst_132 [1] : vector<64x32xf32> to vector<64xf32>
    %221 = vector.shape_cast %220 : vector<64xf32> to vector<64x1xf32>
    %cst_133 = arith.constant 3.200000e+01 : f32
    %222 = vector.broadcast %cst_133 : f32 to vector<64x1xf32>
    %223 = arith.divf %221, %222 : vector<64x1xf32>
    %224 = vector.broadcast %214 : vector<64x1xf32> to vector<64x32xf32>
    %225 = arith.subf %206, %224 : vector<64x32xf32>
    %cst_134 = arith.constant 9.99999974E-6 : f32
    %226 = vector.broadcast %cst_134 : f32 to vector<64x1xf32>
    %227 = arith.addf %223, %226 : vector<64x1xf32>
    %228 = math.rsqrt %227 : vector<64x1xf32>
    %229 = vector.broadcast %228 : vector<64x1xf32> to vector<64x32xf32>
    %230 = arith.mulf %225, %229 : vector<64x32xf32>
    %231 = vector.broadcast %208 : vector<1x32xf32> to vector<64x32xf32>
    %232 = arith.mulf %230, %231 : vector<64x32xf32>
    %233 = vector.broadcast %210 : vector<1x32xf32> to vector<64x32xf32>
    %234 = arith.addf %232, %233 : vector<64x32xf32>
    %c0_135 = arith.constant 0 : index
    %c0_136 = arith.constant 0 : index
    %c0_137 = arith.constant 0 : index
    %235 = vector.load %arg20[%c0_135, %c0_136, %c0_137] : memref<1x64x32xf32, #tpu.memory_space<vmem>>, vector<1x64x32xf32>
    %236 = vector.shape_cast %235 : vector<1x64x32xf32> to vector<64x32xf32>
    %237 = vector.shape_cast %234 : vector<64x32xf32> to vector<1x64x32xf32>
    tpu.vector_store %arg20[%c0_135, %c0_136, %c0_137], %237 {strides = array<i32>} : memref<1x64x32xf32, #tpu.memory_space<vmem>>, vector<1x64x32xf32>,
    %238 = tpu.transpose %152, [1, 0] : vector<64x64xf32> -> vector<64x64xf32>
    %c0_138 = arith.constant 0 : index
    %c0_139 = arith.constant 0 : index
    %c0_140 = arith.constant 0 : index
    %239 = vector.load %arg21[%c0_138, %c0_139, %c0_140] : memref<1x64x64xf32, #tpu.memory_space<vmem>>, vector<1x64x64xf32>
    %240 = vector.shape_cast %239 : vector<1x64x64xf32> to vector<64x64xf32>
    %241 = vector.shape_cast %238 : vector<64x64xf32> to vector<1x64x64xf32>
    tpu.vector_store %arg21[%c0_138, %c0_139, %c0_140], %241 {strides = array<i32>} : memref<1x64x64xf32, #tpu.memory_space<vmem>>, vector<1x64x64xf32>,
    %c0_141 = arith.constant 0 : index
    %c0_142 = arith.constant 0 : index
    %c0_143 = arith.constant 0 : index
    %242 = vector.load %arg3[%c0_141, %c0_142, %c0_143] : memref<1x64x64xf32, #tpu.memory_space<vmem>>, vector<1x64x64xf32>
    %243 = vector.shape_cast %242 : vector<1x64x64xf32> to vector<64x64xf32>
    %244 = arith.mulf %238, %243 : vector<64x64xf32>
    %c0_144 = arith.constant 0 : index
    %c0_145 = arith.constant 0 : index
    %c0_146 = arith.constant 0 : index
    %245 = vector.load %arg22[%c0_144, %c0_145, %c0_146] : memref<1x64x64xf32, #tpu.memory_space<vmem>>, vector<1x64x64xf32>
    %246 = vector.shape_cast %245 : vector<1x64x64xf32> to vector<64x64xf32>
    %247 = vector.shape_cast %244 : vector<64x64xf32> to vector<1x64x64xf32>
    tpu.vector_store %arg22[%c0_144, %c0_145, %c0_146], %247 {strides = array<i32>} : memref<1x64x64xf32, #tpu.memory_space<vmem>>, vector<1x64x64xf32>,
    return
  }
  func.func @transform_0(%arg0: i32) -> (i32, i32, i32) {
    %c0_i32 = arith.constant 0 : i32
    %c0_i32_0 = arith.constant 0 : i32
    %c0_i32_1 = arith.constant 0 : i32
    return %arg0, %c0_i32, %c0_i32_0 : i32, i32, i32
  }
  func.func @transform_1(%arg0: i32) -> (i32, i32, i32) {
    %c0_i32 = arith.constant 0 : i32
    %c0_i32_0 = arith.constant 0 : i32
    %c0_i32_1 = arith.constant 0 : i32
    return %arg0, %c0_i32, %c0_i32_0 : i32, i32, i32
  }
  func.func @transform_2(%arg0: i32) -> (i32, i32, i32) {
    %c0_i32 = arith.constant 0 : i32
    %c0_i32_0 = arith.constant 0 : i32
    %c0_i32_1 = arith.constant 0 : i32
    return %arg0, %c0_i32, %c0_i32_0 : i32, i32, i32
  }
  func.func @transform_3(%arg0: i32) -> (i32, i32) {
    %c0_i32 = arith.constant 0 : i32
    %c0_i32_0 = arith.constant 0 : i32
    %c0_i32_1 = arith.constant 0 : i32
    return %c0_i32, %c0_i32_0 : i32, i32
  }
  func.func @transform_4(%arg0: i32) -> (i32, i32) {
    %c0_i32 = arith.constant 0 : i32
    %c0_i32_0 = arith.constant 0 : i32
    %c0_i32_1 = arith.constant 0 : i32
    return %c0_i32, %c0_i32_0 : i32, i32
  }
  func.func @transform_5(%arg0: i32) -> (i32, i32, i32) {
    %c0_i32 = arith.constant 0 : i32
    %c0_i32_0 = arith.constant 0 : i32
    %c0_i32_1 = arith.constant 0 : i32
    %c0_i32_2 = arith.constant 0 : i32
    return %c0_i32, %c0_i32_0, %c0_i32_1 : i32, i32, i32
  }
  func.func @transform_6(%arg0: i32) -> (i32, i32, i32) {
    %c0_i32 = arith.constant 0 : i32
    %c0_i32_0 = arith.constant 0 : i32
    %c0_i32_1 = arith.constant 0 : i32
    %c0_i32_2 = arith.constant 0 : i32
    return %c0_i32, %c0_i32_0, %c0_i32_1 : i32, i32, i32
  }
  func.func @transform_7(%arg0: i32) -> (i32, i32, i32) {
    %c0_i32 = arith.constant 0 : i32
    %c0_i32_0 = arith.constant 0 : i32
    %c0_i32_1 = arith.constant 0 : i32
    %c0_i32_2 = arith.constant 0 : i32
    return %c0_i32, %c0_i32_0, %c0_i32_1 : i32, i32, i32
  }
  func.func @transform_8(%arg0: i32) -> (i32, i32, i32) {
    %c0_i32 = arith.constant 0 : i32
    %c0_i32_0 = arith.constant 0 : i32
    %c0_i32_1 = arith.constant 0 : i32
    %c0_i32_2 = arith.constant 0 : i32
    return %c0_i32, %c0_i32_0, %c0_i32_1 : i32, i32, i32
  }
  func.func @transform_9(%arg0: i32) -> (i32, i32, i32) {
    %c0_i32 = arith.constant 0 : i32
    %c0_i32_0 = arith.constant 0 : i32
    %c0_i32_1 = arith.constant 0 : i32
    %c0_i32_2 = arith.constant 0 : i32
    return %c0_i32, %c0_i32_0, %c0_i32_1 : i32, i32, i32
  }
  func.func @transform_10(%arg0: i32) -> (i32, i32, i32) {
    %c0_i32 = arith.constant 0 : i32
    %c0_i32_0 = arith.constant 0 : i32
    %c0_i32_1 = arith.constant 0 : i32
    %c0_i32_2 = arith.constant 0 : i32
    return %c0_i32, %c0_i32_0, %c0_i32_1 : i32, i32, i32
  }
  func.func @transform_11(%arg0: i32) -> (i32, i32, i32) {
    %c0_i32 = arith.constant 0 : i32
    %c0_i32_0 = arith.constant 0 : i32
    %c0_i32_1 = arith.constant 0 : i32
    %c0_i32_2 = arith.constant 0 : i32
    return %c0_i32, %c0_i32_0, %c0_i32_1 : i32, i32, i32
  }
  func.func @transform_12(%arg0: i32) -> (i32, i32, i32) {
    %c0_i32 = arith.constant 0 : i32
    %c0_i32_0 = arith.constant 0 : i32
    %c0_i32_1 = arith.constant 0 : i32
    %c0_i32_2 = arith.constant 0 : i32
    return %c0_i32, %c0_i32_0, %c0_i32_1 : i32, i32, i32
  }
  func.func @transform_13(%arg0: i32) -> (i32, i32, i32) {
    %c0_i32 = arith.constant 0 : i32
    %c0_i32_0 = arith.constant 0 : i32
    %c0_i32_1 = arith.constant 0 : i32
    %c0_i32_2 = arith.constant 0 : i32
    return %c0_i32, %c0_i32_0, %c0_i32_1 : i32, i32, i32
  }
  func.func @transform_14(%arg0: i32) -> (i32, i32, i32) {
    %c0_i32 = arith.constant 0 : i32
    %c0_i32_0 = arith.constant 0 : i32
    %c0_i32_1 = arith.constant 0 : i32
    %c0_i32_2 = arith.constant 0 : i32
    return %c0_i32, %c0_i32_0, %c0_i32_1 : i32, i32, i32
  }
  func.func @transform_15(%arg0: i32) -> (i32, i32, i32) {
    %c0_i32 = arith.constant 0 : i32
    %c0_i32_0 = arith.constant 0 : i32
    %c0_i32_1 = arith.constant 0 : i32
    %c0_i32_2 = arith.constant 0 : i32
    return %c0_i32, %c0_i32_0, %c0_i32_1 : i32, i32, i32
  }
  func.func @transform_16(%arg0: i32) -> (i32, i32, i32) {
    %c0_i32 = arith.constant 0 : i32
    %c0_i32_0 = arith.constant 0 : i32
    %c0_i32_1 = arith.constant 0 : i32
    %c0_i32_2 = arith.constant 0 : i32
    return %c0_i32, %c0_i32_0, %c0_i32_1 : i32, i32, i32
  }
  func.func @transform_17(%arg0: i32) -> (i32, i32, i32) {
    %c0_i32 = arith.constant 0 : i32
    %c0_i32_0 = arith.constant 0 : i32
    %c0_i32_1 = arith.constant 0 : i32
    %c0_i32_2 = arith.constant 0 : i32
    return %c0_i32, %c0_i32_0, %c0_i32_1 : i32, i32, i32
  }
  func.func @transform_18(%arg0: i32) -> (i32, i32, i32) {
    %c0_i32 = arith.constant 0 : i32
    %c0_i32_0 = arith.constant 0 : i32
    %c0_i32_1 = arith.constant 0 : i32
    %c0_i32_2 = arith.constant 0 : i32
    return %c0_i32, %c0_i32_0, %c0_i32_1 : i32, i32, i32
  }
  func.func @transform_19(%arg0: i32) -> (i32, i32, i32) {
    %c0_i32 = arith.constant 0 : i32
    %c0_i32_0 = arith.constant 0 : i32
    %c0_i32_1 = arith.constant 0 : i32
    return %arg0, %c0_i32, %c0_i32_0 : i32, i32, i32
  }
  func.func @transform_20(%arg0: i32) -> (i32, i32, i32) {
    %c0_i32 = arith.constant 0 : i32
    %c0_i32_0 = arith.constant 0 : i32
    %c0_i32_1 = arith.constant 0 : i32
    return %arg0, %c0_i32, %c0_i32_0 : i32, i32, i32
  }
  func.func @transform_21(%arg0: i32) -> (i32, i32, i32) {
    %c0_i32 = arith.constant 0 : i32
    %c0_i32_0 = arith.constant 0 : i32
    %c0_i32_1 = arith.constant 0 : i32
    return %arg0, %c0_i32, %c0_i32_0 : i32, i32, i32
  }
}

module attributes {stable_mosaic.version = 11 : i64} {
  func.func @_classifier_kernel(%arg0: memref<2x2048xf32, #tpu.memory_space<vmem>>, %arg1: memref<2048x10xf32, #tpu.memory_space<vmem>>, %arg2: memref<1x10xf32, #tpu.memory_space<vmem>>, %arg3: memref<2x10xf32, #tpu.memory_space<vmem>>) attributes {dimension_semantics = [], scalar_prefetch = 0 : i64, scratch_operands = 0 : i64, tpu.core_type = #tpu.core_type<tc>} {
    %c0 = arith.constant 0 : index
    %c0_0 = arith.constant 0 : index
    %0 = vector.load %arg0[%c0, %c0_0] : memref<2x2048xf32, #tpu.memory_space<vmem>>, vector<2x2048xf32>
    %c0_1 = arith.constant 0 : index
    %c0_2 = arith.constant 0 : index
    %1 = vector.load %arg1[%c0_1, %c0_2] : memref<2048x10xf32, #tpu.memory_space<vmem>>, vector<2048x10xf32>
    %cst = arith.constant dense<0.000000e+00> : vector<2x10xf32>
    %2 = tpu.matmul %0, %1, %cst {dimension_numbers = #tpu.dot_dimension_numbers<[1], [0], [0], [1], [0, 0, 1, 1], [], []>} : vector<2x2048xf32>, vector<2048x10xf32>, vector<2x10xf32> -> vector<2x10xf32>
    %c0_3 = arith.constant 0 : index
    %c0_4 = arith.constant 0 : index
    %3 = vector.load %arg2[%c0_3, %c0_4] : memref<1x10xf32, #tpu.memory_space<vmem>>, vector<1x10xf32>
    %4 = vector.broadcast %3 : vector<1x10xf32> to vector<2x10xf32>
    %5 = arith.addf %2, %4 : vector<2x10xf32>
    %c0_5 = arith.constant 0 : index
    %c0_6 = arith.constant 0 : index
    %6 = vector.load %arg3[%c0_5, %c0_6] : memref<2x10xf32, #tpu.memory_space<vmem>>, vector<2x10xf32>
    tpu.vector_store %arg3[%c0_5, %c0_6], %5 {strides = array<i32>} : memref<2x10xf32, #tpu.memory_space<vmem>>, vector<2x10xf32>,
    return
  }
}

</mosaic_0001>

<llo_original>
// kernel: joiner_forward.3
$region0: #{joiner_forward.3}
  #allocation0 [shape = 'u32[]', space=smem, size = 0x4, offset = 0x4, fixed_abs, tag = 'smem constant byte address 0x4 - core index']
  #allocation1 [shape = 'u32[144,128]{1,0:T(1,128)}', space=vmem, size = 0x12000, scoped, tag = 'internal scratch']
  %s0 = inlined_call_operand.vmem [shape: f32[2,2048], index: 0, kind: input, shape index: {}]
  %s1 = inlined_call_operand.vmem [shape: f32[2048,10], index: 1, kind: input, shape index: {}]
  %s2 = inlined_call_operand.vmem [shape: f32[1,10], index: 2, kind: input, shape index: {}]
  %s3 = inlined_call_operand.hbm [shape: f32[2,10], index: 3, kind: output, shape index: {}]
  %s4 = sld [smem:[#allocation0]]
  $region22: #{joiner_forward.3} parent=0
    _
  %s6 = ssub.s32 1, %s4
  %s7 = scalar_select 0, %s6, %s4
  $region1: #{joiner_forward.3} parent=0
    #allocation2 [shape = 'u8[1024]{0}', space=vmem, size = 0x400, scoped, tag = 'output window, operand 0, single buffered']
    #allocation3 [shape = 's32[1]{0}', space=sflag, size = 0x4, scoped, tag = 'scoped memory for joiner_forward.3']
    %8 = vsyncpa [#allocation3], 0
    // Predicated region
    $region2: #{joiner_forward.3} parent=1 // pred_check
      _
    $region3: #{joiner_forward.3} parent=1 // pred_check_branch
      %10 = sbr.rel (0) target = $region5
    $region4: #{joiner_forward.3} parent=1 // pred_region
      _
    $region5: #{joiner_forward.3} parent=1 // pred_fallthru
      _
    // Predicated region
    $region6: #{joiner_forward.3} parent=1 // pred_check
      _
    $region7: #{joiner_forward.3} parent=1 // pred_check_branch
      %12 = sbr.rel (0) target = $region9
    $region8: #{joiner_forward.3} parent=1 // pred_region
      _
    $region9: #{joiner_forward.3} parent=1 // pred_fallthru
      _
    // Predicated region
    $region10: #{joiner_forward.3} parent=1 // pred_check
      _
    $region11: #{joiner_forward.3} parent=1 // pred_check_branch
      %14 = sbr.rel (0) target = $region13
    $region12: #{joiner_forward.3} parent=1 // pred_region
      _
    $region13: #{joiner_forward.3} parent=1 // pred_fallthru
      _
    %v15 = vld [vmem:[%s0] sm:$0xff]
    %v16 = vld [vmem:[%s0 + $0x8] sm:$0xff]
    %v17 = vld [vmem:[%s0 + $0x10] sm:$0xff]
    %v18 = vld [vmem:[%s0 + $0x18] sm:$0xff]
    %v19 = vld [vmem:[%s1] sm:$0xff]
    %v20 = vld [vmem:[%s1 + $0x8] sm:$0xff]
    %v21 = vld [vmem:[%s1 + $0x10] sm:$0xff]
    %v22 = vld [vmem:[%s1 + $0x18] sm:$0xff]
    %v23 = vld [vmem:[%s1 + $0x20] sm:$0xff]
    %v24 = vld [vmem:[%s1 + $0x28] sm:$0xff]
    %v25 = vld [vmem:[%s1 + $0x30] sm:$0xff]
    %v26 = vld [vmem:[%s1 + $0x38] sm:$0xff]
    %v27 = vld [vmem:[%s1 + $0x40] sm:$0xff]
    %v28 = vld [vmem:[%s1 + $0x48] sm:$0xff]
    %v29 = vld [vmem:[%s1 + $0x50] sm:$0xff]
    %v30 = vld [vmem:[%s1 + $0x58] sm:$0xff]
    %v31 = vld [vmem:[%s1 + $0x60] sm:$0xff]
    %v32 = vld [vmem:[%s1 + $0x68] sm:$0xff]
    %v33 = vld [vmem:[%s1 + $0x70] sm:$0xff]
    %v34 = vld [vmem:[%s1 + $0x78] sm:$0xff]
    %v35 = vld [vmem:[%s1 + $0x80] sm:$0xff]
    %v36 = vld [vmem:[%s1 + $0x88] sm:$0xff]
    %v37 = vld [vmem:[%s1 + $0x90] sm:$0xff]
    %v38 = vld [vmem:[%s1 + $0x98] sm:$0xff]
    %v39 = vld [vmem:[%s1 + $0xa0] sm:$0xff]
    %v40 = vld [vmem:[%s1 + $0xa8] sm:$0xff]
    %v41 = vld [vmem:[%s1 + $0xb0] sm:$0xff]
    %v42 = vld [vmem:[%s1 + $0xb8] sm:$0xff]
    %v43 = vld [vmem:[%s1 + $0xc0] sm:$0xff]
    %v44 = vld [vmem:[%s1 + $0xc8] sm:$0xff]
    %v45 = vld [vmem:[%s1 + $0xd0] sm:$0xff]
    %v46 = vld [vmem:[%s1 + $0xd8] sm:$0xff]
    %v47 = vld [vmem:[%s1 + $0xe0] sm:$0xff]
    %v48 = vld [vmem:[%s1 + $0xe8] sm:$0xff]
    %v49 = vld [vmem:[%s1 + $0xf0] sm:$0xff]
    %v50 = vld [vmem:[%s1 + $0xf8] sm:$0xff]
    %v51 = vld [vmem:[%s1 + $0x100] sm:$0xff]
    %v52 = vld [vmem:[%s1 + $0x108] sm:$0xff]
    %v53 = vld [vmem:[%s1 + $0x110] sm:$0xff]
    %v54 = vld [vmem:[%s1 + $0x118] sm:$0xff]
    %v55 = vld [vmem:[%s1 + $0x120] sm:$0xff]
    %v56 = vld [vmem:[%s1 + $0x128] sm:$0xff]
    %v57 = vld [vmem:[%s1 + $0x130] sm:$0xff]
    %v58 = vld [vmem:[%s1 + $0x138] sm:$0xff]
    %v59 = vld [vmem:[%s1 + $0x140] sm:$0xff]
    %v60 = vld [vmem:[%s1 + $0x148] sm:$0xff]
    %v61 = vld [vmem:[%s1 + $0x150] sm:$0xff]
    %v62 = vld [vmem:[%s1 + $0x158] sm:$0xff]
    %v63 = vld [vmem:[%s1 + $0x160] sm:$0xff]
    %v64 = vld [vmem:[%s1 + $0x168] sm:$0xff]
    %v65 = vld [vmem:[%s1 + $0x170] sm:$0xff]
    %v66 = vld [vmem:[%s1 + $0x178] sm:$0xff]
    %v67 = vld [vmem:[%s1 + $0x180] sm:$0xff]
    %v68 = vld [vmem:[%s1 + $0x188] sm:$0xff]
    %v69 = vld [vmem:[%s1 + $0x190] sm:$0xff]
    %v70 = vld [vmem:[%s1 + $0x198] sm:$0xff]
    %v71 = vld [vmem:[%s1 + $0x1a0] sm:$0xff]
    %v72 = vld [vmem:[%s1 + $0x1a8] sm:$0xff]
    %v73 = vld [vmem:[%s1 + $0x1b0] sm:$0xff]
    %v74 = vld [vmem:[%s1 + $0x1b8] sm:$0xff]
    %v75 = vld [vmem:[%s1 + $0x1c0] sm:$0xff]
    %v76 = vld [vmem:[%s1 + $0x1c8] sm:$0xff]
    %v77 = vld [vmem:[%s1 + $0x1d0] sm:$0xff]
    %v78 = vld [vmem:[%s1 + $0x1d8] sm:$0xff]
    %v79 = vld [vmem:[%s1 + $0x1e0] sm:$0xff]
    %v80 = vld [vmem:[%s1 + $0x1e8] sm:$0xff]
    %v81 = vld [vmem:[%s1 + $0x1f0] sm:$0xff]
    %v82 = vld [vmem:[%s1 + $0x1f8] sm:$0xff]
    %v83 = vld [vmem:[%s1 + $0x200] sm:$0xff]
    %v84 = vld [vmem:[%s1 + $0x208] sm:$0xff]
    %v85 = vld [vmem:[%s1 + $0x210] sm:$0xff]
    %v86 = vld [vmem:[%s1 + $0x218] sm:$0xff]
    %v87 = vld [vmem:[%s1 + $0x220] sm:$0xff]
    %v88 = vld [vmem:[%s1 + $0x228] sm:$0xff]
    %v89 = vld [vmem:[%s1 + $0x230] sm:$0xff]
    %v90 = vld [vmem:[%s1 + $0x238] sm:$0xff]
    %v91 = vld [vmem:[%s1 + $0x240] sm:$0xff]
    %v92 = vld [vmem:[%s1 + $0x248] sm:$0xff]
    %v93 = vld [vmem:[%s1 + $0x250] sm:$0xff]
    %v94 = vld [vmem:[%s1 + $0x258] sm:$0xff]
    %v95 = vld [vmem:[%s1 + $0x260] sm:$0xff]
    %v96 = vld [vmem:[%s1 + $0x268] sm:$0xff]
    %v97 = vld [vmem:[%s1 + $0x270] sm:$0xff]
    %v98 = vld [vmem:[%s1 + $0x278] sm:$0xff]
    %v99 = vld [vmem:[%s1 + $0x280] sm:$0xff]
    %v100 = vld [vmem:[%s1 + $0x288] sm:$0xff]
    %v101 = vld [vmem:[%s1 + $0x290] sm:$0xff]
    %v102 = vld [vmem:[%s1 + $0x298] sm:$0xff]
    %v103 = vld [vmem:[%s1 + $0x2a0] sm:$0xff]
    %v104 = vld [vmem:[%s1 + $0x2a8] sm:$0xff]
    %v105 = vld [vmem:[%s1 + $0x2b0] sm:$0xff]
    %v106 = vld [vmem:[%s1 + $0x2b8] sm:$0xff]
    %v107 = vld [vmem:[%s1 + $0x2c0] sm:$0xff]
    %v108 = vld [vmem:[%s1 + $0x2c8] sm:$0xff]
    %v109 = vld [vmem:[%s1 + $0x2d0] sm:$0xff]
    %v110 = vld [vmem:[%s1 + $0x2d8] sm:$0xff]
    %v111 = vld [vmem:[%s1 + $0x2e0] sm:$0xff]
    %v112 = vld [vmem:[%s1 + $0x2e8] sm:$0xff]
    %v113 = vld [vmem:[%s1 + $0x2f0] sm:$0xff]
    %v114 = vld [vmem:[%s1 + $0x2f8] sm:$0xff]
    %v115 = vld [vmem:[%s1 + $0x300] sm:$0xff]
    %v116 = vld [vmem:[%s1 + $0x308] sm:$0xff]
    %v117 = vld [vmem:[%s1 + $0x310] sm:$0xff]
    %v118 = vld [vmem:[%s1 + $0x318] sm:$0xff]
    %v119 = vld [vmem:[%s1 + $0x320] sm:$0xff]
    %v120 = vld [vmem:[%s1 + $0x328] sm:$0xff]
    %v121 = vld [vmem:[%s1 + $0x330] sm:$0xff]
    %v122 = vld [vmem:[%s1 + $0x338] sm:$0xff]
    %v123 = vld [vmem:[%s1 + $0x340] sm:$0xff]
    %v124 = vld [vmem:[%s1 + $0x348] sm:$0xff]
    %v125 = vld [vmem:[%s1 + $0x350] sm:$0xff]
    %v126 = vld [vmem:[%s1 + $0x358] sm:$0xff]
    %v127 = vld [vmem:[%s1 + $0x360] sm:$0xff]
    %v128 = vld [vmem:[%s1 + $0x368] sm:$0xff]
    %v129 = vld [vmem:[%s1 + $0x370] sm:$0xff]
    %v130 = vld [vmem:[%s1 + $0x378] sm:$0xff]
    %v131 = vld [vmem:[%s1 + $0x380] sm:$0xff]
    %v132 = vld [vmem:[%s1 + $0x388] sm:$0xff]
    %v133 = vld [vmem:[%s1 + $0x390] sm:$0xff]
    %v134 = vld [vmem:[%s1 + $0x398] sm:$0xff]
    %v135 = vld [vmem:[%s1 + $0x3a0] sm:$0xff]
    %v136 = vld [vmem:[%s1 + $0x3a8] sm:$0xff]
    %v137 = vld [vmem:[%s1 + $0x3b0] sm:$0xff]
    %v138 = vld [vmem:[%s1 + $0x3b8] sm:$0xff]
    %v139 = vld [vmem:[%s1 + $0x3c0] sm:$0xff]
    %v140 = vld [vmem:[%s1 + $0x3c8] sm:$0xff]
    %v141 = vld [vmem:[%s1 + $0x3d0] sm:$0xff]
    %v142 = vld [vmem:[%s1 + $0x3d8] sm:$0xff]
    %v143 = vld [vmem:[%s1 + $0x3e0] sm:$0xff]
    %v144 = vld [vmem:[%s1 + $0x3e8] sm:$0xff]
    %v145 = vld [vmem:[%s1 + $0x3f0] sm:$0xff]
    %v146 = vld [vmem:[%s1 + $0x3f8] sm:$0xff]
    %v147 = vld [vmem:[%s1 + $0x400] sm:$0xff]
    %v148 = vld [vmem:[%s1 + $0x408] sm:$0xff]
    %v149 = vld [vmem:[%s1 + $0x410] sm:$0xff]
    %v150 = vld [vmem:[%s1 + $0x418] sm:$0xff]
    %v151 = vld [vmem:[%s1 + $0x420] sm:$0xff]
    %v152 = vld [vmem:[%s1 + $0x428] sm:$0xff]
    %v153 = vld [vmem:[%s1 + $0x430] sm:$0xff]
    %v154 = vld [vmem:[%s1 + $0x438] sm:$0xff]
    %v155 = vld [vmem:[%s1 + $0x440] sm:$0xff]
    %v156 = vld [vmem:[%s1 + $0x448] sm:$0xff]
    %v157 = vld [vmem:[%s1 + $0x450] sm:$0xff]
    %v158 = vld [vmem:[%s1 + $0x458] sm:$0xff]
    %v159 = vld [vmem:[%s1 + $0x460] sm:$0xff]
    %v160 = vld [vmem:[%s1 + $0x468] sm:$0xff]
    %v161 = vld [vmem:[%s1 + $0x470] sm:$0xff]
    %v162 = vld [vmem:[%s1 + $0x478] sm:$0xff]
    %v163 = vld [vmem:[%s1 + $0x480] sm:$0xff]
    %v164 = vld [vmem:[%s1 + $0x488] sm:$0xff]
    %v165 = vld [vmem:[%s1 + $0x490] sm:$0xff]
    %v166 = vld [vmem:[%s1 + $0x498] sm:$0xff]
    %v167 = vld [vmem:[%s1 + $0x4a0] sm:$0xff]
    %v168 = vld [vmem:[%s1 + $0x4a8] sm:$0xff]
    %v169 = vld [vmem:[%s1 + $0x4b0] sm:$0xff]
    %v170 = vld [vmem:[%s1 + $0x4b8] sm:$0xff]
    %v171 = vld [vmem:[%s1 + $0x4c0] sm:$0xff]
    %v172 = vld [vmem:[%s1 + $0x4c8] sm:$0xff]
    %v173 = vld [vmem:[%s1 + $0x4d0] sm:$0xff]
    %v174 = vld [vmem:[%s1 + $0x4d8] sm:$0xff]
    %v175 = vld [vmem:[%s1 + $0x4e0] sm:$0xff]
    %v176 = vld [vmem:[%s1 + $0x4e8] sm:$0xff]
    %v177 = vld [vmem:[%s1 + $0x4f0] sm:$0xff]
    %v178 = vld [vmem:[%s1 + $0x4f8] sm:$0xff]
    %v179 = vld [vmem:[%s1 + $0x500] sm:$0xff]
    %v180 = vld [vmem:[%s1 + $0x508] sm:$0xff]
    %v181 = vld [vmem:[%s1 + $0x510] sm:$0xff]
    %v182 = vld [vmem:[%s1 + $0x518] sm:$0xff]
    %v183 = vld [vmem:[%s1 + $0x520] sm:$0xff]
    %v184 = vld [vmem:[%s1 + $0x528] sm:$0xff]
    %v185 = vld [vmem:[%s1 + $0x530] sm:$0xff]
    %v186 = vld [vmem:[%s1 + $0x538] sm:$0xff]
    %v187 = vld [vmem:[%s1 + $0x540] sm:$0xff]
    %v188 = vld [vmem:[%s1 + $0x548] sm:$0xff]
    %v189 = vld [vmem:[%s1 + $0x550] sm:$0xff]
    %v190 = vld [vmem:[%s1 + $0x558] sm:$0xff]
    %v191 = vld [vmem:[%s1 + $0x560] sm:$0xff]
    %v192 = vld [vmem:[%s1 + $0x568] sm:$0xff]
    %v193 = vld [vmem:[%s1 + $0x570] sm:$0xff]
    %v194 = vld [vmem:[%s1 + $0x578] sm:$0xff]
    %v195 = vld [vmem:[%s1 + $0x580] sm:$0xff]
    %v196 = vld [vmem:[%s1 + $0x588] sm:$0xff]
    %v197 = vld [vmem:[%s1 + $0x590] sm:$0xff]
    %v198 = vld [vmem:[%s1 + $0x598] sm:$0xff]
    %v199 = vld [vmem:[%s1 + $0x5a0] sm:$0xff]
    %v200 = vld [vmem:[%s1 + $0x5a8] sm:$0xff]
    %v201 = vld [vmem:[%s1 + $0x5b0] sm:$0xff]
    %v202 = vld [vmem:[%s1 + $0x5b8] sm:$0xff]
    %v203 = vld [vmem:[%s1 + $0x5c0] sm:$0xff]
    %v204 = vld [vmem:[%s1 + $0x5c8] sm:$0xff]
    %v205 = vld [vmem:[%s1 + $0x5d0] sm:$0xff]
    %v206 = vld [vmem:[%s1 + $0x5d8] sm:$0xff]
    %v207 = vld [vmem:[%s1 + $0x5e0] sm:$0xff]
    %v208 = vld [vmem:[%s1 + $0x5e8] sm:$0xff]
    %v209 = vld [vmem:[%s1 + $0x5f0] sm:$0xff]
    %v210 = vld [vmem:[%s1 + $0x5f8] sm:$0xff]
    %v211 = vld [vmem:[%s1 + $0x600] sm:$0xff]
    %v212 = vld [vmem:[%s1 + $0x608] sm:$0xff]
    %v213 = vld [vmem:[%s1 + $0x610] sm:$0xff]
    %v214 = vld [vmem:[%s1 + $0x618] sm:$0xff]
    %v215 = vld [vmem:[%s1 + $0x620] sm:$0xff]
    %v216 = vld [vmem:[%s1 + $0x628] sm:$0xff]
    %v217 = vld [vmem:[%s1 + $0x630] sm:$0xff]
    %v218 = vld [vmem:[%s1 + $0x638] sm:$0xff]
    %v219 = vld [vmem:[%s1 + $0x640] sm:$0xff]
    %v220 = vld [vmem:[%s1 + $0x648] sm:$0xff]
    %v221 = vld [vmem:[%s1 + $0x650] sm:$0xff]
    %v222 = vld [vmem:[%s1 + $0x658] sm:$0xff]
    %v223 = vld [vmem:[%s1 + $0x660] sm:$0xff]
    %v224 = vld [vmem:[%s1 + $0x668] sm:$0xff]
    %v225 = vld [vmem:[%s1 + $0x670] sm:$0xff]
    %v226 = vld [vmem:[%s1 + $0x678] sm:$0xff]
    %v227 = vld [vmem:[%s1 + $0x680] sm:$0xff]
    %v228 = vld [vmem:[%s1 + $0x688] sm:$0xff]
    %v229 = vld [vmem:[%s1 + $0x690] sm:$0xff]
    %v230 = vld [vmem:[%s1 + $0x698] sm:$0xff]
    %v231 = vld [vmem:[%s1 + $0x6a0] sm:$0xff]
    %v232 = vld [vmem:[%s1 + $0x6a8] sm:$0xff]
    %v233 = vld [vmem:[%s1 + $0x6b0] sm:$0xff]
    %v234 = vld [vmem:[%s1 + $0x6b8] sm:$0xff]
    %v235 = vld [vmem:[%s1 + $0x6c0] sm:$0xff]
    %v236 = vld [vmem:[%s1 + $0x6c8] sm:$0xff]
    %v237 = vld [vmem:[%s1 + $0x6d0] sm:$0xff]
    %v238 = vld [vmem:[%s1 + $0x6d8] sm:$0xff]
    %v239 = vld [vmem:[%s1 + $0x6e0] sm:$0xff]
    %v240 = vld [vmem:[%s1 + $0x6e8] sm:$0xff]
    %v241 = vld [vmem:[%s1 + $0x6f0] sm:$0xff]
    %v242 = vld [vmem:[%s1 + $0x6f8] sm:$0xff]
    %v243 = vld [vmem:[%s1 + $0x700] sm:$0xff]
    %v244 = vld [vmem:[%s1 + $0x708] sm:$0xff]
    %v245 = vld [vmem:[%s1 + $0x710] sm:$0xff]
    %v246 = vld [vmem:[%s1 + $0x718] sm:$0xff]
    %v247 = vld [vmem:[%s1 + $0x720] sm:$0xff]
    %v248 = vld [vmem:[%s1 + $0x728] sm:$0xff]
    %v249 = vld [vmem:[%s1 + $0x730] sm:$0xff]
    %v250 = vld [vmem:[%s1 + $0x738] sm:$0xff]
    %v251 = vld [vmem:[%s1 + $0x740] sm:$0xff]
    %v252 = vld [vmem:[%s1 + $0x748] sm:$0xff]
    %v253 = vld [vmem:[%s1 + $0x750] sm:$0xff]
    %v254 = vld [vmem:[%s1 + $0x758] sm:$0xff]
    %v255 = vld [vmem:[%s1 + $0x760] sm:$0xff]
    %v256 = vld [vmem:[%s1 + $0x768] sm:$0xff]
    %v257 = vld [vmem:[%s1 + $0x770] sm:$0xff]
    %v258 = vld [vmem:[%s1 + $0x778] sm:$0xff]
    %v259 = vld [vmem:[%s1 + $0x780] sm:$0xff]
    %v260 = vld [vmem:[%s1 + $0x788] sm:$0xff]
    %v261 = vld [vmem:[%s1 + $0x790] sm:$0xff]
    %v262 = vld [vmem:[%s1 + $0x798] sm:$0xff]
    %v263 = vld [vmem:[%s1 + $0x7a0] sm:$0xff]
    %v264 = vld [vmem:[%s1 + $0x7a8] sm:$0xff]
    %v265 = vld [vmem:[%s1 + $0x7b0] sm:$0xff]
    %v266 = vld [vmem:[%s1 + $0x7b8] sm:$0xff]
    %v267 = vld [vmem:[%s1 + $0x7c0] sm:$0xff]
    %v268 = vld [vmem:[%s1 + $0x7c8] sm:$0xff]
    %v269 = vld [vmem:[%s1 + $0x7d0] sm:$0xff]
    %v270 = vld [vmem:[%s1 + $0x7d8] sm:$0xff]
    %v271 = vld [vmem:[%s1 + $0x7e0] sm:$0xff]
    %v272 = vld [vmem:[%s1 + $0x7e8] sm:$0xff]
    %v273 = vld [vmem:[%s1 + $0x7f0] sm:$0xff]
    %v274 = vld [vmem:[%s1 + $0x7f8] sm:$0xff]
    %v275 = vld [vmem:[%s2] sm:$0x1]
    %v277 = vlaneseq
    %v278 = vshrl.u32 %v277, 7
    %v279 = vsub.s32 0, %v278
    %v280 = vrot.slane %v275, %v279
    %v286 = vcombine.high %v15, %v15
    %v288 = vunpack.c.l.s4 1983009808
    %v289 = vunpack.c.0.s8 %v288
    %v290 = vlaneseq
    %v291 = vshrl.u32 %v290, 7
    %v292 = vsub.s32 %v289, %v291
    %v293 = vrot.slane %v15, %v292
    %v295 = vunpack.c.l.s4 1983009808
    %v296 = vunpack.c.0.s8 %v295
    %v297 = vlaneseq
    %v298 = vshrl.u32 %v297, 7
    %v299 = vsub.s32 %v296, %v298
    %v300 = vrot.slane %v286, %v299
    %v301 = vcombine.high %v293, %v293
    %v302 = vcombine.high %v300, %v300
    %v303 = vcombine.high %v16, %v16
    %v305 = vunpack.c.l.s4 1983009808
    %v306 = vunpack.c.0.s8 %v305
    %v307 = vlaneseq
    %v308 = vshrl.u32 %v307, 7
    %v309 = vsub.s32 %v306, %v308
    %v310 = vrot.slane %v16, %v309
    %v312 = vunpack.c.l.s4 1983009808
    %v313 = vunpack.c.0.s8 %v312
    %v314 = vlaneseq
    %v315 = vshrl.u32 %v314, 7
    %v316 = vsub.s32 %v313, %v315
    %v317 = vrot.slane %v303, %v316
    %v318 = vcombine.high %v310, %v310
    %v319 = vcombine.high %v317, %v317
    %v320 = vcombine.high %v17, %v17
    %v322 = vunpack.c.l.s4 1983009808
    %v323 = vunpack.c.0.s8 %v322
    %v324 = vlaneseq
    %v325 = vshrl.u32 %v324, 7
    %v326 = vsub.s32 %v323, %v325
    %v327 = vrot.slane %v17, %v326
    %v329 = vunpack.c.l.s4 1983009808
    %v330 = vunpack.c.0.s8 %v329
    %v331 = vlaneseq
    %v332 = vshrl.u32 %v331, 7
    %v333 = vsub.s32 %v330, %v332
    %v334 = vrot.slane %v320, %v333
    %v335 = vcombine.high %v327, %v327
    %v336 = vcombine.high %v334, %v334
    %v337 = vcombine.high %v18, %v18
    %v339 = vunpack.c.l.s4 1983009808
    %v340 = vunpack.c.0.s8 %v339
    %v341 = vlaneseq
    %v342 = vshrl.u32 %v341, 7
    %v343 = vsub.s32 %v340, %v342
    %v344 = vrot.slane %v18, %v343
    %v346 = vunpack.c.l.s4 1983009808
    %v347 = vunpack.c.0.s8 %v346
    %v348 = vlaneseq
    %v349 = vshrl.u32 %v348, 7
    %v350 = vsub.s32 %v347, %v349
    %v351 = vrot.slane %v337, %v350
    %v352 = vcombine.high %v344, %v344
    %v353 = vcombine.high %v351, %v351
    %370 = vmatprep.subr.mxu0 0.0
    %371 = vmatpush1.msra.mxu0 %v19
    %372 = vmatprep.subr.mxu0 0.0
    %373 = vmatpush1.msra.mxu0 %v20
    %374 = vmatprep.subr.mxu0 0.0
    %375 = vmatpush1.msra.mxu0 %v21
    %376 = vmatprep.subr.mxu0 0.0
    %377 = vmatpush1.msra.mxu0 %v22
    %378 = vmatprep.subr.mxu0 0.0
    %379 = vmatpush1.msra.mxu0 %v23
    %380 = vmatprep.subr.mxu0 0.0
    %381 = vmatpush1.msra.mxu0 %v24
    %382 = vmatprep.subr.mxu0 0.0
    %383 = vmatpush1.msra.mxu0 %v25
    %384 = vmatprep.subr.mxu0 0.0
    %385 = vmatpush1.msra.mxu0 %v26
    %386 = vmatprep.subr.mxu0 0.0
    %387 = vmatpush1.msra.mxu0 %v27
    %388 = vmatprep.subr.mxu0 0.0
    %389 = vmatpush1.msra.mxu0 %v28
    %390 = vmatprep.subr.mxu0 0.0
    %391 = vmatpush1.msra.mxu0 %v29
    %392 = vmatprep.subr.mxu0 0.0
    %393 = vmatpush1.msra.mxu0 %v30
    %394 = vmatprep.subr.mxu0 0.0
    %395 = vmatpush1.msra.mxu0 %v31
    %396 = vmatprep.subr.mxu0 0.0
    %397 = vmatpush1.msra.mxu0 %v32
    %398 = vmatprep.subr.mxu0 0.0
    %399 = vmatpush1.msra.mxu0 %v33
    %400 = vmatprep.subr.mxu0 0.0
    %401 = vmatpush1.msra.mxu0 %v34
    %402 = vmatprep.subr.mxu0 0.0
    %403 = vmatpush1.msra.mxu0 %v35
    %404 = vmatprep.subr.mxu0 0.0
    %405 = vmatpush1.msra.mxu0 %v36
    %406 = vmatprep.subr.mxu0 0.0
    %407 = vmatpush1.msra.mxu0 %v37
    %408 = vmatprep.subr.mxu0 0.0
    %409 = vmatpush1.msra.mxu0 %v38
    %410 = vmatprep.subr.mxu0 0.0
    %411 = vmatpush1.msra.mxu0 %v39
    %412 = vmatprep.subr.mxu0 0.0
    %413 = vmatpush1.msra.mxu0 %v40
    %414 = vmatprep.subr.mxu0 0.0
    %415 = vmatpush1.msra.mxu0 %v41
    %416 = vmatprep.subr.mxu0 0.0
    %417 = vmatpush1.msra.mxu0 %v42
    %418 = vmatprep.subr.mxu0 0.0
    %419 = vmatpush1.msra.mxu0 %v43
    %420 = vmatprep.subr.mxu0 0.0
    %421 = vmatpush1.msra.mxu0 %v44
    %422 = vmatprep.subr.mxu0 0.0
    %423 = vmatpush1.msra.mxu0 %v45
    %424 = vmatprep.subr.mxu0 0.0
    %425 = vmatpush1.msra.mxu0 %v46
    %426 = vmatprep.subr.mxu0 0.0
    %427 = vmatpush1.msra.mxu0 %v47
    %428 = vmatprep.subr.mxu0 0.0
    %429 = vmatpush1.msra.mxu0 %v48
    %430 = vmatprep.subr.mxu0 0.0
    %431 = vmatpush1.msra.mxu0 %v49
    %432 = vmatprep.subr.mxu0 0.0
    %433 = vmatpush1.msra.mxu0 %v50
    %434 = vmatprep.mubr.f32.mxu0 %v301
    %435 = vmatmul.mubr.f32.gmra.mrb[0].mxu0 %v293
    %v436 = vpop.f32.mrb[0].mxu0
    %v437 = vadd.f32 %v280, %v436
    %v438 = vpop.f32.mrb[0].mxu0
    %439 = vdwg.mxu0
    %440 = vmatprep.subr.mxu0 0.0
    %441 = vmatpush1.msra.mxu0 %v51
    %442 = vmatprep.subr.mxu0 0.0
    %443 = vmatpush1.msra.mxu0 %v52
    %444 = vmatprep.subr.mxu0 0.0
    %445 = vmatpush1.msra.mxu0 %v53
    %446 = vmatprep.subr.mxu0 0.0
    %447 = vmatpush1.msra.mxu0 %v54
    %448 = vmatprep.subr.mxu0 0.0
    %449 = vmatpush1.msra.mxu0 %v55
    %450 = vmatprep.subr.mxu0 0.0
    %451 = vmatpush1.msra.mxu0 %v56
    %452 = vmatprep.subr.mxu0 0.0
    %453 = vmatpush1.msra.mxu0 %v57
    %454 = vmatprep.subr.mxu0 0.0
    %455 = vmatpush1.msra.mxu0 %v58
    %456 = vmatprep.subr.mxu0 0.0
    %457 = vmatpush1.msra.mxu0 %v59
    %458 = vmatprep.subr.mxu0 0.0
    %459 = vmatpush1.msra.mxu0 %v60
    %460 = vmatprep.subr.mxu0 0.0
    %461 = vmatpush1.msra.mxu0 %v61
    %462 = vmatprep.subr.mxu0 0.0
    %463 = vmatpush1.msra.mxu0 %v62
    %464 = vmatprep.subr.mxu0 0.0
    %465 = vmatpush1.msra.mxu0 %v63
    %466 = vmatprep.subr.mxu0 0.0
    %467 = vmatpush1.msra.mxu0 %v64
    %468 = vmatprep.subr.mxu0 0.0
    %469 = vmatpush1.msra.mxu0 %v65
    %470 = vmatprep.subr.mxu0 0.0
    %471 = vmatpush1.msra.mxu0 %v66
    %472 = vmatprep.subr.mxu0 0.0
    %473 = vmatpush1.msra.mxu0 %v67
    %474 = vmatprep.subr.mxu0 0.0
    %475 = vmatpush1.msra.mxu0 %v68
    %476 = vmatprep.subr.mxu0 0.0
    %477 = vmatpush1.msra.mxu0 %v69
    %478 = vmatprep.subr.mxu0 0.0
    %479 = vmatpush1.msra.mxu0 %v70
    %480 = vmatprep.subr.mxu0 0.0
    %481 = vmatpush1.msra.mxu0 %v71
    %482 = vmatprep.subr.mxu0 0.0
    %483 = vmatpush1.msra.mxu0 %v72
    %484 = vmatprep.subr.mxu0 0.0
    %485 = vmatpush1.msra.mxu0 %v73
    %486 = vmatprep.subr.mxu0 0.0
    %487 = vmatpush1.msra.mxu0 %v74
    %488 = vmatprep.subr.mxu0 0.0
    %489 = vmatpush1.msra.mxu0 %v75
    %490 = vmatprep.subr.mxu0 0.0
    %491 = vmatpush1.msra.mxu0 %v76
    %492 = vmatprep.subr.mxu0 0.0
    %493 = vmatpush1.msra.mxu0 %v77
    %494 = vmatprep.subr.mxu0 0.0
    %495 = vmatpush1.msra.mxu0 %v78
    %496 = vmatprep.subr.mxu0 0.0
    %497 = vmatpush1.msra.mxu0 %v79
    %498 = vmatprep.subr.mxu0 0.0
    %499 = vmatpush1.msra.mxu0 %v80
    %500 = vmatprep.subr.mxu0 0.0
    %501 = vmatpush1.msra.mxu0 %v81
    %502 = vmatprep.subr.mxu0 0.0
    %503 = vmatpush1.msra.mxu0 %v82
    %504 = vmatprep.mubr.f32.mxu0 %v302
    %505 = vmatmul.mubr.f32.gmra.mrb[0].mxu0 %v300
    %v506 = vpop.f32.mrb[0].mxu0
    %v507 = vadd.f32 %v437, %v506
    %v508 = vpop.f32.mrb[0].mxu0
    %509 = vdwg.mxu0
    %510 = vmatprep.subr.mxu0 0.0
    %511 = vmatpush1.msra.mxu0 %v83
    %512 = vmatprep.subr.mxu0 0.0
    %513 = vmatpush1.msra.mxu0 %v84
    %514 = vmatprep.subr.mxu0 0.0
    %515 = vmatpush1.msra.mxu0 %v85
    %516 = vmatprep.subr.mxu0 0.0
    %517 = vmatpush1.msra.mxu0 %v86
    %518 = vmatprep.subr.mxu0 0.0
    %519 = vmatpush1.msra.mxu0 %v87
    %520 = vmatprep.subr.mxu0 0.0
    %521 = vmatpush1.msra.mxu0 %v88
    %522 = vmatprep.subr.mxu0 0.0
    %523 = vmatpush1.msra.mxu0 %v89
    %524 = vmatprep.subr.mxu0 0.0
    %525 = vmatpush1.msra.mxu0 %v90
    %526 = vmatprep.subr.mxu0 0.0
    %527 = vmatpush1.msra.mxu0 %v91
    %528 = vmatprep.subr.mxu0 0.0
    %529 = vmatpush1.msra.mxu0 %v92
    %530 = vmatprep.subr.mxu0 0.0
    %531 = vmatpush1.msra.mxu0 %v93
    %532 = vmatprep.subr.mxu0 0.0
    %533 = vmatpush1.msra.mxu0 %v94
    %534 = vmatprep.subr.mxu0 0.0
    %535 = vmatpush1.msra.mxu0 %v95
    %536 = vmatprep.subr.mxu0 0.0
    %537 = vmatpush1.msra.mxu0 %v96
    %538 = vmatprep.subr.mxu0 0.0
    %539 = vmatpush1.msra.mxu0 %v97
    %540 = vmatprep.subr.mxu0 0.0
    %541 = vmatpush1.msra.mxu0 %v98
    %542 = vmatprep.subr.mxu0 0.0
    %543 = vmatpush1.msra.mxu0 %v99
    %544 = vmatprep.subr.mxu0 0.0
    %545 = vmatpush1.msra.mxu0 %v100
    %546 = vmatprep.subr.mxu0 0.0
    %547 = vmatpush1.msra.mxu0 %v101
    %548 = vmatprep.subr.mxu0 0.0
    %549 = vmatpush1.msra.mxu0 %v102
    %550 = vmatprep.subr.mxu0 0.0
    %551 = vmatpush1.msra.mxu0 %v103
    %552 = vmatprep.subr.mxu0 0.0
    %553 = vmatpush1.msra.mxu0 %v104
    %554 = vmatprep.subr.mxu0 0.0
    %555 = vmatpush1.msra.mxu0 %v105
    %556 = vmatprep.subr.mxu0 0.0
    %557 = vmatpush1.msra.mxu0 %v106
    %558 = vmatprep.subr.mxu0 0.0
    %559 = vmatpush1.msra.mxu0 %v107
    %560 = vmatprep.subr.mxu0 0.0
    %561 = vmatpush1.msra.mxu0 %v108
    %562 = vmatprep.subr.mxu0 0.0
    %563 = vmatpush1.msra.mxu0 %v109
    %564 = vmatprep.subr.mxu0 0.0
    %565 = vmatpush1.msra.mxu0 %v110
    %566 = vmatprep.subr.mxu0 0.0
    %567 = vmatpush1.msra.mxu0 %v111
    %568 = vmatprep.subr.mxu0 0.0
    %569 = vmatpush1.msra.mxu0 %v112
    %570 = vmatprep.subr.mxu0 0.0
    %571 = vmatpush1.msra.mxu0 %v113
    %572 = vmatprep.subr.mxu0 0.0
    %573 = vmatpush1.msra.mxu0 %v114
    %574 = vmatprep.mubr.f32.mxu0 %v318
    %575 = vmatmul.mubr.f32.gmra.mrb[0].mxu0 %v310
    %v576 = vpop.f32.mrb[0].mxu0
    %v577 = vadd.f32 %v507, %v576
    %v578 = vpop.f32.mrb[0].mxu0
    %579 = vdwg.mxu0
    %580 = vmatprep.subr.mxu0 0.0
    %581 = vmatpush1.msra.mxu0 %v115
    %582 = vmatprep.subr.mxu0 0.0
    %583 = vmatpush1.msra.mxu0 %v116
    %584 = vmatprep.subr.mxu0 0.0
    %585 = vmatpush1.msra.mxu0 %v117
    %586 = vmatprep.subr.mxu0 0.0
    %587 = vmatpush1.msra.mxu0 %v118
    %588 = vmatprep.subr.mxu0 0.0
    %589 = vmatpush1.msra.mxu0 %v119
    %590 = vmatprep.subr.mxu0 0.0
    %591 = vmatpush1.msra.mxu0 %v120
    %592 = vmatprep.subr.mxu0 0.0
    %593 = vmatpush1.msra.mxu0 %v121
    %594 = vmatprep.subr.mxu0 0.0
    %595 = vmatpush1.msra.mxu0 %v122
    %596 = vmatprep.subr.mxu0 0.0
    %597 = vmatpush1.msra.mxu0 %v123
    %598 = vmatprep.subr.mxu0 0.0
    %599 = vmatpush1.msra.mxu0 %v124
    %600 = vmatprep.subr.mxu0 0.0
    %601 = vmatpush1.msra.mxu0 %v125
    %602 = vmatprep.subr.mxu0 0.0
    %603 = vmatpush1.msra.mxu0 %v126
    %604 = vmatprep.subr.mxu0 0.0
    %605 = vmatpush1.msra.mxu0 %v127
    %606 = vmatprep.subr.mxu0 0.0
    %607 = vmatpush1.msra.mxu0 %v128
    %608 = vmatprep.subr.mxu0 0.0
    %609 = vmatpush1.msra.mxu0 %v129
    %610 = vmatprep.subr.mxu0 0.0
    %611 = vmatpush1.msra.mxu0 %v130
    %612 = vmatprep.subr.mxu0 0.0
    %613 = vmatpush1.msra.mxu0 %v131
    %614 = vmatprep.subr.mxu0 0.0
    %615 = vmatpush1.msra.mxu0 %v132
    %616 = vmatprep.subr.mxu0 0.0
    %617 = vmatpush1.msra.mxu0 %v133
    %618 = vmatprep.subr.mxu0 0.0
    %619 = vmatpush1.msra.mxu0 %v134
    %620 = vmatprep.subr.mxu0 0.0
    %621 = vmatpush1.msra.mxu0 %v135
    %622 = vmatprep.subr.mxu0 0.0
    %623 = vmatpush1.msra.mxu0 %v136
    %624 = vmatprep.subr.mxu0 0.0
    %625 = vmatpush1.msra.mxu0 %v137
    %626 = vmatprep.subr.mxu0 0.0
    %627 = vmatpush1.msra.mxu0 %v138
    %628 = vmatprep.subr.mxu0 0.0
    %629 = vmatpush1.msra.mxu0 %v139
    %630 = vmatprep.subr.mxu0 0.0
    %631 = vmatpush1.msra.mxu0 %v140
    %632 = vmatprep.subr.mxu0 0.0
    %633 = vmatpush1.msra.mxu0 %v141
    %634 = vmatprep.subr.mxu0 0.0
    %635 = vmatpush1.msra.mxu0 %v142
    %636 = vmatprep.subr.mxu0 0.0
    %637 = vmatpush1.msra.mxu0 %v143
    %638 = vmatprep.subr.mxu0 0.0
    %639 = vmatpush1.msra.mxu0 %v144
    %640 = vmatprep.subr.mxu0 0.0
    %641 = vmatpush1.msra.mxu0 %v145
    %642 = vmatprep.subr.mxu0 0.0
    %643 = vmatpush1.msra.mxu0 %v146
    %644 = vmatprep.mubr.f32.mxu0 %v319
    %645 = vmatmul.mubr.f32.gmra.mrb[0].mxu0 %v317
    %v646 = vpop.f32.mrb[0].mxu0
    %v647 = vadd.f32 %v577, %v646
    %v648 = vpop.f32.mrb[0].mxu0
    %649 = vdwg.mxu0
    %650 = vmatprep.subr.mxu0 0.0
    %651 = vmatpush1.msra.mxu0 %v147
    %652 = vmatprep.subr.mxu0 0.0
    %653 = vmatpush1.msra.mxu0 %v148
    %654 = vmatprep.subr.mxu0 0.0
    %655 = vmatpush1.msra.mxu0 %v149
    %656 = vmatprep.subr.mxu0 0.0
    %657 = vmatpush1.msra.mxu0 %v150
    %658 = vmatprep.subr.mxu0 0.0
    %659 = vmatpush1.msra.mxu0 %v151
    %660 = vmatprep.subr.mxu0 0.0
    %661 = vmatpush1.msra.mxu0 %v152
    %662 = vmatprep.subr.mxu0 0.0
    %663 = vmatpush1.msra.mxu0 %v153
    %664 = vmatprep.subr.mxu0 0.0
    %665 = vmatpush1.msra.mxu0 %v154
    %666 = vmatprep.subr.mxu0 0.0
    %667 = vmatpush1.msra.mxu0 %v155
    %668 = vmatprep.subr.mxu0 0.0
    %669 = vmatpush1.msra.mxu0 %v156
    %670 = vmatprep.subr.mxu0 0.0
    %671 = vmatpush1.msra.mxu0 %v157
    %672 = vmatprep.subr.mxu0 0.0
    %673 = vmatpush1.msra.mxu0 %v158
    %674 = vmatprep.subr.mxu0 0.0
    %675 = vmatpush1.msra.mxu0 %v159
    %676 = vmatprep.subr.mxu0 0.0
    %677 = vmatpush1.msra.mxu0 %v160
    %678 = vmatprep.subr.mxu0 0.0
    %679 = vmatpush1.msra.mxu0 %v161
    %680 = vmatprep.subr.mxu0 0.0
    %681 = vmatpush1.msra.mxu0 %v162
    %682 = vmatprep.subr.mxu0 0.0
    %683 = vmatpush1.msra.mxu0 %v163
    %684 = vmatprep.subr.mxu0 0.0
    %685 = vmatpush1.msra.mxu0 %v164
    %686 = vmatprep.subr.mxu0 0.0
    %687 = vmatpush1.msra.mxu0 %v165
    %688 = vmatprep.subr.mxu0 0.0
    %689 = vmatpush1.msra.mxu0 %v166
    %690 = vmatprep.subr.mxu0 0.0
    %691 = vmatpush1.msra.mxu0 %v167
    %692 = vmatprep.subr.mxu0 0.0
    %693 = vmatpush1.msra.mxu0 %v168
    %694 = vmatprep.subr.mxu0 0.0
    %695 = vmatpush1.msra.mxu0 %v169
    %696 = vmatprep.subr.mxu0 0.0
    %697 = vmatpush1.msra.mxu0 %v170
    %698 = vmatprep.subr.mxu0 0.0
    %699 = vmatpush1.msra.mxu0 %v171
    %700 = vmatprep.subr.mxu0 0.0
    %701 = vmatpush1.msra.mxu0 %v172
    %702 = vmatprep.subr.mxu0 0.0
    %703 = vmatpush1.msra.mxu0 %v173
    %704 = vmatprep.subr.mxu0 0.0
    %705 = vmatpush1.msra.mxu0 %v174
    %706 = vmatprep.subr.mxu0 0.0
    %707 = vmatpush1.msra.mxu0 %v175
    %708 = vmatprep.subr.mxu0 0.0
    %709 = vmatpush1.msra.mxu0 %v176
    %710 = vmatprep.subr.mxu0 0.0
    %711 = vmatpush1.msra.mxu0 %v177
    %712 = vmatprep.subr.mxu0 0.0
    %713 = vmatpush1.msra.mxu0 %v178
    %714 = vmatprep.mubr.f32.mxu0 %v335
    %715 = vmatmul.mubr.f32.gmra.mrb[0].mxu0 %v327
    %v716 = vpop.f32.mrb[0].mxu0
    %v717 = vadd.f32 %v647, %v716
    %v718 = vpop.f32.mrb[0].mxu0
    %719 = vdwg.mxu0
    %720 = vmatprep.subr.mxu0 0.0
    %721 = vmatpush1.msra.mxu0 %v179
    %722 = vmatprep.subr.mxu0 0.0
    %723 = vmatpush1.msra.mxu0 %v180
    %724 = vmatprep.subr.mxu0 0.0
    %725 = vmatpush1.msra.mxu0 %v181
    %726 = vmatprep.subr.mxu0 0.0
    %727 = vmatpush1.msra.mxu0 %v182
    %728 = vmatprep.subr.mxu0 0.0
    %729 = vmatpush1.msra.mxu0 %v183
    %730 = vmatprep.subr.mxu0 0.0
    %731 = vmatpush1.msra.mxu0 %v184
    %732 = vmatprep.subr.mxu0 0.0
    %733 = vmatpush1.msra.mxu0 %v185
    %734 = vmatprep.subr.mxu0 0.0
    %735 = vmatpush1.msra.mxu0 %v186
    %736 = vmatprep.subr.mxu0 0.0
    %737 = vmatpush1.msra.mxu0 %v187
    %738 = vmatprep.subr.mxu0 0.0
    %739 = vmatpush1.msra.mxu0 %v188
    %740 = vmatprep.subr.mxu0 0.0
    %741 = vmatpush1.msra.mxu0 %v189
    %742 = vmatprep.subr.mxu0 0.0
    %743 = vmatpush1.msra.mxu0 %v190
    %744 = vmatprep.subr.mxu0 0.0
    %745 = vmatpush1.msra.mxu0 %v191
    %746 = vmatprep.subr.mxu0 0.0
    %747 = vmatpush1.msra.mxu0 %v192
    %748 = vmatprep.subr.mxu0 0.0
    %749 = vmatpush1.msra.mxu0 %v193
    %750 = vmatprep.subr.mxu0 0.0
    %751 = vmatpush1.msra.mxu0 %v194
    %752 = vmatprep.subr.mxu0 0.0
    %753 = vmatpush1.msra.mxu0 %v195
    %754 = vmatprep.subr.mxu0 0.0
    %755 = vmatpush1.msra.mxu0 %v196
    %756 = vmatprep.subr.mxu0 0.0
    %757 = vmatpush1.msra.mxu0 %v197
    %758 = vmatprep.subr.mxu0 0.0
    %759 = vmatpush1.msra.mxu0 %v198
    %760 = vmatprep.subr.mxu0 0.0
    %761 = vmatpush1.msra.mxu0 %v199
    %762 = vmatprep.subr.mxu0 0.0
    %763 = vmatpush1.msra.mxu0 %v200
    %764 = vmatprep.subr.mxu0 0.0
    %765 = vmatpush1.msra.mxu0 %v201
    %766 = vmatprep.subr.mxu0 0.0
    %767 = vmatpush1.msra.mxu0 %v202
    %768 = vmatprep.subr.mxu0 0.0
    %769 = vmatpush1.msra.mxu0 %v203
    %770 = vmatprep.subr.mxu0 0.0
    %771 = vmatpush1.msra.mxu0 %v204
    %772 = vmatprep.subr.mxu0 0.0
    %773 = vmatpush1.msra.mxu0 %v205
    %774 = vmatprep.subr.mxu0 0.0
    %775 = vmatpush1.msra.mxu0 %v206
    %776 = vmatprep.subr.mxu0 0.0
    %777 = vmatpush1.msra.mxu0 %v207
    %778 = vmatprep.subr.mxu0 0.0
    %779 = vmatpush1.msra.mxu0 %v208
    %780 = vmatprep.subr.mxu0 0.0
    %781 = vmatpush1.msra.mxu0 %v209
    %782 = vmatprep.subr.mxu0 0.0
    %783 = vmatpush1.msra.mxu0 %v210
    %784 = vmatprep.mubr.f32.mxu0 %v336
    %785 = vmatmul.mubr.f32.gmra.mrb[0].mxu0 %v334
    %v786 = vpop.f32.mrb[0].mxu0
    %v787 = vadd.f32 %v717, %v786
    %v788 = vpop.f32.mrb[0].mxu0
    %789 = vdwg.mxu0
    %790 = vmatprep.subr.mxu0 0.0
    %791 = vmatpush1.msra.mxu0 %v211
    %792 = vmatprep.subr.mxu0 0.0
    %793 = vmatpush1.msra.mxu0 %v212
    %794 = vmatprep.subr.mxu0 0.0
    %795 = vmatpush1.msra.mxu0 %v213
    %796 = vmatprep.subr.mxu0 0.0
    %797 = vmatpush1.msra.mxu0 %v214
    %798 = vmatprep.subr.mxu0 0.0
    %799 = vmatpush1.msra.mxu0 %v215
    %800 = vmatprep.subr.mxu0 0.0
    %801 = vmatpush1.msra.mxu0 %v216
    %802 = vmatprep.subr.mxu0 0.0
    %803 = vmatpush1.msra.mxu0 %v217
    %804 = vmatprep.subr.mxu0 0.0
    %805 = vmatpush1.msra.mxu0 %v218
    %806 = vmatprep.subr.mxu0 0.0
    %807 = vmatpush1.msra.mxu0 %v219
    %808 = vmatprep.subr.mxu0 0.0
    %809 = vmatpush1.msra.mxu0 %v220
    %810 = vmatprep.subr.mxu0 0.0
    %811 = vmatpush1.msra.mxu0 %v221
    %812 = vmatprep.subr.mxu0 0.0
    %813 = vmatpush1.msra.mxu0 %v222
    %814 = vmatprep.subr.mxu0 0.0
    %815 = vmatpush1.msra.mxu0 %v223
    %816 = vmatprep.subr.mxu0 0.0
    %817 = vmatpush1.msra.mxu0 %v224
    %818 = vmatprep.subr.mxu0 0.0
    %819 = vmatpush1.msra.mxu0 %v225
    %820 = vmatprep.subr.mxu0 0.0
    %821 = vmatpush1.msra.mxu0 %v226
    %822 = vmatprep.subr.mxu0 0.0
    %823 = vmatpush1.msra.mxu0 %v227
    %824 = vmatprep.subr.mxu0 0.0
    %825 = vmatpush1.msra.mxu0 %v228
    %826 = vmatprep.subr.mxu0 0.0
    %827 = vmatpush1.msra.mxu0 %v229
    %828 = vmatprep.subr.mxu0 0.0
    %829 = vmatpush1.msra.mxu0 %v230
    %830 = vmatprep.subr.mxu0 0.0
    %831 = vmatpush1.msra.mxu0 %v231
    %832 = vmatprep.subr.mxu0 0.0
    %833 = vmatpush1.msra.mxu0 %v232
    %834 = vmatprep.subr.mxu0 0.0
    %835 = vmatpush1.msra.mxu0 %v233
    %836 = vmatprep.subr.mxu0 0.0
    %837 = vmatpush1.msra.mxu0 %v234
    %838 = vmatprep.subr.mxu0 0.0
    %839 = vmatpush1.msra.mxu0 %v235
    %840 = vmatprep.subr.mxu0 0.0
    %841 = vmatpush1.msra.mxu0 %v236
    %842 = vmatprep.subr.mxu0 0.0
    %843 = vmatpush1.msra.mxu0 %v237
    %844 = vmatprep.subr.mxu0 0.0
    %845 = vmatpush1.msra.mxu0 %v238
    %846 = vmatprep.subr.mxu0 0.0
    %847 = vmatpush1.msra.mxu0 %v239
    %848 = vmatprep.subr.mxu0 0.0
    %849 = vmatpush1.msra.mxu0 %v240
    %850 = vmatprep.subr.mxu0 0.0
    %851 = vmatpush1.msra.mxu0 %v241
    %852 = vmatprep.subr.mxu0 0.0
    %853 = vmatpush1.msra.mxu0 %v242
    %854 = vmatprep.mubr.f32.mxu0 %v352
    %855 = vmatmul.mubr.f32.gmra.mrb[0].mxu0 %v344
    %v856 = vpop.f32.mrb[0].mxu0
    %v857 = vadd.f32 %v787, %v856
    %v858 = vpop.f32.mrb[0].mxu0
    %859 = vdwg.mxu0
    %860 = vmatprep.subr.mxu0 0.0
    %861 = vmatpush1.msra.mxu0 %v243
    %862 = vmatprep.subr.mxu0 0.0
    %863 = vmatpush1.msra.mxu0 %v244
    %864 = vmatprep.subr.mxu0 0.0
    %865 = vmatpush1.msra.mxu0 %v245
    %866 = vmatprep.subr.mxu0 0.0
    %867 = vmatpush1.msra.mxu0 %v246
    %868 = vmatprep.subr.mxu0 0.0
    %869 = vmatpush1.msra.mxu0 %v247
    %870 = vmatprep.subr.mxu0 0.0
    %871 = vmatpush1.msra.mxu0 %v248
    %872 = vmatprep.subr.mxu0 0.0
    %873 = vmatpush1.msra.mxu0 %v249
    %874 = vmatprep.subr.mxu0 0.0
    %875 = vmatpush1.msra.mxu0 %v250
    %876 = vmatprep.subr.mxu0 0.0
    %877 = vmatpush1.msra.mxu0 %v251
    %878 = vmatprep.subr.mxu0 0.0
    %879 = vmatpush1.msra.mxu0 %v252
    %880 = vmatprep.subr.mxu0 0.0
    %881 = vmatpush1.msra.mxu0 %v253
    %882 = vmatprep.subr.mxu0 0.0
    %883 = vmatpush1.msra.mxu0 %v254
    %884 = vmatprep.subr.mxu0 0.0
    %885 = vmatpush1.msra.mxu0 %v255
    %886 = vmatprep.subr.mxu0 0.0
    %887 = vmatpush1.msra.mxu0 %v256
    %888 = vmatprep.subr.mxu0 0.0
    %889 = vmatpush1.msra.mxu0 %v257
    %890 = vmatprep.subr.mxu0 0.0
    %891 = vmatpush1.msra.mxu0 %v258
    %892 = vmatprep.subr.mxu0 0.0
    %893 = vmatpush1.msra.mxu0 %v259
    %894 = vmatprep.subr.mxu0 0.0
    %895 = vmatpush1.msra.mxu0 %v260
    %896 = vmatprep.subr.mxu0 0.0
    %897 = vmatpush1.msra.mxu0 %v261
    %898 = vmatprep.subr.mxu0 0.0
    %899 = vmatpush1.msra.mxu0 %v262
    %900 = vmatprep.subr.mxu0 0.0
    %901 = vmatpush1.msra.mxu0 %v263
    %902 = vmatprep.subr.mxu0 0.0
    %903 = vmatpush1.msra.mxu0 %v264
    %904 = vmatprep.subr.mxu0 0.0
    %905 = vmatpush1.msra.mxu0 %v265
    %906 = vmatprep.subr.mxu0 0.0
    %907 = vmatpush1.msra.mxu0 %v266
    %908 = vmatprep.subr.mxu0 0.0
    %909 = vmatpush1.msra.mxu0 %v267
    %910 = vmatprep.subr.mxu0 0.0
    %911 = vmatpush1.msra.mxu0 %v268
    %912 = vmatprep.subr.mxu0 0.0
    %913 = vmatpush1.msra.mxu0 %v269
    %914 = vmatprep.subr.mxu0 0.0
    %915 = vmatpush1.msra.mxu0 %v270
    %916 = vmatprep.subr.mxu0 0.0
    %917 = vmatpush1.msra.mxu0 %v271
    %918 = vmatprep.subr.mxu0 0.0
    %919 = vmatpush1.msra.mxu0 %v272
    %920 = vmatprep.subr.mxu0 0.0
    %921 = vmatpush1.msra.mxu0 %v273
    %922 = vmatprep.subr.mxu0 0.0
    %923 = vmatpush1.msra.mxu0 %v274
    %924 = vmatprep.mubr.f32.mxu0 %v353
    %925 = vmatmul.mubr.f32.gmra.mrb[0].mxu0 %v351
    %v926 = vpop.f32.mrb[0].mxu0
    %v927 = vadd.f32 %v857, %v926
    %v928 = vpop.f32.mrb[0].mxu0
    %929 = vdwg.mxu0
    %vm930 = vcmask 74752
    %931 = vst.msk [vmem:[#allocation2] sm:$0x3] %vm930, %v927
    // Predicated region
    $region14: #{joiner_forward.3} parent=1 // pred_check
      _
    $region15: #{joiner_forward.3} parent=1 // pred_check_branch
      %933 = sbr.rel (0) target = $region17
    $region16: #{joiner_forward.3} parent=1 // pred_region
      %s935 = ssub.s32 32, 32
      %936 = vsyncadd [#allocation3], %s935
      %s938 = sshll.u32 [#allocation2], 4
      %s939 = int_to_ptr.vmem [resolvable:$true] %s938
      %941 = dma.vmem_to_hbm [thread:$0]  %s939, 32, %s3, [#allocation3]
    $region17: #{joiner_forward.3} parent=1 // pred_fallthru
      _
    // Predicated region
    $region18: #{joiner_forward.3} parent=1 // pred_check
      _
    $region19: #{joiner_forward.3} parent=1 // pred_check_branch
      %943 = sbr.rel (0) target = $region21
    $region20: #{joiner_forward.3} parent=1 // pred_region
      %944 = dma.done [#allocation3], 32
    $region21: #{joiner_forward.3} parent=1 // pred_fallthru
      _
    %945 = vsyncpa [#allocation3], 1

// kernel: joiner_forward.2
$region0: #{joiner_forward.2}
  #allocation0 [shape = 'u32[]', space=smem, size = 0x4, offset = 0x4, fixed_abs, tag = 'smem constant byte address 0x4 - core index']
  #allocation1 [shape = 'u32[144,128]{1,0:T(1,128)}', space=vmem, size = 0x12000, scoped, tag = 'internal scratch']
  %s0 = inlined_call_operand.vmem [shape: f32[2,64,3], index: 0, kind: input, shape index: {}]
  %s1 = inlined_call_operand.vmem [shape: f32[2,64,32], index: 1, kind: input, shape index: {}]
  %s2 = inlined_call_operand.vmem [shape: f32[2,64,64], index: 2, kind: input, shape index: {}]
  %s3 = inlined_call_operand.vmem [shape: f32[3,32], index: 3, kind: input, shape index: {}]
  %s4 = inlined_call_operand.vmem [shape: f32[1,32], index: 4, kind: input, shape index: {}]
  %s5 = inlined_call_operand.vmem [shape: f32[2,32,64], index: 5, kind: input, shape index: {}]
  %s6 = inlined_call_operand.vmem [shape: f32[2,1,64], index: 6, kind: input, shape index: {}]
  %s7 = inlined_call_operand.vmem [shape: f32[2,32,32], index: 7, kind: input, shape index: {}]
  %s8 = inlined_call_operand.vmem [shape: f32[2,1,32], index: 8, kind: input, shape index: {}]
  %s9 = inlined_call_operand.vmem [shape: f32[2,32,32], index: 9, kind: input, shape index: {}]
  %s10 = inlined_call_operand.vmem [shape: f32[2,1,32], index: 10, kind: input, shape index: {}]
  %s11 = inlined_call_operand.vmem [shape: f32[2,32,64], index: 11, kind: input, shape index: {}]
  %s12 = inlined_call_operand.vmem [shape: f32[2,1,64], index: 12, kind: input, shape index: {}]
  %s13 = inlined_call_operand.vmem [shape: f32[2,64,32], index: 13, kind: input, shape index: {}]
  %s14 = inlined_call_operand.vmem [shape: f32[2,1,32], index: 14, kind: input, shape index: {}]
  %s15 = inlined_call_operand.vmem [shape: f32[2,1,32], index: 15, kind: input, shape index: {}]
  %s16 = inlined_call_operand.vmem [shape: f32[2,1,32], index: 16, kind: input, shape index: {}]
  %s17 = inlined_call_operand.vmem [shape: f32[2,1,32], index: 17, kind: input, shape index: {}]
  %s18 = inlined_call_operand.vmem [shape: f32[2,1,32], index: 18, kind: input, shape index: {}]
  %s19 = inlined_call_operand.vmem [shape: f32[2,64,32], index: 19, kind: output, shape index: {0}]
  %s20 = inlined_call_operand.vmem [shape: f32[2,64,64], index: 20, kind: output, shape index: {1}]
  %s21 = inlined_call_operand.vmem [shape: f32[2,64,64], index: 21, kind: output, shape index: {2}]
  %22 = xla_tuple %s19, %s20, %s21
  %s23 = sld [smem:[#allocation0]]
  $region125: #{joiner_forward.2} parent=0
    _
  %s25 = ssub.s32 1, %s23
  %s26 = scalar_select 0, %s25, %s23
  loop: start=0, step=1, limit=4
  $region2: #{joiner_forward.2} parent=0 // loop_pre_header
    _
  $region3: #{joiner_forward.2} parent=0 // loop_header
    %s28 = sphi 0, %s32
    %p29 = scmp.ge.s32.totalorder %s28, 4
    %s38 = sphi 0, %s40
    %s41 = sphi 0, %s38
    %s42 = sphi 0, %s41
    %s58 = sphi 0, %s42
    %s64 = sphi 0, %s66
    %s67 = sphi 0, %s64
    %s68 = sphi 0, %s67
    %s84 = sphi 0, %s68
    %s90 = sphi 0, %s92
    %s93 = sphi 0, %s90
    %s94 = sphi 0, %s93
    %s110 = sphi 0, %s94
    %s114 = sphi 0, %s114
    %s116 = sphi 0, %s114
    %s117 = sphi 0, %s116
    %s131 = sphi 0, %s117
    %s135 = sphi 0, %s135
    %s137 = sphi 0, %s135
    %s138 = sphi 0, %s137
    %s152 = sphi 0, %s138
    %s156 = sphi 0, %s156
    %s158 = sphi 0, %s156
    %s159 = sphi 0, %s158
    %s173 = sphi 0, %s159
    %s177 = sphi 0, %s177
    %s179 = sphi 0, %s177
    %s180 = sphi 0, %s179
    %s194 = sphi 0, %s180
    %s198 = sphi 0, %s198
    %s200 = sphi 0, %s198
    %s201 = sphi 0, %s200
    %s215 = sphi 0, %s201
    %s219 = sphi 0, %s219
    %s221 = sphi 0, %s219
    %s222 = sphi 0, %s221
    %s236 = sphi 0, %s222
    %s240 = sphi 0, %s240
    %s242 = sphi 0, %s240
    %s243 = sphi 0, %s242
    %s257 = sphi 0, %s243
    %s261 = sphi 0, %s261
    %s263 = sphi 0, %s261
    %s264 = sphi 0, %s263
    %s278 = sphi 0, %s264
    %s282 = sphi 0, %s282
    %s284 = sphi 0, %s282
    %s285 = sphi 0, %s284
    %s299 = sphi 0, %s285
    %s303 = sphi 0, %s303
    %s305 = sphi 0, %s303
    %s306 = sphi 0, %s305
    %s320 = sphi 0, %s306
    %s324 = sphi 0, %s324
    %s326 = sphi 0, %s324
    %s327 = sphi 0, %s326
    %s341 = sphi 0, %s327
    %s345 = sphi 0, %s345
    %s347 = sphi 0, %s345
    %s348 = sphi 0, %s347
    %s362 = sphi 0, %s348
    %s366 = sphi 0, %s366
    %s368 = sphi 0, %s366
    %s369 = sphi 0, %s368
    %s383 = sphi 0, %s369
    %s387 = sphi 0, %s387
    %s389 = sphi 0, %s387
    %s390 = sphi 0, %s389
    %s404 = sphi 0, %s390
    %s408 = sphi 0, %s408
    %s410 = sphi 0, %s408
    %s411 = sphi 0, %s410
    %s425 = sphi 0, %s411
    %s429 = sphi 0, %s429
    %s431 = sphi 0, %s429
    %s432 = sphi 0, %s431
    %s446 = sphi 0, %s432
    %s452 = sphi 0, %s454
    %s455 = sphi 0, %s452
    %s456 = sphi 0, %s455
    %s472 = sphi 0, %s456
    %s478 = sphi 0, %s480
    %s481 = sphi 0, %s478
    %s482 = sphi 0, %s481
    %s498 = sphi 0, %s482
    %s504 = sphi 0, %s506
    %s507 = sphi 0, %s504
    %s508 = sphi 0, %s507
    %s524 = sphi 0, %s508
  $region4: #{joiner_forward.2} parent=0 // loop_header_branch
    %31 = sbr.rel (%p29) target = $region8
  $region5: #{joiner_forward.2} parent=0 // loop_body
    %s33 = ssub.s32 %s28, 1
    %s34 = ssub.s32 %s28, 2
    %s35 = sadd.s32 %s28, 1
    %s36 = ssub.s32 %s28, %s35
    %p37 = scmp.eq.s32.totalorder %s36, 0
    %s39 = sadd.s32 %s38, 1
    %s40 = scalar_select %p37, %s38, %s39
    %p43 = pneg %p37
    %p44 = scmp.eq.s32.totalorder %s28, 1
    %p45 = por %p43, %p44
    %p46 = scmp.ne.s32.totalorder %s38, %s41
    %p47 = scmp.eq.s32.totalorder %s28, 0
    %p48 = por %p46, %p47
    %p49 = scmp.ne.s32.totalorder %s38, %s41
    %p50 = scmp.eq.s32.totalorder %s33, 1
    %p51 = por %p49, %p50
    %p52 = scmp.ne.s32.totalorder %s41, %s42
    %p53 = scmp.eq.s32.totalorder %s33, 0
    %p54 = por %p52, %p53
    %p55 = scmp.ne.s32.totalorder %s41, %s42
    %p56 = scmp.eq.s32.totalorder %s34, 1
    %p57 = por %p55, %p56
    %p59 = scmp.ne.s32.totalorder %s42, %s58
    %p60 = scmp.eq.s32.totalorder %s34, 0
    %p61 = por %p59, %p60
    %s62 = ssub.s32 %s28, %s35
    %p63 = scmp.eq.s32.totalorder %s62, 0
    %s65 = sadd.s32 %s64, 1
    %s66 = scalar_select %p63, %s64, %s65
    %p69 = pneg %p63
    %p70 = scmp.eq.s32.totalorder %s28, 1
    %p71 = por %p69, %p70
    %p72 = scmp.ne.s32.totalorder %s64, %s67
    %p73 = scmp.eq.s32.totalorder %s28, 0
    %p74 = por %p72, %p73
    %p75 = scmp.ne.s32.totalorder %s64, %s67
    %p76 = scmp.eq.s32.totalorder %s33, 1
    %p77 = por %p75, %p76
    %p78 = scmp.ne.s32.totalorder %s67, %s68
    %p79 = scmp.eq.s32.totalorder %s33, 0
    %p80 = por %p78, %p79
    %p81 = scmp.ne.s32.totalorder %s67, %s68
    %p82 = scmp.eq.s32.totalorder %s34, 1
    %p83 = por %p81, %p82
    %p85 = scmp.ne.s32.totalorder %s68, %s84
    %p86 = scmp.eq.s32.totalorder %s34, 0
    %p87 = por %p85, %p86
    %s88 = ssub.s32 %s28, %s35
    %p89 = scmp.eq.s32.totalorder %s88, 0
    %s91 = sadd.s32 %s90, 1
    %s92 = scalar_select %p89, %s90, %s91
    %p95 = pneg %p89
    %p96 = scmp.eq.s32.totalorder %s28, 1
    %p97 = por %p95, %p96
    %p98 = scmp.ne.s32.totalorder %s90, %s93
    %p99 = scmp.eq.s32.totalorder %s28, 0
    %p100 = por %p98, %p99
    %p101 = scmp.ne.s32.totalorder %s90, %s93
    %p102 = scmp.eq.s32.totalorder %s33, 1
    %p103 = por %p101, %p102
    %p104 = scmp.ne.s32.totalorder %s93, %s94
    %p105 = scmp.eq.s32.totalorder %s33, 0
    %p106 = por %p104, %p105
    %p107 = scmp.ne.s32.totalorder %s93, %s94
    %p108 = scmp.eq.s32.totalorder %s34, 1
    %p109 = por %p107, %p108
    %p111 = scmp.ne.s32.totalorder %s94, %s110
    %p112 = scmp.eq.s32.totalorder %s34, 0
    %p113 = por %p111, %p112
    %s115 = sadd.s32 %s114, 1
    %p118 = scmp.eq.s32.totalorder %s28, 1
    %p119 = scmp.ne.s32.totalorder %s114, %s116
    %p120 = scmp.eq.s32.totalorder %s28, 0
    %p121 = por %p119, %p120
    %p122 = scmp.ne.s32.totalorder %s114, %s116
    %p123 = scmp.eq.s32.totalorder %s33, 1
    %p124 = por %p122, %p123
    %p125 = scmp.ne.s32.totalorder %s116, %s117
    %p126 = scmp.eq.s32.totalorder %s33, 0
    %p127 = por %p125, %p126
    %p128 = scmp.ne.s32.totalorder %s116, %s117
    %p129 = scmp.eq.s32.totalorder %s34, 1
    %p130 = por %p128, %p129
    %p132 = scmp.ne.s32.totalorder %s117, %s131
    %p133 = scmp.eq.s32.totalorder %s34, 0
    %p134 = por %p132, %p133
    %s136 = sadd.s32 %s135, 1
    %p139 = scmp.eq.s32.totalorder %s28, 1
    %p140 = scmp.ne.s32.totalorder %s135, %s137
    %p141 = scmp.eq.s32.totalorder %s28, 0
    %p142 = por %p140, %p141
    %p143 = scmp.ne.s32.totalorder %s135, %s137
    %p144 = scmp.eq.s32.totalorder %s33, 1
    %p145 = por %p143, %p144
    %p146 = scmp.ne.s32.totalorder %s137, %s138
    %p147 = scmp.eq.s32.totalorder %s33, 0
    %p148 = por %p146, %p147
    %p149 = scmp.ne.s32.totalorder %s137, %s138
    %p150 = scmp.eq.s32.totalorder %s34, 1
    %p151 = por %p149, %p150
    %p153 = scmp.ne.s32.totalorder %s138, %s152
    %p154 = scmp.eq.s32.totalorder %s34, 0
    %p155 = por %p153, %p154
    %s157 = sadd.s32 %s156, 1
    %p160 = scmp.eq.s32.totalorder %s28, 1
    %p161 = scmp.ne.s32.totalorder %s156, %s158
    %p162 = scmp.eq.s32.totalorder %s28, 0
    %p163 = por %p161, %p162
    %p164 = scmp.ne.s32.totalorder %s156, %s158
    %p165 = scmp.eq.s32.totalorder %s33, 1
    %p166 = por %p164, %p165
    %p167 = scmp.ne.s32.totalorder %s158, %s159
    %p168 = scmp.eq.s32.totalorder %s33, 0
    %p169 = por %p167, %p168
    %p170 = scmp.ne.s32.totalorder %s158, %s159
    %p171 = scmp.eq.s32.totalorder %s34, 1
    %p172 = por %p170, %p171
    %p174 = scmp.ne.s32.totalorder %s159, %s173
    %p175 = scmp.eq.s32.totalorder %s34, 0
    %p176 = por %p174, %p175
    %s178 = sadd.s32 %s177, 1
    %p181 = scmp.eq.s32.totalorder %s28, 1
    %p182 = scmp.ne.s32.totalorder %s177, %s179
    %p183 = scmp.eq.s32.totalorder %s28, 0
    %p184 = por %p182, %p183
    %p185 = scmp.ne.s32.totalorder %s177, %s179
    %p186 = scmp.eq.s32.totalorder %s33, 1
    %p187 = por %p185, %p186
    %p188 = scmp.ne.s32.totalorder %s179, %s180
    %p189 = scmp.eq.s32.totalorder %s33, 0
    %p190 = por %p188, %p189
    %p191 = scmp.ne.s32.totalorder %s179, %s180
    %p192 = scmp.eq.s32.totalorder %s34, 1
    %p193 = por %p191, %p192
    %p195 = scmp.ne.s32.totalorder %s180, %s194
    %p196 = scmp.eq.s32.totalorder %s34, 0
    %p197 = por %p195, %p196
    %s199 = sadd.s32 %s198, 1
    %p202 = scmp.eq.s32.totalorder %s28, 1
    %p203 = scmp.ne.s32.totalorder %s198, %s200
    %p204 = scmp.eq.s32.totalorder %s28, 0
    %p205 = por %p203, %p204
    %p206 = scmp.ne.s32.totalorder %s198, %s200
    %p207 = scmp.eq.s32.totalorder %s33, 1
    %p208 = por %p206, %p207
    %p209 = scmp.ne.s32.totalorder %s200, %s201
    %p210 = scmp.eq.s32.totalorder %s33, 0
    %p211 = por %p209, %p210
    %p212 = scmp.ne.s32.totalorder %s200, %s201
    %p213 = scmp.eq.s32.totalorder %s34, 1
    %p214 = por %p212, %p213
    %p216 = scmp.ne.s32.totalorder %s201, %s215
    %p217 = scmp.eq.s32.totalorder %s34, 0
    %p218 = por %p216, %p217
    %s220 = sadd.s32 %s219, 1
    %p223 = scmp.eq.s32.totalorder %s28, 1
    %p224 = scmp.ne.s32.totalorder %s219, %s221
    %p225 = scmp.eq.s32.totalorder %s28, 0
    %p226 = por %p224, %p225
    %p227 = scmp.ne.s32.totalorder %s219, %s221
    %p228 = scmp.eq.s32.totalorder %s33, 1
    %p229 = por %p227, %p228
    %p230 = scmp.ne.s32.totalorder %s221, %s222
    %p231 = scmp.eq.s32.totalorder %s33, 0
    %p232 = por %p230, %p231
    %p233 = scmp.ne.s32.totalorder %s221, %s222
    %p234 = scmp.eq.s32.totalorder %s34, 1
    %p235 = por %p233, %p234
    %p237 = scmp.ne.s32.totalorder %s222, %s236
    %p238 = scmp.eq.s32.totalorder %s34, 0
    %p239 = por %p237, %p238
    %s241 = sadd.s32 %s240, 1
    %p244 = scmp.eq.s32.totalorder %s28, 1
    %p245 = scmp.ne.s32.totalorder %s240, %s242
    %p246 = scmp.eq.s32.totalorder %s28, 0
    %p247 = por %p245, %p246
    %p248 = scmp.ne.s32.totalorder %s240, %s242
    %p249 = scmp.eq.s32.totalorder %s33, 1
    %p250 = por %p248, %p249
    %p251 = scmp.ne.s32.totalorder %s242, %s243
    %p252 = scmp.eq.s32.totalorder %s33, 0
    %p253 = por %p251, %p252
    %p254 = scmp.ne.s32.totalorder %s242, %s243
    %p255 = scmp.eq.s32.totalorder %s34, 1
    %p256 = por %p254, %p255
    %p258 = scmp.ne.s32.totalorder %s243, %s257
    %p259 = scmp.eq.s32.totalorder %s34, 0
    %p260 = por %p258, %p259
    %s262 = sadd.s32 %s261, 1
    %p265 = scmp.eq.s32.totalorder %s28, 1
    %p266 = scmp.ne.s32.totalorder %s261, %s263
    %p267 = scmp.eq.s32.totalorder %s28, 0
    %p268 = por %p266, %p267
    %p269 = scmp.ne.s32.totalorder %s261, %s263
    %p270 = scmp.eq.s32.totalorder %s33, 1
    %p271 = por %p269, %p270
    %p272 = scmp.ne.s32.totalorder %s263, %s264
    %p273 = scmp.eq.s32.totalorder %s33, 0
    %p274 = por %p272, %p273
    %p275 = scmp.ne.s32.totalorder %s263, %s264
    %p276 = scmp.eq.s32.totalorder %s34, 1
    %p277 = por %p275, %p276
    %p279 = scmp.ne.s32.totalorder %s264, %s278
    %p280 = scmp.eq.s32.totalorder %s34, 0
    %p281 = por %p279, %p280
    %s283 = sadd.s32 %s282, 1
    %p286 = scmp.eq.s32.totalorder %s28, 1
    %p287 = scmp.ne.s32.totalorder %s282, %s284
    %p288 = scmp.eq.s32.totalorder %s28, 0
    %p289 = por %p287, %p288
    %p290 = scmp.ne.s32.totalorder %s282, %s284
    %p291 = scmp.eq.s32.totalorder %s33, 1
    %p292 = por %p290, %p291
    %p293 = scmp.ne.s32.totalorder %s284, %s285
    %p294 = scmp.eq.s32.totalorder %s33, 0
    %p295 = por %p293, %p294
    %p296 = scmp.ne.s32.totalorder %s284, %s285
    %p297 = scmp.eq.s32.totalorder %s34, 1
    %p298 = por %p296, %p297
    %p300 = scmp.ne.s32.totalorder %s285, %s299
    %p301 = scmp.eq.s32.totalorder %s34, 0
    %p302 = por %p300, %p301
    %s304 = sadd.s32 %s303, 1
    %p307 = scmp.eq.s32.totalorder %s28, 1
    %p308 = scmp.ne.s32.totalorder %s303, %s305
    %p309 = scmp.eq.s32.totalorder %s28, 0
    %p310 = por %p308, %p309
    %p311 = scmp.ne.s32.totalorder %s303, %s305
    %p312 = scmp.eq.s32.totalorder %s33, 1
    %p313 = por %p311, %p312
    %p314 = scmp.ne.s32.totalorder %s305, %s306
    %p315 = scmp.eq.s32.totalorder %s33, 0
    %p316 = por %p314, %p315
    %p317 = scmp.ne.s32.totalorder %s305, %s306
    %p318 = scmp.eq.s32.totalorder %s34, 1
    %p319 = por %p317, %p318
    %p321 = scmp.ne.s32.totalorder %s306, %s320
    %p322 = scmp.eq.s32.totalorder %s34, 0
    %p323 = por %p321, %p322
    %s325 = sadd.s32 %s324, 1
    %p328 = scmp.eq.s32.totalorder %s28, 1
    %p329 = scmp.ne.s32.totalorder %s324, %s326
    %p330 = scmp.eq.s32.totalorder %s28, 0
    %p331 = por %p329, %p330
    %p332 = scmp.ne.s32.totalorder %s324, %s326
    %p333 = scmp.eq.s32.totalorder %s33, 1
    %p334 = por %p332, %p333
    %p335 = scmp.ne.s32.totalorder %s326, %s327
    %p336 = scmp.eq.s32.totalorder %s33, 0
    %p337 = por %p335, %p336
    %p338 = scmp.ne.s32.totalorder %s326, %s327
    %p339 = scmp.eq.s32.totalorder %s34, 1
    %p340 = por %p338, %p339
    %p342 = scmp.ne.s32.totalorder %s327, %s341
    %p343 = scmp.eq.s32.totalorder %s34, 0
    %p344 = por %p342, %p343
    %s346 = sadd.s32 %s345, 1
    %p349 = scmp.eq.s32.totalorder %s28, 1
    %p350 = scmp.ne.s32.totalorder %s345, %s347
    %p351 = scmp.eq.s32.totalorder %s28, 0
    %p352 = por %p350, %p351
    %p353 = scmp.ne.s32.totalorder %s345, %s347
    %p354 = scmp.eq.s32.totalorder %s33, 1
    %p355 = por %p353, %p354
    %p356 = scmp.ne.s32.totalorder %s347, %s348
    %p357 = scmp.eq.s32.totalorder %s33, 0
    %p358 = por %p356, %p357
    %p359 = scmp.ne.s32.totalorder %s347, %s348
    %p360 = scmp.eq.s32.totalorder %s34, 1
    %p361 = por %p359, %p360
    %p363 = scmp.ne.s32.totalorder %s348, %s362
    %p364 = scmp.eq.s32.totalorder %s34, 0
    %p365 = por %p363, %p364
    %s367 = sadd.s32 %s366, 1
    %p370 = scmp.eq.s32.totalorder %s28, 1
    %p371 = scmp.ne.s32.totalorder %s366, %s368
    %p372 = scmp.eq.s32.totalorder %s28, 0
    %p373 = por %p371, %p372
    %p374 = scmp.ne.s32.totalorder %s366, %s368
    %p375 = scmp.eq.s32.totalorder %s33, 1
    %p376 = por %p374, %p375
    %p377 = scmp.ne.s32.totalorder %s368, %s369
    %p378 = scmp.eq.s32.totalorder %s33, 0
    %p379 = por %p377, %p378
    %p380 = scmp.ne.s32.totalorder %s368, %s369
    %p381 = scmp.eq.s32.totalorder %s34, 1
    %p382 = por %p380, %p381
    %p384 = scmp.ne.s32.totalorder %s369, %s383
    %p385 = scmp.eq.s32.totalorder %s34, 0
    %p386 = por %p384, %p385
    %s388 = sadd.s32 %s387, 1
    %p391 = scmp.eq.s32.totalorder %s28, 1
    %p392 = scmp.ne.s32.totalorder %s387, %s389
    %p393 = scmp.eq.s32.totalorder %s28, 0
    %p394 = por %p392, %p393
    %p395 = scmp.ne.s32.totalorder %s387, %s389
    %p396 = scmp.eq.s32.totalorder %s33, 1
    %p397 = por %p395, %p396
    %p398 = scmp.ne.s32.totalorder %s389, %s390
    %p399 = scmp.eq.s32.totalorder %s33, 0
    %p400 = por %p398, %p399
    %p401 = scmp.ne.s32.totalorder %s389, %s390
    %p402 = scmp.eq.s32.totalorder %s34, 1
    %p403 = por %p401, %p402
    %p405 = scmp.ne.s32.totalorder %s390, %s404
    %p406 = scmp.eq.s32.totalorder %s34, 0
    %p407 = por %p405, %p406
    %s409 = sadd.s32 %s408, 1
    %p412 = scmp.eq.s32.totalorder %s28, 1
    %p413 = scmp.ne.s32.totalorder %s408, %s410
    %p414 = scmp.eq.s32.totalorder %s28, 0
    %p415 = por %p413, %p414
    %p416 = scmp.ne.s32.totalorder %s408, %s410
    %p417 = scmp.eq.s32.totalorder %s33, 1
    %p418 = por %p416, %p417
    %p419 = scmp.ne.s32.totalorder %s410, %s411
    %p420 = scmp.eq.s32.totalorder %s33, 0
    %p421 = por %p419, %p420
    %p422 = scmp.ne.s32.totalorder %s410, %s411
    %p423 = scmp.eq.s32.totalorder %s34, 1
    %p424 = por %p422, %p423
    %p426 = scmp.ne.s32.totalorder %s411, %s425
    %p427 = scmp.eq.s32.totalorder %s34, 0
    %p428 = por %p426, %p427
    %s430 = sadd.s32 %s429, 1
    %p433 = scmp.eq.s32.totalorder %s28, 1
    %p434 = scmp.ne.s32.totalorder %s429, %s431
    %p435 = scmp.eq.s32.totalorder %s28, 0
    %p436 = por %p434, %p435
    %p437 = scmp.ne.s32.totalorder %s429, %s431
    %p438 = scmp.eq.s32.totalorder %s33, 1
    %p439 = por %p437, %p438
    %p440 = scmp.ne.s32.totalorder %s431, %s432
    %p441 = scmp.eq.s32.totalorder %s33, 0
    %p442 = por %p440, %p441
    %p443 = scmp.ne.s32.totalorder %s431, %s432
    %p444 = scmp.eq.s32.totalorder %s34, 1
    %p445 = por %p443, %p444
    %p447 = scmp.ne.s32.totalorder %s432, %s446
    %p448 = scmp.eq.s32.totalorder %s34, 0
    %p449 = por %p447, %p448
    %s450 = ssub.s32 %s28, %s35
    %p451 = scmp.eq.s32.totalorder %s450, 0
    %s453 = sadd.s32 %s452, 1
    %s454 = scalar_select %p451, %s452, %s453
    %p457 = pneg %p451
    %p458 = scmp.eq.s32.totalorder %s28, 1
    %p459 = por %p457, %p458
    %p460 = scmp.ne.s32.totalorder %s452, %s455
    %p461 = scmp.eq.s32.totalorder %s28, 0
    %p462 = por %p460, %p461
    %p463 = scmp.ne.s32.totalorder %s452, %s455
    %p464 = scmp.eq.s32.totalorder %s33, 1
    %p465 = por %p463, %p464
    %p466 = scmp.ne.s32.totalorder %s455, %s456
    %p467 = scmp.eq.s32.totalorder %s33, 0
    %p468 = por %p466, %p467
    %p469 = scmp.ne.s32.totalorder %s455, %s456
    %p470 = scmp.eq.s32.totalorder %s34, 1
    %p471 = por %p469, %p470
    %p473 = scmp.ne.s32.totalorder %s456, %s472
    %p474 = scmp.eq.s32.totalorder %s34, 0
    %p475 = por %p473, %p474
    %s476 = ssub.s32 %s28, %s35
    %p477 = scmp.eq.s32.totalorder %s476, 0
    %s479 = sadd.s32 %s478, 1
    %s480 = scalar_select %p477, %s478, %s479
    %p483 = pneg %p477
    %p484 = scmp.eq.s32.totalorder %s28, 1
    %p485 = por %p483, %p484
    %p486 = scmp.ne.s32.totalorder %s478, %s481
    %p487 = scmp.eq.s32.totalorder %s28, 0
    %p488 = por %p486, %p487
    %p489 = scmp.ne.s32.totalorder %s478, %s481
    %p490 = scmp.eq.s32.totalorder %s33, 1
    %p491 = por %p489, %p490
    %p492 = scmp.ne.s32.totalorder %s481, %s482
    %p493 = scmp.eq.s32.totalorder %s33, 0
    %p494 = por %p492, %p493
    %p495 = scmp.ne.s32.totalorder %s481, %s482
    %p496 = scmp.eq.s32.totalorder %s34, 1
    %p497 = por %p495, %p496
    %p499 = scmp.ne.s32.totalorder %s482, %s498
    %p500 = scmp.eq.s32.totalorder %s34, 0
    %p501 = por %p499, %p500
    %s502 = ssub.s32 %s28, %s35
    %p503 = scmp.eq.s32.totalorder %s502, 0
    %s505 = sadd.s32 %s504, 1
    %s506 = scalar_select %p503, %s504, %s505
    %p509 = pneg %p503
    %p510 = scmp.eq.s32.totalorder %s28, 1
    %p511 = por %p509, %p510
    %p512 = scmp.ne.s32.totalorder %s504, %s507
    %p513 = scmp.eq.s32.totalorder %s28, 0
    %p514 = por %p512, %p513
    %p515 = scmp.ne.s32.totalorder %s504, %s507
    %p516 = scmp.eq.s32.totalorder %s33, 1
    %p517 = por %p515, %p516
    %p518 = scmp.ne.s32.totalorder %s507, %s508
    %p519 = scmp.eq.s32.totalorder %s33, 0
    %p520 = por %p518, %p519
    %p521 = scmp.ne.s32.totalorder %s507, %s508
    %p522 = scmp.eq.s32.totalorder %s34, 1
    %p523 = por %p521, %p522
    %p525 = scmp.ne.s32.totalorder %s508, %s524
    %p526 = scmp.eq.s32.totalorder %s34, 0
    %p527 = por %p525, %p526
    %p528 = scmp.le.s32.totalorder 1, %s28
    %p529 = scmp.lt.s32.totalorder %s28, 3
    %p530 = pnand %p528, %p529
    %p531 = pneg %p530
    // Predicated region
    $region9: #{joiner_forward.2} parent=5 // pred_check
      _
    $region10: #{joiner_forward.2} parent=5 // pred_check_branch
      %533 = sbr.rel (%p530) target = $region12
    $region11: #{joiner_forward.2} parent=5 // pred_region
      %s534 = ssub.s32 %s28, 1
      // Predicated region
      $region13: #{joiner_forward.2} parent=11 // pred_check
        %p535 = pneg %p127
      $region14: #{joiner_forward.2} parent=11 // pred_check_branch
        %537 = sbr.rel (%p535) target = $region16
      $region15: #{joiner_forward.2} parent=11 // pred_region
        _
      $region16: #{joiner_forward.2} parent=11 // pred_fallthru
        _
      // Predicated region
      $region17: #{joiner_forward.2} parent=11 // pred_check
        %p538 = pneg %p148
      $region18: #{joiner_forward.2} parent=11 // pred_check_branch
        %540 = sbr.rel (%p538) target = $region20
      $region19: #{joiner_forward.2} parent=11 // pred_region
        _
      $region20: #{joiner_forward.2} parent=11 // pred_fallthru
        _
      // Predicated region
      $region21: #{joiner_forward.2} parent=11 // pred_check
        %p541 = pneg %p169
      $region22: #{joiner_forward.2} parent=11 // pred_check_branch
        %543 = sbr.rel (%p541) target = $region24
      $region23: #{joiner_forward.2} parent=11 // pred_region
        _
      $region24: #{joiner_forward.2} parent=11 // pred_fallthru
        _
      // Predicated region
      $region25: #{joiner_forward.2} parent=11 // pred_check
        %p544 = pneg %p190
      $region26: #{joiner_forward.2} parent=11 // pred_check_branch
        %546 = sbr.rel (%p544) target = $region28
      $region27: #{joiner_forward.2} parent=11 // pred_region
        _
      $region28: #{joiner_forward.2} parent=11 // pred_fallthru
        _
      // Predicated region
      $region29: #{joiner_forward.2} parent=11 // pred_check
        %p547 = pneg %p211
      $region30: #{joiner_forward.2} parent=11 // pred_check_branch
        %549 = sbr.rel (%p547) target = $region32
      $region31: #{joiner_forward.2} parent=11 // pred_region
        _
      $region32: #{joiner_forward.2} parent=11 // pred_fallthru
        _
      // Predicated region
      $region33: #{joiner_forward.2} parent=11 // pred_check
        %p550 = pneg %p232
      $region34: #{joiner_forward.2} parent=11 // pred_check_branch
        %552 = sbr.rel (%p550) target = $region36
      $region35: #{joiner_forward.2} parent=11 // pred_region
        _
      $region36: #{joiner_forward.2} parent=11 // pred_fallthru
        _
      // Predicated region
      $region37: #{joiner_forward.2} parent=11 // pred_check
        %p553 = pneg %p253
      $region38: #{joiner_forward.2} parent=11 // pred_check_branch
        %555 = sbr.rel (%p553) target = $region40
      $region39: #{joiner_forward.2} parent=11 // pred_region
        _
      $region40: #{joiner_forward.2} parent=11 // pred_fallthru
        _
      // Predicated region
      $region41: #{joiner_forward.2} parent=11 // pred_check
        %p556 = pneg %p274
      $region42: #{joiner_forward.2} parent=11 // pred_check_branch
        %558 = sbr.rel (%p556) target = $region44
      $region43: #{joiner_forward.2} parent=11 // pred_region
        _
      $region44: #{joiner_forward.2} parent=11 // pred_fallthru
        _
      // Predicated region
      $region45: #{joiner_forward.2} parent=11 // pred_check
        %p559 = pneg %p295
      $region46: #{joiner_forward.2} parent=11 // pred_check_branch
        %561 = sbr.rel (%p559) target = $region48
      $region47: #{joiner_forward.2} parent=11 // pred_region
        _
      $region48: #{joiner_forward.2} parent=11 // pred_fallthru
        _
      // Predicated region
      $region49: #{joiner_forward.2} parent=11 // pred_check
        %p562 = pneg %p316
      $region50: #{joiner_forward.2} parent=11 // pred_check_branch
        %564 = sbr.rel (%p562) target = $region52
      $region51: #{joiner_forward.2} parent=11 // pred_region
        _
      $region52: #{joiner_forward.2} parent=11 // pred_fallthru
        _
      // Predicated region
      $region53: #{joiner_forward.2} parent=11 // pred_check
        %p565 = pneg %p337
      $region54: #{joiner_forward.2} parent=11 // pred_check_branch
        %567 = sbr.rel (%p565) target = $region56
      $region55: #{joiner_forward.2} parent=11 // pred_region
        _
      $region56: #{joiner_forward.2} parent=11 // pred_fallthru
        _
      // Predicated region
      $region57: #{joiner_forward.2} parent=11 // pred_check
        %p568 = pneg %p358
      $region58: #{joiner_forward.2} parent=11 // pred_check_branch
        %570 = sbr.rel (%p568) target = $region60
      $region59: #{joiner_forward.2} parent=11 // pred_region
        _
      $region60: #{joiner_forward.2} parent=11 // pred_fallthru
        _
      // Predicated region
      $region61: #{joiner_forward.2} parent=11 // pred_check
        %p571 = pneg %p379
      $region62: #{joiner_forward.2} parent=11 // pred_check_branch
        %573 = sbr.rel (%p571) target = $region64
      $region63: #{joiner_forward.2} parent=11 // pred_region
        _
      $region64: #{joiner_forward.2} parent=11 // pred_fallthru
        _
      // Predicated region
      $region65: #{joiner_forward.2} parent=11 // pred_check
        %p574 = pneg %p400
      $region66: #{joiner_forward.2} parent=11 // pred_check_branch
        %576 = sbr.rel (%p574) target = $region68
      $region67: #{joiner_forward.2} parent=11 // pred_region
        _
      $region68: #{joiner_forward.2} parent=11 // pred_fallthru
        _
      // Predicated region
      $region69: #{joiner_forward.2} parent=11 // pred_check
        %p577 = pneg %p421
      $region70: #{joiner_forward.2} parent=11 // pred_check_branch
        %579 = sbr.rel (%p577) target = $region72
      $region71: #{joiner_forward.2} parent=11 // pred_region
        _
      $region72: #{joiner_forward.2} parent=11 // pred_fallthru
        _
      // Predicated region
      $region73: #{joiner_forward.2} parent=11 // pred_check
        %p580 = pneg %p442
      $region74: #{joiner_forward.2} parent=11 // pred_check_branch
        %582 = sbr.rel (%p580) target = $region76
      $region75: #{joiner_forward.2} parent=11 // pred_region
        _
      $region76: #{joiner_forward.2} parent=11 // pred_fallthru
        _
    $region12: #{joiner_forward.2} parent=5 // pred_fallthru
      _
    %p583 = scmp.lt.s32.totalorder %s28, 2
    // Predicated region
    $region77: #{joiner_forward.2} parent=5 // pred_check
      %p584 = pneg %p583
    $region78: #{joiner_forward.2} parent=5 // pred_check_branch
      %586 = sbr.rel (%p584) target = $region80
    $region79: #{joiner_forward.2} parent=5 // pred_region
      // Predicated region
      $region81: #{joiner_forward.2} parent=79 // pred_check
        %p587 = pneg %p48
      $region82: #{joiner_forward.2} parent=79 // pred_check_branch
        %589 = sbr.rel (%p587) target = $region84
      $region83: #{joiner_forward.2} parent=79 // pred_region
        %p590 = scmp.lt.s32.totalorder %s28, 1
        %s591 = scalar_select %p590, %s28, 1
        %s592 = smul.addr %s591, 8
        %s593 = smul.addr %s592, 8
        %s594 = scalar_lea.vmem %s0, %s593
      $region84: #{joiner_forward.2} parent=79 // pred_fallthru
        _
      // Predicated region
      $region85: #{joiner_forward.2} parent=79 // pred_check
        %p595 = pneg %p74
      $region86: #{joiner_forward.2} parent=79 // pred_check_branch
        %597 = sbr.rel (%p595) target = $region88
      $region87: #{joiner_forward.2} parent=79 // pred_region
        %p598 = scmp.lt.s32.totalorder %s28, 1
        %s599 = scalar_select %p598, %s28, 1
        %s600 = smul.addr %s599, 8
        %s601 = smul.addr %s600, 8
        %s602 = scalar_lea.vmem %s1, %s601
      $region88: #{joiner_forward.2} parent=79 // pred_fallthru
        _
      // Predicated region
      $region89: #{joiner_forward.2} parent=79 // pred_check
        %p603 = pneg %p100
      $region90: #{joiner_forward.2} parent=79 // pred_check_branch
        %605 = sbr.rel (%p603) target = $region92
      $region91: #{joiner_forward.2} parent=79 // pred_region
        %p606 = scmp.lt.s32.totalorder %s28, 1
        %s607 = scalar_select %p606, %s28, 1
        %s608 = smul.addr %s607, 8
        %s609 = smul.addr %s608, 8
        %s610 = scalar_lea.vmem %s2, %s609
      $region92: #{joiner_forward.2} parent=79 // pred_fallthru
        _
    $region80: #{joiner_forward.2} parent=5 // pred_fallthru
      _
    %p611 = scmp.le.s32.totalorder 1, %s28
    %p612 = scmp.lt.s32.totalorder %s28, 3
    %p613 = pnand %p611, %p612
    %p614 = pneg %p613
    // Predicated region
    $region93: #{joiner_forward.2} parent=5 // pred_check
      _
    $region94: #{joiner_forward.2} parent=5 // pred_check_branch
      %616 = sbr.rel (%p613) target = $region96
    $region95: #{joiner_forward.2} parent=5 // pred_region
      %s617 = ssub.s32 %s28, 1
      %p618 = scmp.lt.s32.totalorder %s33, 1
      %s619 = scalar_select %p618, %s33, 1
      %s620 = smul.addr %s619, 8
      %s621 = smul.addr %s620, 8
      %s622 = scalar_lea.vmem %s0, %s621
      %p623 = pneg %p54
      %p624 = pneg %p51
      %p625 = scmp.lt.s32.totalorder %s33, 1
      %s626 = scalar_select %p625, %s33, 1
      %s627 = smul.addr %s626, 8
      %s628 = smul.addr %s627, 8
      %s629 = scalar_lea.vmem %s1, %s628
      %p630 = pneg %p80
      %p631 = pneg %p77
      %p632 = scmp.lt.s32.totalorder %s33, 1
      %s633 = scalar_select %p632, %s33, 1
      %s634 = smul.addr %s633, 8
      %s635 = smul.addr %s634, 8
      %s636 = scalar_lea.vmem %s2, %s635
      %p637 = pneg %p106
      %p638 = pneg %p103
      %p639 = pneg %p127
      %p640 = pneg %p124
      %p641 = pneg %p148
      %p642 = pneg %p145
      %p643 = pneg %p169
      %p644 = pneg %p166
      %p645 = pneg %p190
      %p646 = pneg %p187
      %p647 = pneg %p211
      %p648 = pneg %p208
      %p649 = pneg %p232
      %p650 = pneg %p229
      %p651 = pneg %p253
      %p652 = pneg %p250
      %p653 = pneg %p274
      %p654 = pneg %p271
      %p655 = pneg %p295
      %p656 = pneg %p292
      %p657 = pneg %p316
      %p658 = pneg %p313
      %p659 = pneg %p337
      %p660 = pneg %p334
      %p661 = pneg %p358
      %p662 = pneg %p355
      %p663 = pneg %p379
      %p664 = pneg %p376
      %p665 = pneg %p400
      %p666 = pneg %p397
      %p667 = pneg %p421
      %p668 = pneg %p418
      %p669 = pneg %p442
      %p670 = pneg %p439
      %p671 = pneg %p468
      %p672 = pneg %p465
      %p673 = scmp.lt.s32.totalorder %s33, 1
      %s674 = scalar_select %p673, %s33, 1
      %s675 = smul.addr %s674, 8
      %s676 = smul.addr %s675, 8
      %s677 = scalar_lea.vmem %s19, %s676
      %p678 = pneg %p494
      %p679 = pneg %p491
      %p680 = scmp.lt.s32.totalorder %s33, 1
      %s681 = scalar_select %p680, %s33, 1
      %s682 = smul.addr %s681, 8
      %s683 = smul.addr %s682, 8
      %s684 = scalar_lea.vmem %s20, %s683
      %p685 = pneg %p520
      %p686 = pneg %p517
      %p687 = scmp.lt.s32.totalorder %s33, 1
      %s688 = scalar_select %p687, %s33, 1
      %s689 = smul.addr %s688, 8
      %s690 = smul.addr %s689, 8
      %s691 = scalar_lea.vmem %s21, %s690
      %p692 = scmp.lt.s32.totalorder %s33, 1
      %s693 = scalar_select %p692, %s33, 1
      %s694 = smul.addr %s693, 8
      %s695 = smul.addr %s694, 8
      %s696 = scalar_lea.vmem %s0, %s695
      %p697 = scmp.lt.s32.totalorder %s33, 1
      %s698 = scalar_select %p697, %s33, 1
      %s699 = smul.addr %s698, 8
      %s700 = smul.addr %s699, 8
      %s701 = scalar_lea.vmem %s1, %s700
      %p702 = scmp.lt.s32.totalorder %s33, 1
      %s703 = scalar_select %p702, %s33, 1
      %s704 = smul.addr %s703, 8
      %s705 = smul.addr %s704, 8
      %s706 = scalar_lea.vmem %s2, %s705
      %p707 = scmp.lt.s32.totalorder %s33, 1
      %s708 = scalar_select %p707, %s33, 1
      %s709 = smul.addr %s708, 8
      %s710 = smul.addr %s709, 8
      %s711 = scalar_lea.vmem %s19, %s710
      %p712 = scmp.lt.s32.totalorder %s33, 1
      %s713 = scalar_select %p712, %s33, 1
      %s714 = smul.addr %s713, 8
      %s715 = smul.addr %s714, 8
      %s716 = scalar_lea.vmem %s20, %s715
      %p717 = scmp.lt.s32.totalorder %s33, 1
      %s718 = scalar_select %p717, %s33, 1
      %s719 = smul.addr %s718, 8
      %s720 = smul.addr %s719, 8
      %s721 = scalar_lea.vmem %s21, %s720
      %v722 = vld [vmem:[%s696] sm:$0xff]
      %v723 = vld [vmem:[%s696 + $0x8] sm:$0xff]
      %v724 = vld [vmem:[%s696 + $0x10] sm:$0xff]
      %v725 = vld [vmem:[%s696 + $0x18] sm:$0xff]
      %v726 = vld [vmem:[%s696 + $0x20] sm:$0xff]
      %v727 = vld [vmem:[%s696 + $0x28] sm:$0xff]
      %v728 = vld [vmem:[%s696 + $0x30] sm:$0xff]
      %v729 = vld [vmem:[%s696 + $0x38] sm:$0xff]
      %v730 = vld [vmem:[%s3] sm:$0x7]
      %v731 = vld [vmem:[%s4] sm:$0x1]
      %v733 = vlaneseq
      %v734 = vshrl.u32 %v733, 7
      %v735 = vsub.s32 0, %v734
      %v736 = vrot.slane %v731, %v735
      %vm738 = vcmask 23552
      %v740 = vsel %vm738, %v722, 0
      %v743 = vsel %vm738, %v723, 0
      %v746 = vsel %vm738, %v724, 0
      %v749 = vsel %vm738, %v725, 0
      %v752 = vsel %vm738, %v726, 0
      %v755 = vsel %vm738, %v727, 0
      %v758 = vsel %vm738, %v728, 0
      %v761 = vsel %vm738, %v729, 0
      %vm763 = vcmask 1042432
      %v765 = vsel %vm763, %v730, 0
      %767 = vmatprep.subr.mxu0 0.0
      %768 = vmatpush1.msra.mxu0 %v765
      %769 = vmatprep.subr.mxu0 0.0
      %770 = vmatpush1.msra.mxu0 0.0
      %771 = vmatprep.subr.mxu0 0.0
      %772 = vmatpush1.msra.mxu0 0.0
      %773 = vmatprep.subr.mxu0 0.0
      %774 = vmatpush1.msra.mxu0 0.0
      %775 = vmatprep.subr.mxu0 0.0
      %776 = vmatpush1.msra.mxu0 0.0
      %777 = vmatprep.subr.mxu0 0.0
      %778 = vmatpush1.msra.mxu0 0.0
      %779 = vmatprep.subr.mxu0 0.0
      %780 = vmatpush1.msra.mxu0 0.0
      %781 = vmatprep.subr.mxu0 0.0
      %782 = vmatpush1.msra.mxu0 0.0
      %783 = vmatprep.subr.mxu0 0.0
      %784 = vmatpush1.msra.mxu0 0.0
      %785 = vmatprep.subr.mxu0 0.0
      %786 = vmatpush1.msra.mxu0 0.0
      %787 = vmatprep.subr.mxu0 0.0
      %788 = vmatpush1.msra.mxu0 0.0
      %789 = vmatprep.subr.mxu0 0.0
      %790 = vmatpush1.msra.mxu0 0.0
      %791 = vmatprep.subr.mxu0 0.0
      %792 = vmatpush1.msra.mxu0 0.0
      %793 = vmatprep.subr.mxu0 0.0
      %794 = vmatpush1.msra.mxu0 0.0
      %795 = vmatprep.subr.mxu0 0.0
      %796 = vmatpush1.msra.mxu0 0.0
      %797 = vmatprep.subr.mxu0 0.0
      %798 = vmatpush1.msra.mxu0 0.0
      %799 = vmatprep.subr.mxu0 0.0
      %800 = vmatpush1.msra.mxu0 0.0
      %801 = vmatprep.subr.mxu0 0.0
      %802 = vmatpush1.msra.mxu0 0.0
      %803 = vmatprep.subr.mxu0 0.0
      %804 = vmatpush1.msra.mxu0 0.0
      %805 = vmatprep.subr.mxu0 0.0
      %806 = vmatpush1.msra.mxu0 0.0
      %807 = vmatprep.subr.mxu0 0.0
      %808 = vmatpush1.msra.mxu0 0.0
      %809 = vmatprep.subr.mxu0 0.0
      %810 = vmatpush1.msra.mxu0 0.0
      %811 = vmatprep.subr.mxu0 0.0
      %812 = vmatpush1.msra.mxu0 0.0
      %813 = vmatprep.subr.mxu0 0.0
      %814 = vmatpush1.msra.mxu0 0.0
      %815 = vmatprep.subr.mxu0 0.0
      %816 = vmatpush1.msra.mxu0 0.0
      %817 = vmatprep.subr.mxu0 0.0
      %818 = vmatpush1.msra.mxu0 0.0
      %819 = vmatprep.subr.mxu0 0.0
      %820 = vmatpush1.msra.mxu0 0.0
      %821 = vmatprep.subr.mxu0 0.0
      %822 = vmatpush1.msra.mxu0 0.0
      %823 = vmatprep.subr.mxu0 0.0
      %824 = vmatpush1.msra.mxu0 0.0
      %825 = vmatprep.subr.mxu0 0.0
      %826 = vmatpush1.msra.mxu0 0.0
      %827 = vmatprep.subr.mxu0 0.0
      %828 = vmatpush1.msra.mxu0 0.0
      %829 = vmatprep.subr.mxu0 0.0
      %830 = vmatpush1.msra.mxu0 0.0
      %831 = vmatprep.mubr.f32.mxu0 0.0
      %832 = vmatmul.mubr.f32.gmra.mrb[0].mxu0 %v740
      %v833 = vpop.f32.mrb[0].mxu0
      %v834 = vadd.f32 %v736, %v833
      %v835 = vpop.f32.mrb[0].mxu0
      %836 = vmatprep.mubr.f32.mxu0 0.0
      %837 = vmatmul.mubr.f32.gmra.mrb[0].mxu0 %v743
      %v838 = vpop.f32.mrb[0].mxu0
      %v839 = vadd.f32 %v736, %v838
      %v840 = vpop.f32.mrb[0].mxu0
      %841 = vmatprep.mubr.f32.mxu0 0.0
      %842 = vmatmul.mubr.f32.gmra.mrb[0].mxu0 %v746
      %v843 = vpop.f32.mrb[0].mxu0
      %v844 = vadd.f32 %v736, %v843
      %v845 = vpop.f32.mrb[0].mxu0
      %846 = vmatprep.mubr.f32.mxu0 0.0
      %847 = vmatmul.mubr.f32.gmra.mrb[0].mxu0 %v749
      %v848 = vpop.f32.mrb[0].mxu0
      %v849 = vadd.f32 %v736, %v848
      %v850 = vpop.f32.mrb[0].mxu0
      %851 = vmatprep.mubr.f32.mxu0 0.0
      %852 = vmatmul.mubr.f32.gmra.mrb[0].mxu0 %v752
      %v853 = vpop.f32.mrb[0].mxu0
      %v854 = vadd.f32 %v736, %v853
      %v855 = vpop.f32.mrb[0].mxu0
      %856 = vmatprep.mubr.f32.mxu0 0.0
      %857 = vmatmul.mubr.f32.gmra.mrb[0].mxu0 %v755
      %v858 = vpop.f32.mrb[0].mxu0
      %v859 = vadd.f32 %v736, %v858
      %v860 = vpop.f32.mrb[0].mxu0
      %861 = vmatprep.mubr.f32.mxu0 0.0
      %862 = vmatmul.mubr.f32.gmra.mrb[0].mxu0 %v758
      %v863 = vpop.f32.mrb[0].mxu0
      %v864 = vadd.f32 %v736, %v863
      %v865 = vpop.f32.mrb[0].mxu0
      %866 = vmatprep.mubr.f32.mxu0 0.0
      %867 = vmatmul.mubr.f32.gmra.mrb[0].mxu0 %v761
      %v868 = vpop.f32.mrb[0].mxu0
      %v869 = vadd.f32 %v736, %v868
      %v870 = vpop.f32.mrb[0].mxu0
      %871 = vdwg.mxu0
      %v872 = vmul.f32 %v834, 0.4
      %v873 = vmul.f32 %v839, 0.4
      %v874 = vmul.f32 %v844, 0.4
      %v875 = vmul.f32 %v849, 0.4
      %v876 = vmul.f32 %v854, 0.4
      %v877 = vmul.f32 %v859, 0.4
      %v878 = vmul.f32 %v864, 0.4
      %v879 = vmul.f32 %v869, 0.4
      %v880 = vld [vmem:[%s701] sm:$0xff]
      %v881 = vld [vmem:[%s701 + $0x8] sm:$0xff]
      %v882 = vld [vmem:[%s701 + $0x10] sm:$0xff]
      %v883 = vld [vmem:[%s701 + $0x18] sm:$0xff]
      %v884 = vld [vmem:[%s701 + $0x20] sm:$0xff]
      %v885 = vld [vmem:[%s701 + $0x28] sm:$0xff]
      %v886 = vld [vmem:[%s701 + $0x30] sm:$0xff]
      %v887 = vld [vmem:[%s701 + $0x38] sm:$0xff]
      %v888 = vadd.f32 %v872, %v880
      %v889 = vadd.f32 %v873, %v881
      %v890 = vadd.f32 %v874, %v882
      %v891 = vadd.f32 %v875, %v883
      %v892 = vadd.f32 %v876, %v884
      %v893 = vadd.f32 %v877, %v885
      %v894 = vadd.f32 %v878, %v886
      %v895 = vadd.f32 %v879, %v887
      %v896 = vld [vmem:[%s5] sm:$0xff]
      %v897 = vld [vmem:[%s5 + $0x8] sm:$0xff]
      %v898 = vld [vmem:[%s5 + $0x10] sm:$0xff]
      %v899 = vld [vmem:[%s5 + $0x18] sm:$0xff]
      %v900 = vld [vmem:[%s6] sm:$0x1]
      %v902 = vlaneseq
      %v903 = vshrl.u32 %v902, 7
      %v904 = vsub.s32 0, %v903
      %v905 = vrot.slane %v900, %v904
      %vm907 = vcmask 261120
      %v909 = vsel %vm907, %v888, 0
      %v912 = vsel %vm907, %v889, 0
      %v915 = vsel %vm907, %v890, 0
      %v918 = vsel %vm907, %v891, 0
      %v921 = vsel %vm907, %v892, 0
      %v924 = vsel %vm907, %v893, 0
      %v927 = vsel %vm907, %v894, 0
      %v930 = vsel %vm907, %v895, 0
      %932 = vmatprep.subr.mxu0 0.0
      %933 = vmatpush1.msra.mxu0 %v896
      %934 = vmatprep.subr.mxu0 0.0
      %935 = vmatpush1.msra.mxu0 %v897
      %936 = vmatprep.subr.mxu0 0.0
      %937 = vmatpush1.msra.mxu0 %v898
      %938 = vmatprep.subr.mxu0 0.0
      %939 = vmatpush1.msra.mxu0 %v899
      %940 = vmatprep.subr.mxu0 0.0
      %941 = vmatpush1.msra.mxu0 0.0
      %942 = vmatprep.subr.mxu0 0.0
      %943 = vmatpush1.msra.mxu0 0.0
      %944 = vmatprep.subr.mxu0 0.0
      %945 = vmatpush1.msra.mxu0 0.0
      %946 = vmatprep.subr.mxu0 0.0
      %947 = vmatpush1.msra.mxu0 0.0
      %948 = vmatprep.subr.mxu0 0.0
      %949 = vmatpush1.msra.mxu0 0.0
      %950 = vmatprep.subr.mxu0 0.0
      %951 = vmatpush1.msra.mxu0 0.0
      %952 = vmatprep.subr.mxu0 0.0
      %953 = vmatpush1.msra.mxu0 0.0
      %954 = vmatprep.subr.mxu0 0.0
      %955 = vmatpush1.msra.mxu0 0.0
      %956 = vmatprep.subr.mxu0 0.0
      %957 = vmatpush1.msra.mxu0 0.0
      %958 = vmatprep.subr.mxu0 0.0
      %959 = vmatpush1.msra.mxu0 0.0
      %960 = vmatprep.subr.mxu0 0.0
      %961 = vmatpush1.msra.mxu0 0.0
      %962 = vmatprep.subr.mxu0 0.0
      %963 = vmatpush1.msra.mxu0 0.0
      %964 = vmatprep.subr.mxu0 0.0
      %965 = vmatpush1.msra.mxu0 0.0
      %966 = vmatprep.subr.mxu0 0.0
      %967 = vmatpush1.msra.mxu0 0.0
      %968 = vmatprep.subr.mxu0 0.0
      %969 = vmatpush1.msra.mxu0 0.0
      %970 = vmatprep.subr.mxu0 0.0
      %971 = vmatpush1.msra.mxu0 0.0
      %972 = vmatprep.subr.mxu0 0.0
      %973 = vmatpush1.msra.mxu0 0.0
      %974 = vmatprep.subr.mxu0 0.0
      %975 = vmatpush1.msra.mxu0 0.0
      %976 = vmatprep.subr.mxu0 0.0
      %977 = vmatpush1.msra.mxu0 0.0
      %978 = vmatprep.subr.mxu0 0.0
      %979 = vmatpush1.msra.mxu0 0.0
      %980 = vmatprep.subr.mxu0 0.0
      %981 = vmatpush1.msra.mxu0 0.0
      %982 = vmatprep.subr.mxu0 0.0
      %983 = vmatpush1.msra.mxu0 0.0
      %984 = vmatprep.subr.mxu0 0.0
      %985 = vmatpush1.msra.mxu0 0.0
      %986 = vmatprep.subr.mxu0 0.0
      %987 = vmatpush1.msra.mxu0 0.0
      %988 = vmatprep.subr.mxu0 0.0
      %989 = vmatpush1.msra.mxu0 0.0
      %990 = vmatprep.subr.mxu0 0.0
      %991 = vmatpush1.msra.mxu0 0.0
      %992 = vmatprep.subr.mxu0 0.0
      %993 = vmatpush1.msra.mxu0 0.0
      %994 = vmatprep.subr.mxu0 0.0
      %995 = vmatpush1.msra.mxu0 0.0
      %996 = vmatprep.mubr.f32.mxu0 0.0
      %997 = vmatmul.mubr.f32.gmra.mrb[0].mxu0 %v909
      %v998 = vpop.f32.mrb[0].mxu0
      %v999 = vadd.f32 %v905, %v998
      %v1000 = vpop.f32.mrb[0].mxu0
      %1001 = vmatprep.mubr.f32.mxu0 0.0
      %1002 = vmatmul.mubr.f32.gmra.mrb[0].mxu0 %v912
      %v1003 = vpop.f32.mrb[0].mxu0
      %v1004 = vadd.f32 %v905, %v1003
      %v1005 = vpop.f32.mrb[0].mxu0
      %1006 = vmatprep.mubr.f32.mxu0 0.0
      %1007 = vmatmul.mubr.f32.gmra.mrb[0].mxu0 %v915
      %v1008 = vpop.f32.mrb[0].mxu0
      %v1009 = vadd.f32 %v905, %v1008
      %v1010 = vpop.f32.mrb[0].mxu0
      %1011 = vmatprep.mubr.f32.mxu0 0.0
      %1012 = vmatmul.mubr.f32.gmra.mrb[0].mxu0 %v918
      %v1013 = vpop.f32.mrb[0].mxu0
      %v1014 = vadd.f32 %v905, %v1013
      %v1015 = vpop.f32.mrb[0].mxu0
      %1016 = vmatprep.mubr.f32.mxu0 0.0
      %1017 = vmatmul.mubr.f32.gmra.mrb[0].mxu0 %v921
      %v1018 = vpop.f32.mrb[0].mxu0
      %v1019 = vadd.f32 %v905, %v1018
      %v1020 = vpop.f32.mrb[0].mxu0
      %1021 = vmatprep.mubr.f32.mxu0 0.0
      %1022 = vmatmul.mubr.f32.gmra.mrb[0].mxu0 %v924
      %v1023 = vpop.f32.mrb[0].mxu0
      %v1024 = vadd.f32 %v905, %v1023
      %v1025 = vpop.f32.mrb[0].mxu0
      %1026 = vmatprep.mubr.f32.mxu0 0.0
      %1027 = vmatmul.mubr.f32.gmra.mrb[0].mxu0 %v927
      %v1028 = vpop.f32.mrb[0].mxu0
      %v1029 = vadd.f32 %v905, %v1028
      %v1030 = vpop.f32.mrb[0].mxu0
      %1031 = vmatprep.mubr.f32.mxu0 0.0
      %1032 = vmatmul.mubr.f32.gmra.mrb[0].mxu0 %v930
      %v1033 = vpop.f32.mrb[0].mxu0
      %v1034 = vadd.f32 %v905, %v1033
      %v1035 = vpop.f32.mrb[0].mxu0
      %1036 = vdwg.mxu0
      %v1037 = vld [vmem:[%s7] sm:$0xff]
      %v1038 = vld [vmem:[%s7 + $0x8] sm:$0xff]
      %v1039 = vld [vmem:[%s7 + $0x10] sm:$0xff]
      %v1040 = vld [vmem:[%s7 + $0x18] sm:$0xff]
      %v1041 = vld [vmem:[%s8] sm:$0x1]
      %v1043 = vlaneseq
      %v1044 = vshrl.u32 %v1043, 7
      %v1045 = vsub.s32 0, %v1044
      %v1046 = vrot.slane %v1041, %v1045
      %v1049 = vsel %vm907, %v872, 0
      %v1052 = vsel %vm907, %v873, 0
      %v1055 = vsel %vm907, %v874, 0
      %v1058 = vsel %vm907, %v875, 0
      %v1061 = vsel %vm907, %v876, 0
      %v1064 = vsel %vm907, %v877, 0
      %v1067 = vsel %vm907, %v878, 0
      %v1070 = vsel %vm907, %v879, 0
      %1072 = vmatprep.subr.mxu0 0.0
      %1073 = vmatpush1.msra.mxu0 %v1037
      %1074 = vmatprep.subr.mxu0 0.0
      %1075 = vmatpush1.msra.mxu0 %v1038
      %1076 = vmatprep.subr.mxu0 0.0
      %1077 = vmatpush1.msra.mxu0 %v1039
      %1078 = vmatprep.subr.mxu0 0.0
      %1079 = vmatpush1.msra.mxu0 %v1040
      %1080 = vmatprep.subr.mxu0 0.0
      %1081 = vmatpush1.msra.mxu0 0.0
      %1082 = vmatprep.subr.mxu0 0.0
      %1083 = vmatpush1.msra.mxu0 0.0
      %1084 = vmatprep.subr.mxu0 0.0
      %1085 = vmatpush1.msra.mxu0 0.0
      %1086 = vmatprep.subr.mxu0 0.0
      %1087 = vmatpush1.msra.mxu0 0.0
      %1088 = vmatprep.subr.mxu0 0.0
      %1089 = vmatpush1.msra.mxu0 0.0
      %1090 = vmatprep.subr.mxu0 0.0
      %1091 = vmatpush1.msra.mxu0 0.0
      %1092 = vmatprep.subr.mxu0 0.0
      %1093 = vmatpush1.msra.mxu0 0.0
      %1094 = vmatprep.subr.mxu0 0.0
      %1095 = vmatpush1.msra.mxu0 0.0
      %1096 = vmatprep.subr.mxu0 0.0
      %1097 = vmatpush1.msra.mxu0 0.0
      %1098 = vmatprep.subr.mxu0 0.0
      %1099 = vmatpush1.msra.mxu0 0.0
      %1100 = vmatprep.subr.mxu0 0.0
      %1101 = vmatpush1.msra.mxu0 0.0
      %1102 = vmatprep.subr.mxu0 0.0
      %1103 = vmatpush1.msra.mxu0 0.0
      %1104 = vmatprep.subr.mxu0 0.0
      %1105 = vmatpush1.msra.mxu0 0.0
      %1106 = vmatprep.subr.mxu0 0.0
      %1107 = vmatpush1.msra.mxu0 0.0
      %1108 = vmatprep.subr.mxu0 0.0
      %1109 = vmatpush1.msra.mxu0 0.0
      %1110 = vmatprep.subr.mxu0 0.0
      %1111 = vmatpush1.msra.mxu0 0.0
      %1112 = vmatprep.subr.mxu0 0.0
      %1113 = vmatpush1.msra.mxu0 0.0
      %1114 = vmatprep.subr.mxu0 0.0
      %1115 = vmatpush1.msra.mxu0 0.0
      %1116 = vmatprep.subr.mxu0 0.0
      %1117 = vmatpush1.msra.mxu0 0.0
      %1118 = vmatprep.subr.mxu0 0.0
      %1119 = vmatpush1.msra.mxu0 0.0
      %1120 = vmatprep.subr.mxu0 0.0
      %1121 = vmatpush1.msra.mxu0 0.0
      %1122 = vmatprep.subr.mxu0 0.0
      %1123 = vmatpush1.msra.mxu0 0.0
      %1124 = vmatprep.subr.mxu0 0.0
      %1125 = vmatpush1.msra.mxu0 0.0
      %1126 = vmatprep.subr.mxu0 0.0
      %1127 = vmatpush1.msra.mxu0 0.0
      %1128 = vmatprep.subr.mxu0 0.0
      %1129 = vmatpush1.msra.mxu0 0.0
      %1130 = vmatprep.subr.mxu0 0.0
      %1131 = vmatpush1.msra.mxu0 0.0
      %1132 = vmatprep.subr.mxu0 0.0
      %1133 = vmatpush1.msra.mxu0 0.0
      %1134 = vmatprep.subr.mxu0 0.0
      %1135 = vmatpush1.msra.mxu0 0.0
      %1136 = vmatprep.mubr.f32.mxu0 0.0
      %1137 = vmatmul.mubr.f32.gmra.mrb[0].mxu0 %v1049
      %v1138 = vpop.f32.mrb[0].mxu0
      %v1139 = vadd.f32 %v1046, %v1138
      %v1140 = vpop.f32.mrb[0].mxu0
      %1141 = vmatprep.mubr.f32.mxu0 0.0
      %1142 = vmatmul.mubr.f32.gmra.mrb[0].mxu0 %v1052
      %v1143 = vpop.f32.mrb[0].mxu0
      %v1144 = vadd.f32 %v1046, %v1143
      %v1145 = vpop.f32.mrb[0].mxu0
      %1146 = vmatprep.mubr.f32.mxu0 0.0
      %1147 = vmatmul.mubr.f32.gmra.mrb[0].mxu0 %v1055
      %v1148 = vpop.f32.mrb[0].mxu0
      %v1149 = vadd.f32 %v1046, %v1148
      %v1150 = vpop.f32.mrb[0].mxu0
      %1151 = vmatprep.mubr.f32.mxu0 0.0
      %1152 = vmatmul.mubr.f32.gmra.mrb[0].mxu0 %v1058
      %v1153 = vpop.f32.mrb[0].mxu0
      %v1154 = vadd.f32 %v1046, %v1153
      %v1155 = vpop.f32.mrb[0].mxu0
      %1156 = vmatprep.mubr.f32.mxu0 0.0
      %1157 = vmatmul.mubr.f32.gmra.mrb[0].mxu0 %v1061
      %v1158 = vpop.f32.mrb[0].mxu0
      %v1159 = vadd.f32 %v1046, %v1158
      %v1160 = vpop.f32.mrb[0].mxu0
      %1161 = vmatprep.mubr.f32.mxu0 0.0
      %1162 = vmatmul.mubr.f32.gmra.mrb[0].mxu0 %v1064
      %v1163 = vpop.f32.mrb[0].mxu0
      %v1164 = vadd.f32 %v1046, %v1163
      %v1165 = vpop.f32.mrb[0].mxu0
      %1166 = vmatprep.mubr.f32.mxu0 0.0
      %1167 = vmatmul.mubr.f32.gmra.mrb[0].mxu0 %v1067
      %v1168 = vpop.f32.mrb[0].mxu0
      %v1169 = vadd.f32 %v1046, %v1168
      %v1170 = vpop.f32.mrb[0].mxu0
      %1171 = vmatprep.mubr.f32.mxu0 0.0
      %1172 = vmatmul.mubr.f32.gmra.mrb[0].mxu0 %v1070
      %v1173 = vpop.f32.mrb[0].mxu0
      %v1174 = vadd.f32 %v1046, %v1173
      %v1175 = vpop.f32.mrb[0].mxu0
      %1176 = vdwg.mxu0
      %1185 = vrot.lane.b32.xlu0 %v999, 96
      %v1186 = vpop.permute.xlu0 %1185
      %1187 = vrot.lane.b32.xlu0 %v1004, 96
      %v1188 = vpop.permute.xlu0 %1187
      %1189 = vrot.lane.b32.xlu0 %v1009, 96
      %v1190 = vpop.permute.xlu0 %1189
      %1191 = vrot.lane.b32.xlu0 %v1014, 96
      %v1192 = vpop.permute.xlu0 %1191
      %1193 = vrot.lane.b32.xlu0 %v1019, 96
      %v1194 = vpop.permute.xlu0 %1193
      %1195 = vrot.lane.b32.xlu0 %v1024, 96
      %v1196 = vpop.permute.xlu0 %1195
      %1197 = vrot.lane.b32.xlu0 %v1029, 96
      %v1198 = vpop.permute.xlu0 %1197
      %1199 = vrot.lane.b32.xlu0 %v1034, 96
      %v1200 = vpop.permute.xlu0 %1199
      %v1201 = vsel %vm907, %v999, 0
      %v1203 = vsel %vm907, %v1004, 0
      %v1205 = vsel %vm907, %v1009, 0
      %v1207 = vsel %vm907, %v1014, 0
      %v1209 = vsel %vm907, %v1019, 0
      %v1211 = vsel %vm907, %v1024, 0
      %v1213 = vsel %vm907, %v1029, 0
      %v1215 = vsel %vm907, %v1034, 0
      %v1217 = vsel %vm907, %v1186, 0
      %v1219 = vsel %vm907, %v1188, 0
      %v1221 = vsel %vm907, %v1190, 0
      %v1223 = vsel %vm907, %v1192, 0
      %v1225 = vsel %vm907, %v1194, 0
      %v1227 = vsel %vm907, %v1196, 0
      %v1229 = vsel %vm907, %v1198, 0
      %v1231 = vsel %vm907, %v1200, 0
      %1233 = vmatprep.subr.mxu0 0.0
      %1234 = vmatpush1.xpose.msra.mxu0 %v1217
      %1235 = vmatprep.subr.mxu0 0.0
      %1236 = vmatpush1.xpose.msra.mxu0 %v1219
      %1237 = vmatprep.subr.mxu0 0.0
      %1238 = vmatpush1.xpose.msra.mxu0 %v1221
      %1239 = vmatprep.subr.mxu0 0.0
      %1240 = vmatpush1.xpose.msra.mxu0 %v1223
      %1241 = vmatprep.subr.mxu0 0.0
      %1242 = vmatpush1.xpose.msra.mxu0 %v1225
      %1243 = vmatprep.subr.mxu0 0.0
      %1244 = vmatpush1.xpose.msra.mxu0 %v1227
      %1245 = vmatprep.subr.mxu0 0.0
      %1246 = vmatpush1.xpose.msra.mxu0 %v1229
      %1247 = vmatprep.subr.mxu0 0.0
      %1248 = vmatpush1.xpose.msra.mxu0 %v1231
      %1249 = vmatprep.subr.mxu0 0.0
      %1250 = vmatpush1.xpose.msra.mxu0 0.0
      %1251 = vmatprep.subr.mxu0 0.0
      %1252 = vmatpush1.xpose.msra.mxu0 0.0
      %1253 = vmatprep.subr.mxu0 0.0
      %1254 = vmatpush1.xpose.msra.mxu0 0.0
      %1255 = vmatprep.subr.mxu0 0.0
      %1256 = vmatpush1.xpose.msra.mxu0 0.0
      %1257 = vmatprep.subr.mxu0 0.0
      %1258 = vmatpush1.xpose.msra.mxu0 0.0
      %1259 = vmatprep.subr.mxu0 0.0
      %1260 = vmatpush1.xpose.msra.mxu0 0.0
      %1261 = vmatprep.subr.mxu0 0.0
      %1262 = vmatpush1.xpose.msra.mxu0 0.0
      %1263 = vmatprep.subr.mxu0 0.0
      %1264 = vmatpush1.xpose.msra.mxu0 0.0
      %1265 = vmatprep.subr.mxu0 0.0
      %1266 = vmatpush1.xpose.msra.mxu0 0.0
      %1267 = vmatprep.subr.mxu0 0.0
      %1268 = vmatpush1.xpose.msra.mxu0 0.0
      %1269 = vmatprep.subr.mxu0 0.0
      %1270 = vmatpush1.xpose.msra.mxu0 0.0
      %1271 = vmatprep.subr.mxu0 0.0
      %1272 = vmatpush1.xpose.msra.mxu0 0.0
      %1273 = vmatprep.subr.mxu0 0.0
      %1274 = vmatpush1.xpose.msra.mxu0 0.0
      %1275 = vmatprep.subr.mxu0 0.0
      %1276 = vmatpush1.xpose.msra.mxu0 0.0
      %1277 = vmatprep.subr.mxu0 0.0
      %1278 = vmatpush1.xpose.msra.mxu0 0.0
      %1279 = vmatprep.subr.mxu0 0.0
      %1280 = vmatpush1.xpose.msra.mxu0 0.0
      %1281 = vmatprep.subr.mxu0 0.0
      %1282 = vmatpush1.xpose.msra.mxu0 0.0
      %1283 = vmatprep.subr.mxu0 0.0
      %1284 = vmatpush1.xpose.msra.mxu0 0.0
      %1285 = vmatprep.subr.mxu0 0.0
      %1286 = vmatpush1.xpose.msra.mxu0 0.0
      %1287 = vmatprep.subr.mxu0 0.0
      %1288 = vmatpush1.xpose.msra.mxu0 0.0
      %1289 = vmatprep.subr.mxu0 0.0
      %1290 = vmatpush1.xpose.msra.mxu0 0.0
      %1291 = vmatprep.subr.mxu0 0.0
      %1292 = vmatpush1.xpose.msra.mxu0 0.0
      %1293 = vmatprep.subr.mxu0 0.0
      %1294 = vmatpush1.xpose.msra.mxu0 0.0
      %1295 = vmatprep.subr.mxu0 0.0
      %1296 = vmatpush1.xpose.msra.mxu0 0.0
      %1297 = vmatprep.mubr.f32.mxu0 0.0
      %1298 = vmatmul.mubr.f32.gmra.mrb[0].mxu0 %v1201
      %v1299 = vpop.f32.mrb[0].mxu0
      %v1300 = vadd.f32 0.0, %v1299
      %v1301 = vpop.f32.mrb[0].mxu0
      %1302 = vmatprep.mubr.f32.mxu0 0.0
      %1303 = vmatmul.mubr.f32.gmra.mrb[0].mxu0 %v1203
      %v1304 = vpop.f32.mrb[0].mxu0
      %v1305 = vadd.f32 0.0, %v1304
      %v1306 = vpop.f32.mrb[0].mxu0
      %1307 = vmatprep.mubr.f32.mxu0 0.0
      %1308 = vmatmul.mubr.f32.gmra.mrb[0].mxu0 %v1205
      %v1309 = vpop.f32.mrb[0].mxu0
      %v1310 = vadd.f32 0.0, %v1309
      %v1311 = vpop.f32.mrb[0].mxu0
      %1312 = vmatprep.mubr.f32.mxu0 0.0
      %1313 = vmatmul.mubr.f32.gmra.mrb[0].mxu0 %v1207
      %v1314 = vpop.f32.mrb[0].mxu0
      %v1315 = vadd.f32 0.0, %v1314
      %v1316 = vpop.f32.mrb[0].mxu0
      %1317 = vmatprep.mubr.f32.mxu0 0.0
      %1318 = vmatmul.mubr.f32.gmra.mrb[0].mxu0 %v1209
      %v1319 = vpop.f32.mrb[0].mxu0
      %v1320 = vadd.f32 0.0, %v1319
      %v1321 = vpop.f32.mrb[0].mxu0
      %1322 = vmatprep.mubr.f32.mxu0 0.0
      %1323 = vmatmul.mubr.f32.gmra.mrb[0].mxu0 %v1211
      %v1324 = vpop.f32.mrb[0].mxu0
      %v1325 = vadd.f32 0.0, %v1324
      %v1326 = vpop.f32.mrb[0].mxu0
      %1327 = vmatprep.mubr.f32.mxu0 0.0
      %1328 = vmatmul.mubr.f32.gmra.mrb[0].mxu0 %v1213
      %v1329 = vpop.f32.mrb[0].mxu0
      %v1330 = vadd.f32 0.0, %v1329
      %v1331 = vpop.f32.mrb[0].mxu0
      %1332 = vmatprep.mubr.f32.mxu0 0.0
      %1333 = vmatmul.mubr.f32.gmra.mrb[0].mxu0 %v1215
      %v1334 = vpop.f32.mrb[0].mxu0
      %v1335 = vadd.f32 0.0, %v1334
      %v1336 = vpop.f32.mrb[0].mxu0
      %1337 = vdwg.mxu0
      %v1338 = vmul.f32 %v1300, 0.17677669
      %v1339 = vmul.f32 %v1305, 0.17677669
      %v1340 = vmul.f32 %v1310, 0.17677669
      %v1341 = vmul.f32 %v1315, 0.17677669
      %v1342 = vmul.f32 %v1320, 0.17677669
      %v1343 = vmul.f32 %v1325, 0.17677669
      %v1344 = vmul.f32 %v1330, 0.17677669
      %v1345 = vmul.f32 %v1335, 0.17677669
      %vm1346 = vcmask 523264
      %v1347 = vsel %vm1346, %v1338, -inf
      %1348 = vmax.xlane.f32.xlu0 %v1347
      %v1349 = vpop.xlane.xlu0 %1348
      %v1350 = vsel %vm1346, %v1339, -inf
      %1351 = vmax.xlane.f32.xlu0 %v1350
      %v1352 = vpop.xlane.xlu0 %1351
      %v1353 = vsel %vm1346, %v1340, -inf
      %1354 = vmax.xlane.f32.xlu0 %v1353
      %v1355 = vpop.xlane.xlu0 %1354
      %v1356 = vsel %vm1346, %v1341, -inf
      %1357 = vmax.xlane.f32.xlu0 %v1356
      %v1358 = vpop.xlane.xlu0 %1357
      %v1359 = vsel %vm1346, %v1342, -inf
      %1360 = vmax.xlane.f32.xlu0 %v1359
      %v1361 = vpop.xlane.xlu0 %1360
      %v1362 = vsel %vm1346, %v1343, -inf
      %1363 = vmax.xlane.f32.xlu0 %v1362
      %v1364 = vpop.xlane.xlu0 %1363
      %v1365 = vsel %vm1346, %v1344, -inf
      %1366 = vmax.xlane.f32.xlu0 %v1365
      %v1367 = vpop.xlane.xlu0 %1366
      %v1368 = vsel %vm1346, %v1345, -inf
      %1369 = vmax.xlane.f32.xlu0 %v1368
      %v1370 = vpop.xlane.xlu0 %1369
      %v1371 = vsub.f32 %v1338, %v1349
      %v1372 = vsub.f32 %v1339, %v1352
      %v1373 = vsub.f32 %v1340, %v1355
      %v1374 = vsub.f32 %v1341, %v1358
      %v1375 = vsub.f32 %v1342, %v1361
      %v1376 = vsub.f32 %v1343, %v1364
      %v1377 = vsub.f32 %v1344, %v1367
      %v1378 = vsub.f32 %v1345, %v1370
      %v1379 = vmul.f32 %v1371, 1.442695
      %v1380 = vpow.pop %v1379
      %v1381 = vmul.f32 %v1372, 1.442695
      %v1382 = vpow.pop %v1381
      %v1383 = vmul.f32 %v1373, 1.442695
      %v1384 = vpow.pop %v1383
      %v1385 = vmul.f32 %v1374, 1.442695
      %v1386 = vpow.pop %v1385
      %v1387 = vmul.f32 %v1375, 1.442695
      %v1388 = vpow.pop %v1387
      %v1389 = vmul.f32 %v1376, 1.442695
      %v1390 = vpow.pop %v1389
      %v1391 = vmul.f32 %v1377, 1.442695
      %v1392 = vpow.pop %v1391
      %v1393 = vmul.f32 %v1378, 1.442695
      %v1394 = vpow.pop %v1393
      %v1395 = vsel %vm1346, %v1380, 0.0
      %1396 = vadd.xlane.f32.xlu0 %v1395
      %v1397 = vpop.xlane.xlu0 %1396
      %v1398 = vsel %vm1346, %v1382, 0.0
      %1399 = vadd.xlane.f32.xlu0 %v1398
      %v1400 = vpop.xlane.xlu0 %1399
      %v1401 = vsel %vm1346, %v1384, 0.0
      %1402 = vadd.xlane.f32.xlu0 %v1401
      %v1403 = vpop.xlane.xlu0 %1402
      %v1404 = vsel %vm1346, %v1386, 0.0
      %1405 = vadd.xlane.f32.xlu0 %v1404
      %v1406 = vpop.xlane.xlu0 %1405
      %v1407 = vsel %vm1346, %v1388, 0.0
      %1408 = vadd.xlane.f32.xlu0 %v1407
      %v1409 = vpop.xlane.xlu0 %1408
      %v1410 = vsel %vm1346, %v1390, 0.0
      %1411 = vadd.xlane.f32.xlu0 %v1410
      %v1412 = vpop.xlane.xlu0 %1411
      %v1413 = vsel %vm1346, %v1392, 0.0
      %1414 = vadd.xlane.f32.xlu0 %v1413
      %v1415 = vpop.xlane.xlu0 %1414
      %v1416 = vsel %vm1346, %v1394, 0.0
      %1417 = vadd.xlane.f32.xlu0 %v1416
      %v1418 = vpop.xlane.xlu0 %1417
      %v1419 = vrcp.pop %v1397
      %v1420 = vrcp.pop %v1400
      %v1421 = vrcp.pop %v1403
      %v1422 = vrcp.pop %v1406
      %v1423 = vrcp.pop %v1409
      %v1424 = vrcp.pop %v1412
      %v1425 = vrcp.pop %v1415
      %v1426 = vrcp.pop %v1418
      %v1427 = vmul.f32 %v1380, %v1419
      %v1428 = vmul.f32 %v1382, %v1420
      %v1429 = vmul.f32 %v1384, %v1421
      %v1430 = vmul.f32 %v1386, %v1422
      %v1431 = vmul.f32 %v1388, %v1423
      %v1432 = vmul.f32 %v1390, %v1424
      %v1433 = vmul.f32 %v1392, %v1425
      %v1434 = vmul.f32 %v1394, %v1426
      %v1436 = vsel %vm1346, %v1427, 0
      %v1439 = vsel %vm1346, %v1428, 0
      %v1442 = vsel %vm1346, %v1429, 0
      %v1445 = vsel %vm1346, %v1430, 0
      %v1448 = vsel %vm1346, %v1431, 0
      %v1451 = vsel %vm1346, %v1432, 0
      %v1454 = vsel %vm1346, %v1433, 0
      %v1457 = vsel %vm1346, %v1434, 0
      %1459 = vmatprep.subr.mxu0 0.0
      %1460 = vmatpush1.msra.mxu0 %v1139
      %1461 = vmatprep.subr.mxu0 0.0
      %1462 = vmatpush1.msra.mxu0 %v1144
      %1463 = vmatprep.subr.mxu0 0.0
      %1464 = vmatpush1.msra.mxu0 %v1149
      %1465 = vmatprep.subr.mxu0 0.0
      %1466 = vmatpush1.msra.mxu0 %v1154
      %1467 = vmatprep.subr.mxu0 0.0
      %1468 = vmatpush1.msra.mxu0 %v1159
      %1469 = vmatprep.subr.mxu0 0.0
      %1470 = vmatpush1.msra.mxu0 %v1164
      %1471 = vmatprep.subr.mxu0 0.0
      %1472 = vmatpush1.msra.mxu0 %v1169
      %1473 = vmatprep.subr.mxu0 0.0
      %1474 = vmatpush1.msra.mxu0 %v1174
      %1475 = vmatprep.subr.mxu0 0.0
      %1476 = vmatpush1.msra.mxu0 0.0
      %1477 = vmatprep.subr.mxu0 0.0
      %1478 = vmatpush1.msra.mxu0 0.0
      %1479 = vmatprep.subr.mxu0 0.0
      %1480 = vmatpush1.msra.mxu0 0.0
      %1481 = vmatprep.subr.mxu0 0.0
      %1482 = vmatpush1.msra.mxu0 0.0
      %1483 = vmatprep.subr.mxu0 0.0
      %1484 = vmatpush1.msra.mxu0 0.0
      %1485 = vmatprep.subr.mxu0 0.0
      %1486 = vmatpush1.msra.mxu0 0.0
      %1487 = vmatprep.subr.mxu0 0.0
      %1488 = vmatpush1.msra.mxu0 0.0
      %1489 = vmatprep.subr.mxu0 0.0
      %1490 = vmatpush1.msra.mxu0 0.0
      %1491 = vmatprep.subr.mxu0 0.0
      %1492 = vmatpush1.msra.mxu0 0.0
      %1493 = vmatprep.subr.mxu0 0.0
      %1494 = vmatpush1.msra.mxu0 0.0
      %1495 = vmatprep.subr.mxu0 0.0
      %1496 = vmatpush1.msra.mxu0 0.0
      %1497 = vmatprep.subr.mxu0 0.0
      %1498 = vmatpush1.msra.mxu0 0.0
      %1499 = vmatprep.subr.mxu0 0.0
      %1500 = vmatpush1.msra.mxu0 0.0
      %1501 = vmatprep.subr.mxu0 0.0
      %1502 = vmatpush1.msra.mxu0 0.0
      %1503 = vmatprep.subr.mxu0 0.0
      %1504 = vmatpush1.msra.mxu0 0.0
      %1505 = vmatprep.subr.mxu0 0.0
      %1506 = vmatpush1.msra.mxu0 0.0
      %1507 = vmatprep.subr.mxu0 0.0
      %1508 = vmatpush1.msra.mxu0 0.0
      %1509 = vmatprep.subr.mxu0 0.0
      %1510 = vmatpush1.msra.mxu0 0.0
      %1511 = vmatprep.subr.mxu0 0.0
      %1512 = vmatpush1.msra.mxu0 0.0
      %1513 = vmatprep.subr.mxu0 0.0
      %1514 = vmatpush1.msra.mxu0 0.0
      %1515 = vmatprep.subr.mxu0 0.0
      %1516 = vmatpush1.msra.mxu0 0.0
      %1517 = vmatprep.subr.mxu0 0.0
      %1518 = vmatpush1.msra.mxu0 0.0
      %1519 = vmatprep.subr.mxu0 0.0
      %1520 = vmatpush1.msra.mxu0 0.0
      %1521 = vmatprep.subr.mxu0 0.0
      %1522 = vmatpush1.msra.mxu0 0.0
      %1523 = vmatprep.mubr.f32.mxu0 0.0
      %1524 = vmatmul.mubr.f32.gmra.mrb[0].mxu0 %v1436
      %v1525 = vpop.f32.mrb[0].mxu0
      %v1526 = vadd.f32 0.0, %v1525
      %v1527 = vpop.f32.mrb[0].mxu0
      %1528 = vmatprep.mubr.f32.mxu0 0.0
      %1529 = vmatmul.mubr.f32.gmra.mrb[0].mxu0 %v1439
      %v1530 = vpop.f32.mrb[0].mxu0
      %v1531 = vadd.f32 0.0, %v1530
      %v1532 = vpop.f32.mrb[0].mxu0
      %1533 = vmatprep.mubr.f32.mxu0 0.0
      %1534 = vmatmul.mubr.f32.gmra.mrb[0].mxu0 %v1442
      %v1535 = vpop.f32.mrb[0].mxu0
      %v1536 = vadd.f32 0.0, %v1535
      %v1537 = vpop.f32.mrb[0].mxu0
      %1538 = vmatprep.mubr.f32.mxu0 0.0
      %1539 = vmatmul.mubr.f32.gmra.mrb[0].mxu0 %v1445
      %v1540 = vpop.f32.mrb[0].mxu0
      %v1541 = vadd.f32 0.0, %v1540
      %v1542 = vpop.f32.mrb[0].mxu0
      %1543 = vmatprep.mubr.f32.mxu0 0.0
      %1544 = vmatmul.mubr.f32.gmra.mrb[0].mxu0 %v1448
      %v1545 = vpop.f32.mrb[0].mxu0
      %v1546 = vadd.f32 0.0, %v1545
      %v1547 = vpop.f32.mrb[0].mxu0
      %1548 = vmatprep.mubr.f32.mxu0 0.0
      %1549 = vmatmul.mubr.f32.gmra.mrb[0].mxu0 %v1451
      %v1550 = vpop.f32.mrb[0].mxu0
      %v1551 = vadd.f32 0.0, %v1550
      %v1552 = vpop.f32.mrb[0].mxu0
      %1553 = vmatprep.mubr.f32.mxu0 0.0
      %1554 = vmatmul.mubr.f32.gmra.mrb[0].mxu0 %v1454
      %v1555 = vpop.f32.mrb[0].mxu0
      %v1556 = vadd.f32 0.0, %v1555
      %v1557 = vpop.f32.mrb[0].mxu0
      %1558 = vmatprep.mubr.f32.mxu0 0.0
      %1559 = vmatmul.mubr.f32.gmra.mrb[0].mxu0 %v1457
      %v1560 = vpop.f32.mrb[0].mxu0
      %v1561 = vadd.f32 0.0, %v1560
      %v1562 = vpop.f32.mrb[0].mxu0
      %1563 = vdwg.mxu0
      %v1564 = vld [vmem:[%s9] sm:$0xff]
      %v1565 = vld [vmem:[%s9 + $0x8] sm:$0xff]
      %v1566 = vld [vmem:[%s9 + $0x10] sm:$0xff]
      %v1567 = vld [vmem:[%s9 + $0x18] sm:$0xff]
      %v1568 = vld [vmem:[%s10] sm:$0x1]
      %v1570 = vlaneseq
      %v1571 = vshrl.u32 %v1570, 7
      %v1572 = vsub.s32 0, %v1571
      %v1573 = vrot.slane %v1568, %v1572
      %v1576 = vsel %vm907, %v1526, 0
      %v1579 = vsel %vm907, %v1531, 0
      %v1582 = vsel %vm907, %v1536, 0
      %v1585 = vsel %vm907, %v1541, 0
      %v1588 = vsel %vm907, %v1546, 0
      %v1591 = vsel %vm907, %v1551, 0
      %v1594 = vsel %vm907, %v1556, 0
      %v1597 = vsel %vm907, %v1561, 0
      %1599 = vmatprep.subr.mxu0 0.0
      %1600 = vmatpush1.msra.mxu0 %v1564
      %1601 = vmatprep.subr.mxu0 0.0
      %1602 = vmatpush1.msra.mxu0 %v1565
      %1603 = vmatprep.subr.mxu0 0.0
      %1604 = vmatpush1.msra.mxu0 %v1566
      %1605 = vmatprep.subr.mxu0 0.0
      %1606 = vmatpush1.msra.mxu0 %v1567
      %1607 = vmatprep.subr.mxu0 0.0
      %1608 = vmatpush1.msra.mxu0 0.0
      %1609 = vmatprep.subr.mxu0 0.0
      %1610 = vmatpush1.msra.mxu0 0.0
      %1611 = vmatprep.subr.mxu0 0.0
      %1612 = vmatpush1.msra.mxu0 0.0
      %1613 = vmatprep.subr.mxu0 0.0
      %1614 = vmatpush1.msra.mxu0 0.0
      %1615 = vmatprep.subr.mxu0 0.0
      %1616 = vmatpush1.msra.mxu0 0.0
      %1617 = vmatprep.subr.mxu0 0.0
      %1618 = vmatpush1.msra.mxu0 0.0
      %1619 = vmatprep.subr.mxu0 0.0
      %1620 = vmatpush1.msra.mxu0 0.0
      %1621 = vmatprep.subr.mxu0 0.0
      %1622 = vmatpush1.msra.mxu0 0.0
      %1623 = vmatprep.subr.mxu0 0.0
      %1624 = vmatpush1.msra.mxu0 0.0
      %1625 = vmatprep.subr.mxu0 0.0
      %1626 = vmatpush1.msra.mxu0 0.0
      %1627 = vmatprep.subr.mxu0 0.0
      %1628 = vmatpush1.msra.mxu0 0.0
      %1629 = vmatprep.subr.mxu0 0.0
      %1630 = vmatpush1.msra.mxu0 0.0
      %1631 = vmatprep.subr.mxu0 0.0
      %1632 = vmatpush1.msra.mxu0 0.0
      %1633 = vmatprep.subr.mxu0 0.0
      %1634 = vmatpush1.msra.mxu0 0.0
      %1635 = vmatprep.subr.mxu0 0.0
      %1636 = vmatpush1.msra.mxu0 0.0
      %1637 = vmatprep.subr.mxu0 0.0
      %1638 = vmatpush1.msra.mxu0 0.0
      %1639 = vmatprep.subr.mxu0 0.0
      %1640 = vmatpush1.msra.mxu0 0.0
      %1641 = vmatprep.subr.mxu0 0.0
      %1642 = vmatpush1.msra.mxu0 0.0
      %1643 = vmatprep.subr.mxu0 0.0
      %1644 = vmatpush1.msra.mxu0 0.0
      %1645 = vmatprep.subr.mxu0 0.0
      %1646 = vmatpush1.msra.mxu0 0.0
      %1647 = vmatprep.subr.mxu0 0.0
      %1648 = vmatpush1.msra.mxu0 0.0
      %1649 = vmatprep.subr.mxu0 0.0
      %1650 = vmatpush1.msra.mxu0 0.0
      %1651 = vmatprep.subr.mxu0 0.0
      %1652 = vmatpush1.msra.mxu0 0.0
      %1653 = vmatprep.subr.mxu0 0.0
      %1654 = vmatpush1.msra.mxu0 0.0
      %1655 = vmatprep.subr.mxu0 0.0
      %1656 = vmatpush1.msra.mxu0 0.0
      %1657 = vmatprep.subr.mxu0 0.0
      %1658 = vmatpush1.msra.mxu0 0.0
      %1659 = vmatprep.subr.mxu0 0.0
      %1660 = vmatpush1.msra.mxu0 0.0
      %1661 = vmatprep.subr.mxu0 0.0
      %1662 = vmatpush1.msra.mxu0 0.0
      %1663 = vmatprep.mubr.f32.mxu0 0.0
      %1664 = vmatmul.mubr.f32.gmra.mrb[0].mxu0 %v1576
      %v1665 = vpop.f32.mrb[0].mxu0
      %v1666 = vadd.f32 %v1573, %v1665
      %v1667 = vpop.f32.mrb[0].mxu0
      %1668 = vmatprep.mubr.f32.mxu0 0.0
      %1669 = vmatmul.mubr.f32.gmra.mrb[0].mxu0 %v1579
      %v1670 = vpop.f32.mrb[0].mxu0
      %v1671 = vadd.f32 %v1573, %v1670
      %v1672 = vpop.f32.mrb[0].mxu0
      %1673 = vmatprep.mubr.f32.mxu0 0.0
      %1674 = vmatmul.mubr.f32.gmra.mrb[0].mxu0 %v1582
      %v1675 = vpop.f32.mrb[0].mxu0
      %v1676 = vadd.f32 %v1573, %v1675
      %v1677 = vpop.f32.mrb[0].mxu0
      %1678 = vmatprep.mubr.f32.mxu0 0.0
      %1679 = vmatmul.mubr.f32.gmra.mrb[0].mxu0 %v1585
      %v1680 = vpop.f32.mrb[0].mxu0
      %v1681 = vadd.f32 %v1573, %v1680
      %v1682 = vpop.f32.mrb[0].mxu0
      %1683 = vmatprep.mubr.f32.mxu0 0.0
      %1684 = vmatmul.mubr.f32.gmra.mrb[0].mxu0 %v1588
      %v1685 = vpop.f32.mrb[0].mxu0
      %v1686 = vadd.f32 %v1573, %v1685
      %v1687 = vpop.f32.mrb[0].mxu0
      %1688 = vmatprep.mubr.f32.mxu0 0.0
      %1689 = vmatmul.mubr.f32.gmra.mrb[0].mxu0 %v1591
      %v1690 = vpop.f32.mrb[0].mxu0
      %v1691 = vadd.f32 %v1573, %v1690
      %v1692 = vpop.f32.mrb[0].mxu0
      %1693 = vmatprep.mubr.f32.mxu0 0.0
      %1694 = vmatmul.mubr.f32.gmra.mrb[0].mxu0 %v1594
      %v1695 = vpop.f32.mrb[0].mxu0
      %v1696 = vadd.f32 %v1573, %v1695
      %v1697 = vpop.f32.mrb[0].mxu0
      %1698 = vmatprep.mubr.f32.mxu0 0.0
      %1699 = vmatmul.mubr.f32.gmra.mrb[0].mxu0 %v1597
      %v1700 = vpop.f32.mrb[0].mxu0
      %v1701 = vadd.f32 %v1573, %v1700
      %v1702 = vpop.f32.mrb[0].mxu0
      %1703 = vdwg.mxu0
      %v1704 = vadd.f32 %v872, %v1666
      %v1705 = vadd.f32 %v873, %v1671
      %v1706 = vadd.f32 %v874, %v1676
      %v1707 = vadd.f32 %v875, %v1681
      %v1708 = vadd.f32 %v876, %v1686
      %v1709 = vadd.f32 %v877, %v1691
      %v1710 = vadd.f32 %v878, %v1696
      %v1711 = vadd.f32 %v879, %v1701
      %v1712 = vld [vmem:[%s15] sm:$0x1]
      %v1713 = vld [vmem:[%s16] sm:$0x1]
      %v1714 = vsel %vm907, %v1704, 0.0
      %1715 = vadd.xlane.f32.xlu0 %v1714
      %v1716 = vpop.xlane.xlu0 %1715
      %v1717 = vsel %vm907, %v1705, 0.0
      %1718 = vadd.xlane.f32.xlu0 %v1717
      %v1719 = vpop.xlane.xlu0 %1718
      %v1720 = vsel %vm907, %v1706, 0.0
      %1721 = vadd.xlane.f32.xlu0 %v1720
      %v1722 = vpop.xlane.xlu0 %1721
      %v1723 = vsel %vm907, %v1707, 0.0
      %1724 = vadd.xlane.f32.xlu0 %v1723
      %v1725 = vpop.xlane.xlu0 %1724
      %v1726 = vsel %vm907, %v1708, 0.0
      %1727 = vadd.xlane.f32.xlu0 %v1726
      %v1728 = vpop.xlane.xlu0 %1727
      %v1729 = vsel %vm907, %v1709, 0.0
      %1730 = vadd.xlane.f32.xlu0 %v1729
      %v1731 = vpop.xlane.xlu0 %1730
      %v1732 = vsel %vm907, %v1710, 0.0
      %1733 = vadd.xlane.f32.xlu0 %v1732
      %v1734 = vpop.xlane.xlu0 %1733
      %v1735 = vsel %vm907, %v1711, 0.0
      %1736 = vadd.xlane.f32.xlu0 %v1735
      %v1737 = vpop.xlane.xlu0 %1736
      %v1738 = vrcp.pop 32.0
      %v1739 = vmul.f32 %v1716, %v1738
      %v1740 = vmul.f32 %v1719, %v1738
      %v1741 = vmul.f32 %v1722, %v1738
      %v1742 = vmul.f32 %v1725, %v1738
      %v1743 = vmul.f32 %v1728, %v1738
      %v1744 = vmul.f32 %v1731, %v1738
      %v1745 = vmul.f32 %v1734, %v1738
      %v1746 = vmul.f32 %v1737, %v1738
      %v1747 = vsub.f32 %v1704, %v1739
      %v1748 = vsub.f32 %v1705, %v1740
      %v1749 = vsub.f32 %v1706, %v1741
      %v1750 = vsub.f32 %v1707, %v1742
      %v1751 = vsub.f32 %v1708, %v1743
      %v1752 = vsub.f32 %v1709, %v1744
      %v1753 = vsub.f32 %v1710, %v1745
      %v1754 = vsub.f32 %v1711, %v1746
      %v1755 = vmul.f32 %v1747, %v1747
      %v1756 = vmul.f32 %v1748, %v1748
      %v1757 = vmul.f32 %v1749, %v1749
      %v1758 = vmul.f32 %v1750, %v1750
      %v1759 = vmul.f32 %v1751, %v1751
      %v1760 = vmul.f32 %v1752, %v1752
      %v1761 = vmul.f32 %v1753, %v1753
      %v1762 = vmul.f32 %v1754, %v1754
      %v1763 = vsel %vm907, %v1755, 0.0
      %1764 = vadd.xlane.f32.xlu0 %v1763
      %v1765 = vpop.xlane.xlu0 %1764
      %v1766 = vsel %vm907, %v1756, 0.0
      %1767 = vadd.xlane.f32.xlu0 %v1766
      %v1768 = vpop.xlane.xlu0 %1767
      %v1769 = vsel %vm907, %v1757, 0.0
      %1770 = vadd.xlane.f32.xlu0 %v1769
      %v1771 = vpop.xlane.xlu0 %1770
      %v1772 = vsel %vm907, %v1758, 0.0
      %1773 = vadd.xlane.f32.xlu0 %v1772
      %v1774 = vpop.xlane.xlu0 %1773
      %v1775 = vsel %vm907, %v1759, 0.0
      %1776 = vadd.xlane.f32.xlu0 %v1775
      %v1777 = vpop.xlane.xlu0 %1776
      %v1778 = vsel %vm907, %v1760, 0.0
      %1779 = vadd.xlane.f32.xlu0 %v1778
      %v1780 = vpop.xlane.xlu0 %1779
      %v1781 = vsel %vm907, %v1761, 0.0
      %1782 = vadd.xlane.f32.xlu0 %v1781
      %v1783 = vpop.xlane.xlu0 %1782
      %v1784 = vsel %vm907, %v1762, 0.0
      %1785 = vadd.xlane.f32.xlu0 %v1784
      %v1786 = vpop.xlane.xlu0 %1785
      %v1787 = vmul.f32 %v1765, %v1738
      %v1788 = vmul.f32 %v1768, %v1738
      %v1789 = vmul.f32 %v1771, %v1738
      %v1790 = vmul.f32 %v1774, %v1738
      %v1791 = vmul.f32 %v1777, %v1738
      %v1792 = vmul.f32 %v1780, %v1738
      %v1793 = vmul.f32 %v1783, %v1738
      %v1794 = vmul.f32 %v1786, %v1738
      %v1795 = vadd.f32 %v1787, 1e-05
      %v1796 = vadd.f32 %v1788, 1e-05
      %v1797 = vadd.f32 %v1789, 1e-05
      %v1798 = vadd.f32 %v1790, 1e-05
      %v1799 = vadd.f32 %v1791, 1e-05
      %v1800 = vadd.f32 %v1792, 1e-05
      %v1801 = vadd.f32 %v1793, 1e-05
      %v1802 = vadd.f32 %v1794, 1e-05
      %v1803 = vrsqrt.pop %v1795
      %v1804 = vrsqrt.pop %v1796
      %v1805 = vrsqrt.pop %v1797
      %v1806 = vrsqrt.pop %v1798
      %v1807 = vrsqrt.pop %v1799
      %v1808 = vrsqrt.pop %v1800
      %v1809 = vrsqrt.pop %v1801
      %v1810 = vrsqrt.pop %v1802
      %v1811 = vmul.f32 %v1747, %v1803
      %v1812 = vmul.f32 %v1748, %v1804
      %v1813 = vmul.f32 %v1749, %v1805
      %v1814 = vmul.f32 %v1750, %v1806
      %v1815 = vmul.f32 %v1751, %v1807
      %v1816 = vmul.f32 %v1752, %v1808
      %v1817 = vmul.f32 %v1753, %v1809
      %v1818 = vmul.f32 %v1754, %v1810
      %v1820 = vlaneseq
      %v1821 = vshrl.u32 %v1820, 7
      %v1822 = vsub.s32 0, %v1821
      %v1823 = vrot.slane %v1712, %v1822
      %v1825 = vmul.f32 %v1811, %v1823
      %v1826 = vmul.f32 %v1812, %v1823
      %v1827 = vmul.f32 %v1813, %v1823
      %v1828 = vmul.f32 %v1814, %v1823
      %v1829 = vmul.f32 %v1815, %v1823
      %v1830 = vmul.f32 %v1816, %v1823
      %v1831 = vmul.f32 %v1817, %v1823
      %v1832 = vmul.f32 %v1818, %v1823
      %v1834 = vlaneseq
      %v1835 = vshrl.u32 %v1834, 7
      %v1836 = vsub.s32 0, %v1835
      %v1837 = vrot.slane %v1713, %v1836
      %v1839 = vadd.f32 %v1825, %v1837
      %v1840 = vadd.f32 %v1826, %v1837
      %v1841 = vadd.f32 %v1827, %v1837
      %v1842 = vadd.f32 %v1828, %v1837
      %v1843 = vadd.f32 %v1829, %v1837
      %v1844 = vadd.f32 %v1830, %v1837
      %v1845 = vadd.f32 %v1831, %v1837
      %v1846 = vadd.f32 %v1832, %v1837
      %v1847 = vld [vmem:[%s11] sm:$0xff]
      %v1848 = vld [vmem:[%s11 + $0x8] sm:$0xff]
      %v1849 = vld [vmem:[%s11 + $0x10] sm:$0xff]
      %v1850 = vld [vmem:[%s11 + $0x18] sm:$0xff]
      %v1851 = vld [vmem:[%s12] sm:$0x1]
      %v1853 = vlaneseq
      %v1854 = vshrl.u32 %v1853, 7
      %v1855 = vsub.s32 0, %v1854
      %v1856 = vrot.slane %v1851, %v1855
      %v1859 = vsel %vm907, %v1839, 0
      %v1862 = vsel %vm907, %v1840, 0
      %v1865 = vsel %vm907, %v1841, 0
      %v1868 = vsel %vm907, %v1842, 0
      %v1871 = vsel %vm907, %v1843, 0
      %v1874 = vsel %vm907, %v1844, 0
      %v1877 = vsel %vm907, %v1845, 0
      %v1880 = vsel %vm907, %v1846, 0
      %1882 = vmatprep.subr.mxu0 0.0
      %1883 = vmatpush1.msra.mxu0 %v1847
      %1884 = vmatprep.subr.mxu0 0.0
      %1885 = vmatpush1.msra.mxu0 %v1848
      %1886 = vmatprep.subr.mxu0 0.0
      %1887 = vmatpush1.msra.mxu0 %v1849
      %1888 = vmatprep.subr.mxu0 0.0
      %1889 = vmatpush1.msra.mxu0 %v1850
      %1890 = vmatprep.subr.mxu0 0.0
      %1891 = vmatpush1.msra.mxu0 0.0
      %1892 = vmatprep.subr.mxu0 0.0
      %1893 = vmatpush1.msra.mxu0 0.0
      %1894 = vmatprep.subr.mxu0 0.0
      %1895 = vmatpush1.msra.mxu0 0.0
      %1896 = vmatprep.subr.mxu0 0.0
      %1897 = vmatpush1.msra.mxu0 0.0
      %1898 = vmatprep.subr.mxu0 0.0
      %1899 = vmatpush1.msra.mxu0 0.0
      %1900 = vmatprep.subr.mxu0 0.0
      %1901 = vmatpush1.msra.mxu0 0.0
      %1902 = vmatprep.subr.mxu0 0.0
      %1903 = vmatpush1.msra.mxu0 0.0
      %1904 = vmatprep.subr.mxu0 0.0
      %1905 = vmatpush1.msra.mxu0 0.0
      %1906 = vmatprep.subr.mxu0 0.0
      %1907 = vmatpush1.msra.mxu0 0.0
      %1908 = vmatprep.subr.mxu0 0.0
      %1909 = vmatpush1.msra.mxu0 0.0
      %1910 = vmatprep.subr.mxu0 0.0
      %1911 = vmatpush1.msra.mxu0 0.0
      %1912 = vmatprep.subr.mxu0 0.0
      %1913 = vmatpush1.msra.mxu0 0.0
      %1914 = vmatprep.subr.mxu0 0.0
      %1915 = vmatpush1.msra.mxu0 0.0
      %1916 = vmatprep.subr.mxu0 0.0
      %1917 = vmatpush1.msra.mxu0 0.0
      %1918 = vmatprep.subr.mxu0 0.0
      %1919 = vmatpush1.msra.mxu0 0.0
      %1920 = vmatprep.subr.mxu0 0.0
      %1921 = vmatpush1.msra.mxu0 0.0
      %1922 = vmatprep.subr.mxu0 0.0
      %1923 = vmatpush1.msra.mxu0 0.0
      %1924 = vmatprep.subr.mxu0 0.0
      %1925 = vmatpush1.msra.mxu0 0.0
      %1926 = vmatprep.subr.mxu0 0.0
      %1927 = vmatpush1.msra.mxu0 0.0
      %1928 = vmatprep.subr.mxu0 0.0
      %1929 = vmatpush1.msra.mxu0 0.0
      %1930 = vmatprep.subr.mxu0 0.0
      %1931 = vmatpush1.msra.mxu0 0.0
      %1932 = vmatprep.subr.mxu0 0.0
      %1933 = vmatpush1.msra.mxu0 0.0
      %1934 = vmatprep.subr.mxu0 0.0
      %1935 = vmatpush1.msra.mxu0 0.0
      %1936 = vmatprep.subr.mxu0 0.0
      %1937 = vmatpush1.msra.mxu0 0.0
      %1938 = vmatprep.subr.mxu0 0.0
      %1939 = vmatpush1.msra.mxu0 0.0
      %1940 = vmatprep.subr.mxu0 0.0
      %1941 = vmatpush1.msra.mxu0 0.0
      %1942 = vmatprep.subr.mxu0 0.0
      %1943 = vmatpush1.msra.mxu0 0.0
      %1944 = vmatprep.subr.mxu0 0.0
      %1945 = vmatpush1.msra.mxu0 0.0
      %1946 = vmatprep.mubr.f32.mxu0 0.0
      %1947 = vmatmul.mubr.f32.gmra.mrb[0].mxu0 %v1859
      %v1948 = vpop.f32.mrb[0].mxu0
      %v1949 = vadd.f32 %v1856, %v1948
      %v1950 = vpop.f32.mrb[0].mxu0
      %1951 = vmatprep.mubr.f32.mxu0 0.0
      %1952 = vmatmul.mubr.f32.gmra.mrb[0].mxu0 %v1862
      %v1953 = vpop.f32.mrb[0].mxu0
      %v1954 = vadd.f32 %v1856, %v1953
      %v1955 = vpop.f32.mrb[0].mxu0
      %1956 = vmatprep.mubr.f32.mxu0 0.0
      %1957 = vmatmul.mubr.f32.gmra.mrb[0].mxu0 %v1865
      %v1958 = vpop.f32.mrb[0].mxu0
      %v1959 = vadd.f32 %v1856, %v1958
      %v1960 = vpop.f32.mrb[0].mxu0
      %1961 = vmatprep.mubr.f32.mxu0 0.0
      %1962 = vmatmul.mubr.f32.gmra.mrb[0].mxu0 %v1868
      %v1963 = vpop.f32.mrb[0].mxu0
      %v1964 = vadd.f32 %v1856, %v1963
      %v1965 = vpop.f32.mrb[0].mxu0
      %1966 = vmatprep.mubr.f32.mxu0 0.0
      %1967 = vmatmul.mubr.f32.gmra.mrb[0].mxu0 %v1871
      %v1968 = vpop.f32.mrb[0].mxu0
      %v1969 = vadd.f32 %v1856, %v1968
      %v1970 = vpop.f32.mrb[0].mxu0
      %1971 = vmatprep.mubr.f32.mxu0 0.0
      %1972 = vmatmul.mubr.f32.gmra.mrb[0].mxu0 %v1874
      %v1973 = vpop.f32.mrb[0].mxu0
      %v1974 = vadd.f32 %v1856, %v1973
      %v1975 = vpop.f32.mrb[0].mxu0
      %1976 = vmatprep.mubr.f32.mxu0 0.0
      %1977 = vmatmul.mubr.f32.gmra.mrb[0].mxu0 %v1877
      %v1978 = vpop.f32.mrb[0].mxu0
      %v1979 = vadd.f32 %v1856, %v1978
      %v1980 = vpop.f32.mrb[0].mxu0
      %1981 = vmatprep.mubr.f32.mxu0 0.0
      %1982 = vmatmul.mubr.f32.gmra.mrb[0].mxu0 %v1880
      %v1983 = vpop.f32.mrb[0].mxu0
      %v1984 = vadd.f32 %v1856, %v1983
      %v1985 = vpop.f32.mrb[0].mxu0
      %1986 = vdwg.mxu0
      %v1987 = vmax.f32 %v1949, 0.0
      %v1988 = vmax.f32 %v1954, 0.0
      %v1989 = vmax.f32 %v1959, 0.0
      %v1990 = vmax.f32 %v1964, 0.0
      %v1991 = vmax.f32 %v1969, 0.0
      %v1992 = vmax.f32 %v1974, 0.0
      %v1993 = vmax.f32 %v1979, 0.0
      %v1994 = vmax.f32 %v1984, 0.0
      %v1995 = vld [vmem:[%s13] sm:$0xff]
      %v1996 = vld [vmem:[%s13 + $0x8] sm:$0xff]
      %v1997 = vld [vmem:[%s13 + $0x10] sm:$0xff]
      %v1998 = vld [vmem:[%s13 + $0x18] sm:$0xff]
      %v1999 = vld [vmem:[%s13 + $0x20] sm:$0xff]
      %v2000 = vld [vmem:[%s13 + $0x28] sm:$0xff]
      %v2001 = vld [vmem:[%s13 + $0x30] sm:$0xff]
      %v2002 = vld [vmem:[%s13 + $0x38] sm:$0xff]
      %v2003 = vld [vmem:[%s14] sm:$0x1]
      %v2005 = vlaneseq
      %v2006 = vshrl.u32 %v2005, 7
      %v2007 = vsub.s32 0, %v2006
      %v2008 = vrot.slane %v2003, %v2007
      %v2011 = vsel %vm1346, %v1987, 0
      %v2014 = vsel %vm1346, %v1988, 0
      %v2017 = vsel %vm1346, %v1989, 0
      %v2020 = vsel %vm1346, %v1990, 0
      %v2023 = vsel %vm1346, %v1991, 0
      %v2026 = vsel %vm1346, %v1992, 0
      %v2029 = vsel %vm1346, %v1993, 0
      %v2032 = vsel %vm1346, %v1994, 0
      %2034 = vmatprep.subr.mxu0 0.0
      %2035 = vmatpush1.msra.mxu0 %v1995
      %2036 = vmatprep.subr.mxu0 0.0
      %2037 = vmatpush1.msra.mxu0 %v1996
      %2038 = vmatprep.subr.mxu0 0.0
      %2039 = vmatpush1.msra.mxu0 %v1997
      %2040 = vmatprep.subr.mxu0 0.0
      %2041 = vmatpush1.msra.mxu0 %v1998
      %2042 = vmatprep.subr.mxu0 0.0
      %2043 = vmatpush1.msra.mxu0 %v1999
      %2044 = vmatprep.subr.mxu0 0.0
      %2045 = vmatpush1.msra.mxu0 %v2000
      %2046 = vmatprep.subr.mxu0 0.0
      %2047 = vmatpush1.msra.mxu0 %v2001
      %2048 = vmatprep.subr.mxu0 0.0
      %2049 = vmatpush1.msra.mxu0 %v2002
      %2050 = vmatprep.subr.mxu0 0.0
      %2051 = vmatpush1.msra.mxu0 0.0
      %2052 = vmatprep.subr.mxu0 0.0
      %2053 = vmatpush1.msra.mxu0 0.0
      %2054 = vmatprep.subr.mxu0 0.0
      %2055 = vmatpush1.msra.mxu0 0.0
      %2056 = vmatprep.subr.mxu0 0.0
      %2057 = vmatpush1.msra.mxu0 0.0
      %2058 = vmatprep.subr.mxu0 0.0
      %2059 = vmatpush1.msra.mxu0 0.0
      %2060 = vmatprep.subr.mxu0 0.0
      %2061 = vmatpush1.msra.mxu0 0.0
      %2062 = vmatprep.subr.mxu0 0.0
      %2063 = vmatpush1.msra.mxu0 0.0
      %2064 = vmatprep.subr.mxu0 0.0
      %2065 = vmatpush1.msra.mxu0 0.0
      %2066 = vmatprep.subr.mxu0 0.0
      %2067 = vmatpush1.msra.mxu0 0.0
      %2068 = vmatprep.subr.mxu0 0.0
      %2069 = vmatpush1.msra.mxu0 0.0
      %2070 = vmatprep.subr.mxu0 0.0
      %2071 = vmatpush1.msra.mxu0 0.0
      %2072 = vmatprep.subr.mxu0 0.0
      %2073 = vmatpush1.msra.mxu0 0.0
      %2074 = vmatprep.subr.mxu0 0.0
      %2075 = vmatpush1.msra.mxu0 0.0
      %2076 = vmatprep.subr.mxu0 0.0
      %2077 = vmatpush1.msra.mxu0 0.0
      %2078 = vmatprep.subr.mxu0 0.0
      %2079 = vmatpush1.msra.mxu0 0.0
      %2080 = vmatprep.subr.mxu0 0.0
      %2081 = vmatpush1.msra.mxu0 0.0
      %2082 = vmatprep.subr.mxu0 0.0
      %2083 = vmatpush1.msra.mxu0 0.0
      %2084 = vmatprep.subr.mxu0 0.0
      %2085 = vmatpush1.msra.mxu0 0.0
      %2086 = vmatprep.subr.mxu0 0.0
      %2087 = vmatpush1.msra.mxu0 0.0
      %2088 = vmatprep.subr.mxu0 0.0
      %2089 = vmatpush1.msra.mxu0 0.0
      %2090 = vmatprep.subr.mxu0 0.0
      %2091 = vmatpush1.msra.mxu0 0.0
      %2092 = vmatprep.subr.mxu0 0.0
      %2093 = vmatpush1.msra.mxu0 0.0
      %2094 = vmatprep.subr.mxu0 0.0
      %2095 = vmatpush1.msra.mxu0 0.0
      %2096 = vmatprep.subr.mxu0 0.0
      %2097 = vmatpush1.msra.mxu0 0.0
      %2098 = vmatprep.mubr.f32.mxu0 0.0
      %2099 = vmatmul.mubr.f32.gmra.mrb[0].mxu0 %v2011
      %v2100 = vpop.f32.mrb[0].mxu0
      %v2101 = vadd.f32 %v2008, %v2100
      %v2102 = vpop.f32.mrb[0].mxu0
      %2103 = vmatprep.mubr.f32.mxu0 0.0
      %2104 = vmatmul.mubr.f32.gmra.mrb[0].mxu0 %v2014
      %v2105 = vpop.f32.mrb[0].mxu0
      %v2106 = vadd.f32 %v2008, %v2105
      %v2107 = vpop.f32.mrb[0].mxu0
      %2108 = vmatprep.mubr.f32.mxu0 0.0
      %2109 = vmatmul.mubr.f32.gmra.mrb[0].mxu0 %v2017
      %v2110 = vpop.f32.mrb[0].mxu0
      %v2111 = vadd.f32 %v2008, %v2110
      %v2112 = vpop.f32.mrb[0].mxu0
      %2113 = vmatprep.mubr.f32.mxu0 0.0
      %2114 = vmatmul.mubr.f32.gmra.mrb[0].mxu0 %v2020
      %v2115 = vpop.f32.mrb[0].mxu0
      %v2116 = vadd.f32 %v2008, %v2115
      %v2117 = vpop.f32.mrb[0].mxu0
      %2118 = vmatprep.mubr.f32.mxu0 0.0
      %2119 = vmatmul.mubr.f32.gmra.mrb[0].mxu0 %v2023
      %v2120 = vpop.f32.mrb[0].mxu0
      %v2121 = vadd.f32 %v2008, %v2120
      %v2122 = vpop.f32.mrb[0].mxu0
      %2123 = vmatprep.mubr.f32.mxu0 0.0
      %2124 = vmatmul.mubr.f32.gmra.mrb[0].mxu0 %v2026
      %v2125 = vpop.f32.mrb[0].mxu0
      %v2126 = vadd.f32 %v2008, %v2125
      %v2127 = vpop.f32.mrb[0].mxu0
      %2128 = vmatprep.mubr.f32.mxu0 0.0
      %2129 = vmatmul.mubr.f32.gmra.mrb[0].mxu0 %v2029
      %v2130 = vpop.f32.mrb[0].mxu0
      %v2131 = vadd.f32 %v2008, %v2130
      %v2132 = vpop.f32.mrb[0].mxu0
      %2133 = vmatprep.mubr.f32.mxu0 0.0
      %2134 = vmatmul.mubr.f32.gmra.mrb[0].mxu0 %v2032
      %v2135 = vpop.f32.mrb[0].mxu0
      %v2136 = vadd.f32 %v2008, %v2135
      %v2137 = vpop.f32.mrb[0].mxu0
      %2138 = vdwg.mxu0
      %v2139 = vadd.f32 %v1839, %v2101
      %v2140 = vadd.f32 %v1840, %v2106
      %v2141 = vadd.f32 %v1841, %v2111
      %v2142 = vadd.f32 %v1842, %v2116
      %v2143 = vadd.f32 %v1843, %v2121
      %v2144 = vadd.f32 %v1844, %v2126
      %v2145 = vadd.f32 %v1845, %v2131
      %v2146 = vadd.f32 %v1846, %v2136
      %v2147 = vld [vmem:[%s17] sm:$0x1]
      %v2148 = vld [vmem:[%s18] sm:$0x1]
      %v2149 = vsel %vm907, %v2139, 0.0
      %2150 = vadd.xlane.f32.xlu0 %v2149
      %v2151 = vpop.xlane.xlu0 %2150
      %v2152 = vsel %vm907, %v2140, 0.0
      %2153 = vadd.xlane.f32.xlu0 %v2152
      %v2154 = vpop.xlane.xlu0 %2153
      %v2155 = vsel %vm907, %v2141, 0.0
      %2156 = vadd.xlane.f32.xlu0 %v2155
      %v2157 = vpop.xlane.xlu0 %2156
      %v2158 = vsel %vm907, %v2142, 0.0
      %2159 = vadd.xlane.f32.xlu0 %v2158
      %v2160 = vpop.xlane.xlu0 %2159
      %v2161 = vsel %vm907, %v2143, 0.0
      %2162 = vadd.xlane.f32.xlu0 %v2161
      %v2163 = vpop.xlane.xlu0 %2162
      %v2164 = vsel %vm907, %v2144, 0.0
      %2165 = vadd.xlane.f32.xlu0 %v2164
      %v2166 = vpop.xlane.xlu0 %2165
      %v2167 = vsel %vm907, %v2145, 0.0
      %2168 = vadd.xlane.f32.xlu0 %v2167
      %v2169 = vpop.xlane.xlu0 %2168
      %v2170 = vsel %vm907, %v2146, 0.0
      %2171 = vadd.xlane.f32.xlu0 %v2170
      %v2172 = vpop.xlane.xlu0 %2171
      %v2173 = vmul.f32 %v2151, %v1738
      %v2174 = vmul.f32 %v2154, %v1738
      %v2175 = vmul.f32 %v2157, %v1738
      %v2176 = vmul.f32 %v2160, %v1738
      %v2177 = vmul.f32 %v2163, %v1738
      %v2178 = vmul.f32 %v2166, %v1738
      %v2179 = vmul.f32 %v2169, %v1738
      %v2180 = vmul.f32 %v2172, %v1738
      %v2181 = vsub.f32 %v2139, %v2173
      %v2182 = vsub.f32 %v2140, %v2174
      %v2183 = vsub.f32 %v2141, %v2175
      %v2184 = vsub.f32 %v2142, %v2176
      %v2185 = vsub.f32 %v2143, %v2177
      %v2186 = vsub.f32 %v2144, %v2178
      %v2187 = vsub.f32 %v2145, %v2179
      %v2188 = vsub.f32 %v2146, %v2180
      %v2189 = vmul.f32 %v2181, %v2181
      %v2190 = vmul.f32 %v2182, %v2182
      %v2191 = vmul.f32 %v2183, %v2183
      %v2192 = vmul.f32 %v2184, %v2184
      %v2193 = vmul.f32 %v2185, %v2185
      %v2194 = vmul.f32 %v2186, %v2186
      %v2195 = vmul.f32 %v2187, %v2187
      %v2196 = vmul.f32 %v2188, %v2188
      %v2197 = vsel %vm907, %v2189, 0.0
      %2198 = vadd.xlane.f32.xlu0 %v2197
      %v2199 = vpop.xlane.xlu0 %2198
      %v2200 = vsel %vm907, %v2190, 0.0
      %2201 = vadd.xlane.f32.xlu0 %v2200
      %v2202 = vpop.xlane.xlu0 %2201
      %v2203 = vsel %vm907, %v2191, 0.0
      %2204 = vadd.xlane.f32.xlu0 %v2203
      %v2205 = vpop.xlane.xlu0 %2204
      %v2206 = vsel %vm907, %v2192, 0.0
      %2207 = vadd.xlane.f32.xlu0 %v2206
      %v2208 = vpop.xlane.xlu0 %2207
      %v2209 = vsel %vm907, %v2193, 0.0
      %2210 = vadd.xlane.f32.xlu0 %v2209
      %v2211 = vpop.xlane.xlu0 %2210
      %v2212 = vsel %vm907, %v2194, 0.0
      %2213 = vadd.xlane.f32.xlu0 %v2212
      %v2214 = vpop.xlane.xlu0 %2213
      %v2215 = vsel %vm907, %v2195, 0.0
      %2216 = vadd.xlane.f32.xlu0 %v2215
      %v2217 = vpop.xlane.xlu0 %2216
      %v2218 = vsel %vm907, %v2196, 0.0
      %2219 = vadd.xlane.f32.xlu0 %v2218
      %v2220 = vpop.xlane.xlu0 %2219
      %v2221 = vmul.f32 %v2199, %v1738
      %v2222 = vmul.f32 %v2202, %v1738
      %v2223 = vmul.f32 %v2205, %v1738
      %v2224 = vmul.f32 %v2208, %v1738
      %v2225 = vmul.f32 %v2211, %v1738
      %v2226 = vmul.f32 %v2214, %v1738
      %v2227 = vmul.f32 %v2217, %v1738
      %v2228 = vmul.f32 %v2220, %v1738
      %v2229 = vadd.f32 %v2221, 1e-05
      %v2230 = vadd.f32 %v2222, 1e-05
      %v2231 = vadd.f32 %v2223, 1e-05
      %v2232 = vadd.f32 %v2224, 1e-05
      %v2233 = vadd.f32 %v2225, 1e-05
      %v2234 = vadd.f32 %v2226, 1e-05
      %v2235 = vadd.f32 %v2227, 1e-05
      %v2236 = vadd.f32 %v2228, 1e-05
      %v2237 = vrsqrt.pop %v2229
      %v2238 = vrsqrt.pop %v2230
      %v2239 = vrsqrt.pop %v2231
      %v2240 = vrsqrt.pop %v2232
      %v2241 = vrsqrt.pop %v2233
      %v2242 = vrsqrt.pop %v2234
      %v2243 = vrsqrt.pop %v2235
      %v2244 = vrsqrt.pop %v2236
      %v2245 = vmul.f32 %v2181, %v2237
      %v2246 = vmul.f32 %v2182, %v2238
      %v2247 = vmul.f32 %v2183, %v2239
      %v2248 = vmul.f32 %v2184, %v2240
      %v2249 = vmul.f32 %v2185, %v2241
      %v2250 = vmul.f32 %v2186, %v2242
      %v2251 = vmul.f32 %v2187, %v2243
      %v2252 = vmul.f32 %v2188, %v2244
      %v2254 = vlaneseq
      %v2255 = vshrl.u32 %v2254, 7
      %v2256 = vsub.s32 0, %v2255
      %v2257 = vrot.slane %v2147, %v2256
      %v2259 = vmul.f32 %v2245, %v2257
      %v2260 = vmul.f32 %v2246, %v2257
      %v2261 = vmul.f32 %v2247, %v2257
      %v2262 = vmul.f32 %v2248, %v2257
      %v2263 = vmul.f32 %v2249, %v2257
      %v2264 = vmul.f32 %v2250, %v2257
      %v2265 = vmul.f32 %v2251, %v2257
      %v2266 = vmul.f32 %v2252, %v2257
      %v2268 = vlaneseq
      %v2269 = vshrl.u32 %v2268, 7
      %v2270 = vsub.s32 0, %v2269
      %v2271 = vrot.slane %v2148, %v2270
      %v2273 = vadd.f32 %v2259, %v2271
      %v2274 = vadd.f32 %v2260, %v2271
      %v2275 = vadd.f32 %v2261, %v2271
      %v2276 = vadd.f32 %v2262, %v2271
      %v2277 = vadd.f32 %v2263, %v2271
      %v2278 = vadd.f32 %v2264, %v2271
      %v2279 = vadd.f32 %v2265, %v2271
      %v2280 = vadd.f32 %v2266, %v2271
      %v2281 = vadd.f32 %v2273, %v880
      %v2282 = vadd.f32 %v2274, %v881
      %v2283 = vadd.f32 %v2275, %v882
      %v2284 = vadd.f32 %v2276, %v883
      %v2285 = vadd.f32 %v2277, %v884
      %v2286 = vadd.f32 %v2278, %v885
      %v2287 = vadd.f32 %v2279, %v886
      %v2288 = vadd.f32 %v2280, %v887
      %s2289 = scalar_lea.vmem %s5, 32
      %v2290 = vld [vmem:[%s2289] sm:$0xff]
      %v2291 = vld [vmem:[%s2289 + $0x8] sm:$0xff]
      %v2292 = vld [vmem:[%s2289 + $0x10] sm:$0xff]
      %v2293 = vld [vmem:[%s2289 + $0x18] sm:$0xff]
      %s2294 = scalar_lea.vmem %s6, 1
      %v2295 = vld [vmem:[%s2294] sm:$0x1]
      %v2297 = vlaneseq
      %v2298 = vshrl.u32 %v2297, 7
      %v2299 = vsub.s32 0, %v2298
      %v2300 = vrot.slane %v2295, %v2299
      %v2303 = vsel %vm907, %v2281, 0
      %v2306 = vsel %vm907, %v2282, 0
      %v2309 = vsel %vm907, %v2283, 0
      %v2312 = vsel %vm907, %v2284, 0
      %v2315 = vsel %vm907, %v2285, 0
      %v2318 = vsel %vm907, %v2286, 0
      %v2321 = vsel %vm907, %v2287, 0
      %v2324 = vsel %vm907, %v2288, 0
      %2326 = vmatprep.subr.mxu0 0.0
      %2327 = vmatpush1.msra.mxu0 %v2290
      %2328 = vmatprep.subr.mxu0 0.0
      %2329 = vmatpush1.msra.mxu0 %v2291
      %2330 = vmatprep.subr.mxu0 0.0
      %2331 = vmatpush1.msra.mxu0 %v2292
      %2332 = vmatprep.subr.mxu0 0.0
      %2333 = vmatpush1.msra.mxu0 %v2293
      %2334 = vmatprep.subr.mxu0 0.0
      %2335 = vmatpush1.msra.mxu0 0.0
      %2336 = vmatprep.subr.mxu0 0.0
      %2337 = vmatpush1.msra.mxu0 0.0
      %2338 = vmatprep.subr.mxu0 0.0
      %2339 = vmatpush1.msra.mxu0 0.0
      %2340 = vmatprep.subr.mxu0 0.0
      %2341 = vmatpush1.msra.mxu0 0.0
      %2342 = vmatprep.subr.mxu0 0.0
      %2343 = vmatpush1.msra.mxu0 0.0
      %2344 = vmatprep.subr.mxu0 0.0
      %2345 = vmatpush1.msra.mxu0 0.0
      %2346 = vmatprep.subr.mxu0 0.0
      %2347 = vmatpush1.msra.mxu0 0.0
      %2348 = vmatprep.subr.mxu0 0.0
      %2349 = vmatpush1.msra.mxu0 0.0
      %2350 = vmatprep.subr.mxu0 0.0
      %2351 = vmatpush1.msra.mxu0 0.0
      %2352 = vmatprep.subr.mxu0 0.0
      %2353 = vmatpush1.msra.mxu0 0.0
      %2354 = vmatprep.subr.mxu0 0.0
      %2355 = vmatpush1.msra.mxu0 0.0
      %2356 = vmatprep.subr.mxu0 0.0
      %2357 = vmatpush1.msra.mxu0 0.0
      %2358 = vmatprep.subr.mxu0 0.0
      %2359 = vmatpush1.msra.mxu0 0.0
      %2360 = vmatprep.subr.mxu0 0.0
      %2361 = vmatpush1.msra.mxu0 0.0
      %2362 = vmatprep.subr.mxu0 0.0
      %2363 = vmatpush1.msra.mxu0 0.0
      %2364 = vmatprep.subr.mxu0 0.0
      %2365 = vmatpush1.msra.mxu0 0.0
      %2366 = vmatprep.subr.mxu0 0.0
      %2367 = vmatpush1.msra.mxu0 0.0
      %2368 = vmatprep.subr.mxu0 0.0
      %2369 = vmatpush1.msra.mxu0 0.0
      %2370 = vmatprep.subr.mxu0 0.0
      %2371 = vmatpush1.msra.mxu0 0.0
      %2372 = vmatprep.subr.mxu0 0.0
      %2373 = vmatpush1.msra.mxu0 0.0
      %2374 = vmatprep.subr.mxu0 0.0
      %2375 = vmatpush1.msra.mxu0 0.0
      %2376 = vmatprep.subr.mxu0 0.0
      %2377 = vmatpush1.msra.mxu0 0.0
      %2378 = vmatprep.subr.mxu0 0.0
      %2379 = vmatpush1.msra.mxu0 0.0
      %2380 = vmatprep.subr.mxu0 0.0
      %2381 = vmatpush1.msra.mxu0 0.0
      %2382 = vmatprep.subr.mxu0 0.0
      %2383 = vmatpush1.msra.mxu0 0.0
      %2384 = vmatprep.subr.mxu0 0.0
      %2385 = vmatpush1.msra.mxu0 0.0
      %2386 = vmatprep.subr.mxu0 0.0
      %2387 = vmatpush1.msra.mxu0 0.0
      %2388 = vmatprep.subr.mxu0 0.0
      %2389 = vmatpush1.msra.mxu0 0.0
      %2390 = vmatprep.mubr.f32.mxu0 0.0
      %2391 = vmatmul.mubr.f32.gmra.mrb[0].mxu0 %v2303
      %v2392 = vpop.f32.mrb[0].mxu0
      %v2393 = vadd.f32 %v2300, %v2392
      %v2394 = vpop.f32.mrb[0].mxu0
      %2395 = vmatprep.mubr.f32.mxu0 0.0
      %2396 = vmatmul.mubr.f32.gmra.mrb[0].mxu0 %v2306
      %v2397 = vpop.f32.mrb[0].mxu0
      %v2398 = vadd.f32 %v2300, %v2397
      %v2399 = vpop.f32.mrb[0].mxu0
      %2400 = vmatprep.mubr.f32.mxu0 0.0
      %2401 = vmatmul.mubr.f32.gmra.mrb[0].mxu0 %v2309
      %v2402 = vpop.f32.mrb[0].mxu0
      %v2403 = vadd.f32 %v2300, %v2402
      %v2404 = vpop.f32.mrb[0].mxu0
      %2405 = vmatprep.mubr.f32.mxu0 0.0
      %2406 = vmatmul.mubr.f32.gmra.mrb[0].mxu0 %v2312
      %v2407 = vpop.f32.mrb[0].mxu0
      %v2408 = vadd.f32 %v2300, %v2407
      %v2409 = vpop.f32.mrb[0].mxu0
      %2410 = vmatprep.mubr.f32.mxu0 0.0
      %2411 = vmatmul.mubr.f32.gmra.mrb[0].mxu0 %v2315
      %v2412 = vpop.f32.mrb[0].mxu0
      %v2413 = vadd.f32 %v2300, %v2412
      %v2414 = vpop.f32.mrb[0].mxu0
      %2415 = vmatprep.mubr.f32.mxu0 0.0
      %2416 = vmatmul.mubr.f32.gmra.mrb[0].mxu0 %v2318
      %v2417 = vpop.f32.mrb[0].mxu0
      %v2418 = vadd.f32 %v2300, %v2417
      %v2419 = vpop.f32.mrb[0].mxu0
      %2420 = vmatprep.mubr.f32.mxu0 0.0
      %2421 = vmatmul.mubr.f32.gmra.mrb[0].mxu0 %v2321
      %v2422 = vpop.f32.mrb[0].mxu0
      %v2423 = vadd.f32 %v2300, %v2422
      %v2424 = vpop.f32.mrb[0].mxu0
      %2425 = vmatprep.mubr.f32.mxu0 0.0
      %2426 = vmatmul.mubr.f32.gmra.mrb[0].mxu0 %v2324
      %v2427 = vpop.f32.mrb[0].mxu0
      %v2428 = vadd.f32 %v2300, %v2427
      %v2429 = vpop.f32.mrb[0].mxu0
      %2430 = vdwg.mxu0
      %s2431 = scalar_lea.vmem %s7, 32
      %v2432 = vld [vmem:[%s2431] sm:$0xff]
      %v2433 = vld [vmem:[%s2431 + $0x8] sm:$0xff]
      %v2434 = vld [vmem:[%s2431 + $0x10] sm:$0xff]
      %v2435 = vld [vmem:[%s2431 + $0x18] sm:$0xff]
      %s2436 = scalar_lea.vmem %s8, 1
      %v2437 = vld [vmem:[%s2436] sm:$0x1]
      %v2439 = vlaneseq
      %v2440 = vshrl.u32 %v2439, 7
      %v2441 = vsub.s32 0, %v2440
      %v2442 = vrot.slane %v2437, %v2441
      %v2445 = vsel %vm907, %v2273, 0
      %v2448 = vsel %vm907, %v2274, 0
      %v2451 = vsel %vm907, %v2275, 0
      %v2454 = vsel %vm907, %v2276, 0
      %v2457 = vsel %vm907, %v2277, 0
      %v2460 = vsel %vm907, %v2278, 0
      %v2463 = vsel %vm907, %v2279, 0
      %v2466 = vsel %vm907, %v2280, 0
      %2468 = vmatprep.subr.mxu0 0.0
      %2469 = vmatpush1.msra.mxu0 %v2432
      %2470 = vmatprep.subr.mxu0 0.0
      %2471 = vmatpush1.msra.mxu0 %v2433
      %2472 = vmatprep.subr.mxu0 0.0
      %2473 = vmatpush1.msra.mxu0 %v2434
      %2474 = vmatprep.subr.mxu0 0.0
      %2475 = vmatpush1.msra.mxu0 %v2435
      %2476 = vmatprep.subr.mxu0 0.0
      %2477 = vmatpush1.msra.mxu0 0.0
      %2478 = vmatprep.subr.mxu0 0.0
      %2479 = vmatpush1.msra.mxu0 0.0
      %2480 = vmatprep.subr.mxu0 0.0
      %2481 = vmatpush1.msra.mxu0 0.0
      %2482 = vmatprep.subr.mxu0 0.0
      %2483 = vmatpush1.msra.mxu0 0.0
      %2484 = vmatprep.subr.mxu0 0.0
      %2485 = vmatpush1.msra.mxu0 0.0
      %2486 = vmatprep.subr.mxu0 0.0
      %2487 = vmatpush1.msra.mxu0 0.0
      %2488 = vmatprep.subr.mxu0 0.0
      %2489 = vmatpush1.msra.mxu0 0.0
      %2490 = vmatprep.subr.mxu0 0.0
      %2491 = vmatpush1.msra.mxu0 0.0
      %2492 = vmatprep.subr.mxu0 0.0
      %2493 = vmatpush1.msra.mxu0 0.0
      %2494 = vmatprep.subr.mxu0 0.0
      %2495 = vmatpush1.msra.mxu0 0.0
      %2496 = vmatprep.subr.mxu0 0.0
      %2497 = vmatpush1.msra.mxu0 0.0
      %2498 = vmatprep.subr.mxu0 0.0
      %2499 = vmatpush1.msra.mxu0 0.0
      %2500 = vmatprep.subr.mxu0 0.0
      %2501 = vmatpush1.msra.mxu0 0.0
      %2502 = vmatprep.subr.mxu0 0.0
      %2503 = vmatpush1.msra.mxu0 0.0
      %2504 = vmatprep.subr.mxu0 0.0
      %2505 = vmatpush1.msra.mxu0 0.0
      %2506 = vmatprep.subr.mxu0 0.0
      %2507 = vmatpush1.msra.mxu0 0.0
      %2508 = vmatprep.subr.mxu0 0.0
      %2509 = vmatpush1.msra.mxu0 0.0
      %2510 = vmatprep.subr.mxu0 0.0
      %2511 = vmatpush1.msra.mxu0 0.0
      %2512 = vmatprep.subr.mxu0 0.0
      %2513 = vmatpush1.msra.mxu0 0.0
      %2514 = vmatprep.subr.mxu0 0.0
      %2515 = vmatpush1.msra.mxu0 0.0
      %2516 = vmatprep.subr.mxu0 0.0
      %2517 = vmatpush1.msra.mxu0 0.0
      %2518 = vmatprep.subr.mxu0 0.0
      %2519 = vmatpush1.msra.mxu0 0.0
      %2520 = vmatprep.subr.mxu0 0.0
      %2521 = vmatpush1.msra.mxu0 0.0
      %2522 = vmatprep.subr.mxu0 0.0
      %2523 = vmatpush1.msra.mxu0 0.0
      %2524 = vmatprep.subr.mxu0 0.0
      %2525 = vmatpush1.msra.mxu0 0.0
      %2526 = vmatprep.subr.mxu0 0.0
      %2527 = vmatpush1.msra.mxu0 0.0
      %2528 = vmatprep.subr.mxu0 0.0
      %2529 = vmatpush1.msra.mxu0 0.0
      %2530 = vmatprep.subr.mxu0 0.0
      %2531 = vmatpush1.msra.mxu0 0.0
      %2532 = vmatprep.mubr.f32.mxu0 0.0
      %2533 = vmatmul.mubr.f32.gmra.mrb[0].mxu0 %v2445
      %v2534 = vpop.f32.mrb[0].mxu0
      %v2535 = vadd.f32 %v2442, %v2534
      %v2536 = vpop.f32.mrb[0].mxu0
      %2537 = vmatprep.mubr.f32.mxu0 0.0
      %2538 = vmatmul.mubr.f32.gmra.mrb[0].mxu0 %v2448
      %v2539 = vpop.f32.mrb[0].mxu0
      %v2540 = vadd.f32 %v2442, %v2539
      %v2541 = vpop.f32.mrb[0].mxu0
      %2542 = vmatprep.mubr.f32.mxu0 0.0
      %2543 = vmatmul.mubr.f32.gmra.mrb[0].mxu0 %v2451
      %v2544 = vpop.f32.mrb[0].mxu0
      %v2545 = vadd.f32 %v2442, %v2544
      %v2546 = vpop.f32.mrb[0].mxu0
      %2547 = vmatprep.mubr.f32.mxu0 0.0
      %2548 = vmatmul.mubr.f32.gmra.mrb[0].mxu0 %v2454
      %v2549 = vpop.f32.mrb[0].mxu0
      %v2550 = vadd.f32 %v2442, %v2549
      %v2551 = vpop.f32.mrb[0].mxu0
      %2552 = vmatprep.mubr.f32.mxu0 0.0
      %2553 = vmatmul.mubr.f32.gmra.mrb[0].mxu0 %v2457
      %v2554 = vpop.f32.mrb[0].mxu0
      %v2555 = vadd.f32 %v2442, %v2554
      %v2556 = vpop.f32.mrb[0].mxu0
      %2557 = vmatprep.mubr.f32.mxu0 0.0
      %2558 = vmatmul.mubr.f32.gmra.mrb[0].mxu0 %v2460
      %v2559 = vpop.f32.mrb[0].mxu0
      %v2560 = vadd.f32 %v2442, %v2559
      %v2561 = vpop.f32.mrb[0].mxu0
      %2562 = vmatprep.mubr.f32.mxu0 0.0
      %2563 = vmatmul.mubr.f32.gmra.mrb[0].mxu0 %v2463
      %v2564 = vpop.f32.mrb[0].mxu0
      %v2565 = vadd.f32 %v2442, %v2564
      %v2566 = vpop.f32.mrb[0].mxu0
      %2567 = vmatprep.mubr.f32.mxu0 0.0
      %2568 = vmatmul.mubr.f32.gmra.mrb[0].mxu0 %v2466
      %v2569 = vpop.f32.mrb[0].mxu0
      %v2570 = vadd.f32 %v2442, %v2569
      %v2571 = vpop.f32.mrb[0].mxu0
      %2572 = vdwg.mxu0
      %2581 = vrot.lane.b32.xlu0 %v2393, 96
      %v2582 = vpop.permute.xlu0 %2581
      %2583 = vrot.lane.b32.xlu0 %v2398, 96
      %v2584 = vpop.permute.xlu0 %2583
      %2585 = vrot.lane.b32.xlu0 %v2403, 96
      %v2586 = vpop.permute.xlu0 %2585
      %2587 = vrot.lane.b32.xlu0 %v2408, 96
      %v2588 = vpop.permute.xlu0 %2587
      %2589 = vrot.lane.b32.xlu0 %v2413, 96
      %v2590 = vpop.permute.xlu0 %2589
      %2591 = vrot.lane.b32.xlu0 %v2418, 96
      %v2592 = vpop.permute.xlu0 %2591
      %2593 = vrot.lane.b32.xlu0 %v2423, 96
      %v2594 = vpop.permute.xlu0 %2593
      %2595 = vrot.lane.b32.xlu0 %v2428, 96
      %v2596 = vpop.permute.xlu0 %2595
      %v2597 = vsel %vm907, %v2393, 0
      %v2599 = vsel %vm907, %v2398, 0
      %v2601 = vsel %vm907, %v2403, 0
      %v2603 = vsel %vm907, %v2408, 0
      %v2605 = vsel %vm907, %v2413, 0
      %v2607 = vsel %vm907, %v2418, 0
      %v2609 = vsel %vm907, %v2423, 0
      %v2611 = vsel %vm907, %v2428, 0
      %v2613 = vsel %vm907, %v2582, 0
      %v2615 = vsel %vm907, %v2584, 0
      %v2617 = vsel %vm907, %v2586, 0
      %v2619 = vsel %vm907, %v2588, 0
      %v2621 = vsel %vm907, %v2590, 0
      %v2623 = vsel %vm907, %v2592, 0
      %v2625 = vsel %vm907, %v2594, 0
      %v2627 = vsel %vm907, %v2596, 0
      %2629 = vmatprep.subr.mxu0 0.0
      %2630 = vmatpush1.xpose.msra.mxu0 %v2613
      %2631 = vmatprep.subr.mxu0 0.0
      %2632 = vmatpush1.xpose.msra.mxu0 %v2615
      %2633 = vmatprep.subr.mxu0 0.0
      %2634 = vmatpush1.xpose.msra.mxu0 %v2617
      %2635 = vmatprep.subr.mxu0 0.0
      %2636 = vmatpush1.xpose.msra.mxu0 %v2619
      %2637 = vmatprep.subr.mxu0 0.0
      %2638 = vmatpush1.xpose.msra.mxu0 %v2621
      %2639 = vmatprep.subr.mxu0 0.0
      %2640 = vmatpush1.xpose.msra.mxu0 %v2623
      %2641 = vmatprep.subr.mxu0 0.0
      %2642 = vmatpush1.xpose.msra.mxu0 %v2625
      %2643 = vmatprep.subr.mxu0 0.0
      %2644 = vmatpush1.xpose.msra.mxu0 %v2627
      %2645 = vmatprep.subr.mxu0 0.0
      %2646 = vmatpush1.xpose.msra.mxu0 0.0
      %2647 = vmatprep.subr.mxu0 0.0
      %2648 = vmatpush1.xpose.msra.mxu0 0.0
      %2649 = vmatprep.subr.mxu0 0.0
      %2650 = vmatpush1.xpose.msra.mxu0 0.0
      %2651 = vmatprep.subr.mxu0 0.0
      %2652 = vmatpush1.xpose.msra.mxu0 0.0
      %2653 = vmatprep.subr.mxu0 0.0
      %2654 = vmatpush1.xpose.msra.mxu0 0.0
      %2655 = vmatprep.subr.mxu0 0.0
      %2656 = vmatpush1.xpose.msra.mxu0 0.0
      %2657 = vmatprep.subr.mxu0 0.0
      %2658 = vmatpush1.xpose.msra.mxu0 0.0
      %2659 = vmatprep.subr.mxu0 0.0
      %2660 = vmatpush1.xpose.msra.mxu0 0.0
      %2661 = vmatprep.subr.mxu0 0.0
      %2662 = vmatpush1.xpose.msra.mxu0 0.0
      %2663 = vmatprep.subr.mxu0 0.0
      %2664 = vmatpush1.xpose.msra.mxu0 0.0
      %2665 = vmatprep.subr.mxu0 0.0
      %2666 = vmatpush1.xpose.msra.mxu0 0.0
      %2667 = vmatprep.subr.mxu0 0.0
      %2668 = vmatpush1.xpose.msra.mxu0 0.0
      %2669 = vmatprep.subr.mxu0 0.0
      %2670 = vmatpush1.xpose.msra.mxu0 0.0
      %2671 = vmatprep.subr.mxu0 0.0
      %2672 = vmatpush1.xpose.msra.mxu0 0.0
      %2673 = vmatprep.subr.mxu0 0.0
      %2674 = vmatpush1.xpose.msra.mxu0 0.0
      %2675 = vmatprep.subr.mxu0 0.0
      %2676 = vmatpush1.xpose.msra.mxu0 0.0
      %2677 = vmatprep.subr.mxu0 0.0
      %2678 = vmatpush1.xpose.msra.mxu0 0.0
      %2679 = vmatprep.subr.mxu0 0.0
      %2680 = vmatpush1.xpose.msra.mxu0 0.0
      %2681 = vmatprep.subr.mxu0 0.0
      %2682 = vmatpush1.xpose.msra.mxu0 0.0
      %2683 = vmatprep.subr.mxu0 0.0
      %2684 = vmatpush1.xpose.msra.mxu0 0.0
      %2685 = vmatprep.subr.mxu0 0.0
      %2686 = vmatpush1.xpose.msra.mxu0 0.0
      %2687 = vmatprep.subr.mxu0 0.0
      %2688 = vmatpush1.xpose.msra.mxu0 0.0
      %2689 = vmatprep.subr.mxu0 0.0
      %2690 = vmatpush1.xpose.msra.mxu0 0.0
      %2691 = vmatprep.subr.mxu0 0.0
      %2692 = vmatpush1.xpose.msra.mxu0 0.0
      %2693 = vmatprep.mubr.f32.mxu0 0.0
      %2694 = vmatmul.mubr.f32.gmra.mrb[0].mxu0 %v2597
      %v2695 = vpop.f32.mrb[0].mxu0
      %v2696 = vadd.f32 0.0, %v2695
      %v2697 = vpop.f32.mrb[0].mxu0
      %2698 = vmatprep.mubr.f32.mxu0 0.0
      %2699 = vmatmul.mubr.f32.gmra.mrb[0].mxu0 %v2599
      %v2700 = vpop.f32.mrb[0].mxu0
      %v2701 = vadd.f32 0.0, %v2700
      %v2702 = vpop.f32.mrb[0].mxu0
      %2703 = vmatprep.mubr.f32.mxu0 0.0
      %2704 = vmatmul.mubr.f32.gmra.mrb[0].mxu0 %v2601
      %v2705 = vpop.f32.mrb[0].mxu0
      %v2706 = vadd.f32 0.0, %v2705
      %v2707 = vpop.f32.mrb[0].mxu0
      %2708 = vmatprep.mubr.f32.mxu0 0.0
      %2709 = vmatmul.mubr.f32.gmra.mrb[0].mxu0 %v2603
      %v2710 = vpop.f32.mrb[0].mxu0
      %v2711 = vadd.f32 0.0, %v2710
      %v2712 = vpop.f32.mrb[0].mxu0
      %2713 = vmatprep.mubr.f32.mxu0 0.0
      %2714 = vmatmul.mubr.f32.gmra.mrb[0].mxu0 %v2605
      %v2715 = vpop.f32.mrb[0].mxu0
      %v2716 = vadd.f32 0.0, %v2715
      %v2717 = vpop.f32.mrb[0].mxu0
      %2718 = vmatprep.mubr.f32.mxu0 0.0
      %2719 = vmatmul.mubr.f32.gmra.mrb[0].mxu0 %v2607
      %v2720 = vpop.f32.mrb[0].mxu0
      %v2721 = vadd.f32 0.0, %v2720
      %v2722 = vpop.f32.mrb[0].mxu0
      %2723 = vmatprep.mubr.f32.mxu0 0.0
      %2724 = vmatmul.mubr.f32.gmra.mrb[0].mxu0 %v2609
      %v2725 = vpop.f32.mrb[0].mxu0
      %v2726 = vadd.f32 0.0, %v2725
      %v2727 = vpop.f32.mrb[0].mxu0
      %2728 = vmatprep.mubr.f32.mxu0 0.0
      %2729 = vmatmul.mubr.f32.gmra.mrb[0].mxu0 %v2611
      %v2730 = vpop.f32.mrb[0].mxu0
      %v2731 = vadd.f32 0.0, %v2730
      %v2732 = vpop.f32.mrb[0].mxu0
      %2733 = vdwg.mxu0
      %v2734 = vmul.f32 %v2696, 0.17677669
      %v2735 = vmul.f32 %v2701, 0.17677669
      %v2736 = vmul.f32 %v2706, 0.17677669
      %v2737 = vmul.f32 %v2711, 0.17677669
      %v2738 = vmul.f32 %v2716, 0.17677669
      %v2739 = vmul.f32 %v2721, 0.17677669
      %v2740 = vmul.f32 %v2726, 0.17677669
      %v2741 = vmul.f32 %v2731, 0.17677669
      %v2742 = vsel %vm1346, %v2734, -inf
      %2743 = vmax.xlane.f32.xlu0 %v2742
      %v2744 = vpop.xlane.xlu0 %2743
      %v2745 = vsel %vm1346, %v2735, -inf
      %2746 = vmax.xlane.f32.xlu0 %v2745
      %v2747 = vpop.xlane.xlu0 %2746
      %v2748 = vsel %vm1346, %v2736, -inf
      %2749 = vmax.xlane.f32.xlu0 %v2748
      %v2750 = vpop.xlane.xlu0 %2749
      %v2751 = vsel %vm1346, %v2737, -inf
      %2752 = vmax.xlane.f32.xlu0 %v2751
      %v2753 = vpop.xlane.xlu0 %2752
      %v2754 = vsel %vm1346, %v2738, -inf
      %2755 = vmax.xlane.f32.xlu0 %v2754
      %v2756 = vpop.xlane.xlu0 %2755
      %v2757 = vsel %vm1346, %v2739, -inf
      %2758 = vmax.xlane.f32.xlu0 %v2757
      %v2759 = vpop.xlane.xlu0 %2758
      %v2760 = vsel %vm1346, %v2740, -inf
      %2761 = vmax.xlane.f32.xlu0 %v2760
      %v2762 = vpop.xlane.xlu0 %2761
      %v2763 = vsel %vm1346, %v2741, -inf
      %2764 = vmax.xlane.f32.xlu0 %v2763
      %v2765 = vpop.xlane.xlu0 %2764
      %v2766 = vsub.f32 %v2734, %v2744
      %v2767 = vsub.f32 %v2735, %v2747
      %v2768 = vsub.f32 %v2736, %v2750
      %v2769 = vsub.f32 %v2737, %v2753
      %v2770 = vsub.f32 %v2738, %v2756
      %v2771 = vsub.f32 %v2739, %v2759
      %v2772 = vsub.f32 %v2740, %v2762
      %v2773 = vsub.f32 %v2741, %v2765
      %v2774 = vmul.f32 %v2766, 1.442695
      %v2775 = vpow.pop %v2774
      %v2776 = vmul.f32 %v2767, 1.442695
      %v2777 = vpow.pop %v2776
      %v2778 = vmul.f32 %v2768, 1.442695
      %v2779 = vpow.pop %v2778
      %v2780 = vmul.f32 %v2769, 1.442695
      %v2781 = vpow.pop %v2780
      %v2782 = vmul.f32 %v2770, 1.442695
      %v2783 = vpow.pop %v2782
      %v2784 = vmul.f32 %v2771, 1.442695
      %v2785 = vpow.pop %v2784
      %v2786 = vmul.f32 %v2772, 1.442695
      %v2787 = vpow.pop %v2786
      %v2788 = vmul.f32 %v2773, 1.442695
      %v2789 = vpow.pop %v2788
      %v2790 = vsel %vm1346, %v2775, 0.0
      %2791 = vadd.xlane.f32.xlu0 %v2790
      %v2792 = vpop.xlane.xlu0 %2791
      %v2793 = vsel %vm1346, %v2777, 0.0
      %2794 = vadd.xlane.f32.xlu0 %v2793
      %v2795 = vpop.xlane.xlu0 %2794
      %v2796 = vsel %vm1346, %v2779, 0.0
      %2797 = vadd.xlane.f32.xlu0 %v2796
      %v2798 = vpop.xlane.xlu0 %2797
      %v2799 = vsel %vm1346, %v2781, 0.0
      %2800 = vadd.xlane.f32.xlu0 %v2799
      %v2801 = vpop.xlane.xlu0 %2800
      %v2802 = vsel %vm1346, %v2783, 0.0
      %2803 = vadd.xlane.f32.xlu0 %v2802
      %v2804 = vpop.xlane.xlu0 %2803
      %v2805 = vsel %vm1346, %v2785, 0.0
      %2806 = vadd.xlane.f32.xlu0 %v2805
      %v2807 = vpop.xlane.xlu0 %2806
      %v2808 = vsel %vm1346, %v2787, 0.0
      %2809 = vadd.xlane.f32.xlu0 %v2808
      %v2810 = vpop.xlane.xlu0 %2809
      %v2811 = vsel %vm1346, %v2789, 0.0
      %2812 = vadd.xlane.f32.xlu0 %v2811
      %v2813 = vpop.xlane.xlu0 %2812
      %v2814 = vrcp.pop %v2792
      %v2815 = vrcp.pop %v2795
      %v2816 = vrcp.pop %v2798
      %v2817 = vrcp.pop %v2801
      %v2818 = vrcp.pop %v2804
      %v2819 = vrcp.pop %v2807
      %v2820 = vrcp.pop %v2810
      %v2821 = vrcp.pop %v2813
      %v2822 = vmul.f32 %v2775, %v2814
      %v2823 = vmul.f32 %v2777, %v2815
      %v2824 = vmul.f32 %v2779, %v2816
      %v2825 = vmul.f32 %v2781, %v2817
      %v2826 = vmul.f32 %v2783, %v2818
      %v2827 = vmul.f32 %v2785, %v2819
      %v2828 = vmul.f32 %v2787, %v2820
      %v2829 = vmul.f32 %v2789, %v2821
      %v2831 = vsel %vm1346, %v2822, 0
      %v2834 = vsel %vm1346, %v2823, 0
      %v2837 = vsel %vm1346, %v2824, 0
      %v2840 = vsel %vm1346, %v2825, 0
      %v2843 = vsel %vm1346, %v2826, 0
      %v2846 = vsel %vm1346, %v2827, 0
      %v2849 = vsel %vm1346, %v2828, 0
      %v2852 = vsel %vm1346, %v2829, 0
      %2854 = vmatprep.subr.mxu0 0.0
      %2855 = vmatpush1.msra.mxu0 %v2535
      %2856 = vmatprep.subr.mxu0 0.0
      %2857 = vmatpush1.msra.mxu0 %v2540
      %2858 = vmatprep.subr.mxu0 0.0
      %2859 = vmatpush1.msra.mxu0 %v2545
      %2860 = vmatprep.subr.mxu0 0.0
      %2861 = vmatpush1.msra.mxu0 %v2550
      %2862 = vmatprep.subr.mxu0 0.0
      %2863 = vmatpush1.msra.mxu0 %v2555
      %2864 = vmatprep.subr.mxu0 0.0
      %2865 = vmatpush1.msra.mxu0 %v2560
      %2866 = vmatprep.subr.mxu0 0.0
      %2867 = vmatpush1.msra.mxu0 %v2565
      %2868 = vmatprep.subr.mxu0 0.0
      %2869 = vmatpush1.msra.mxu0 %v2570
      %2870 = vmatprep.subr.mxu0 0.0
      %2871 = vmatpush1.msra.mxu0 0.0
      %2872 = vmatprep.subr.mxu0 0.0
      %2873 = vmatpush1.msra.mxu0 0.0
      %2874 = vmatprep.subr.mxu0 0.0
      %2875 = vmatpush1.msra.mxu0 0.0
      %2876 = vmatprep.subr.mxu0 0.0
      %2877 = vmatpush1.msra.mxu0 0.0
      %2878 = vmatprep.subr.mxu0 0.0
      %2879 = vmatpush1.msra.mxu0 0.0
      %2880 = vmatprep.subr.mxu0 0.0
      %2881 = vmatpush1.msra.mxu0 0.0
      %2882 = vmatprep.subr.mxu0 0.0
      %2883 = vmatpush1.msra.mxu0 0.0
      %2884 = vmatprep.subr.mxu0 0.0
      %2885 = vmatpush1.msra.mxu0 0.0
      %2886 = vmatprep.subr.mxu0 0.0
      %2887 = vmatpush1.msra.mxu0 0.0
      %2888 = vmatprep.subr.mxu0 0.0
      %2889 = vmatpush1.msra.mxu0 0.0
      %2890 = vmatprep.subr.mxu0 0.0
      %2891 = vmatpush1.msra.mxu0 0.0
      %2892 = vmatprep.subr.mxu0 0.0
      %2893 = vmatpush1.msra.mxu0 0.0
      %2894 = vmatprep.subr.mxu0 0.0
      %2895 = vmatpush1.msra.mxu0 0.0
      %2896 = vmatprep.subr.mxu0 0.0
      %2897 = vmatpush1.msra.mxu0 0.0
      %2898 = vmatprep.subr.mxu0 0.0
      %2899 = vmatpush1.msra.mxu0 0.0
      %2900 = vmatprep.subr.mxu0 0.0
      %2901 = vmatpush1.msra.mxu0 0.0
      %2902 = vmatprep.subr.mxu0 0.0
      %2903 = vmatpush1.msra.mxu0 0.0
      %2904 = vmatprep.subr.mxu0 0.0
      %2905 = vmatpush1.msra.mxu0 0.0
      %2906 = vmatprep.subr.mxu0 0.0
      %2907 = vmatpush1.msra.mxu0 0.0
      %2908 = vmatprep.subr.mxu0 0.0
      %2909 = vmatpush1.msra.mxu0 0.0
      %2910 = vmatprep.subr.mxu0 0.0
      %2911 = vmatpush1.msra.mxu0 0.0
      %2912 = vmatprep.subr.mxu0 0.0
      %2913 = vmatpush1.msra.mxu0 0.0
      %2914 = vmatprep.subr.mxu0 0.0
      %2915 = vmatpush1.msra.mxu0 0.0
      %2916 = vmatprep.subr.mxu0 0.0
      %2917 = vmatpush1.msra.mxu0 0.0
      %2918 = vmatprep.mubr.f32.mxu0 0.0
      %2919 = vmatmul.mubr.f32.gmra.mrb[0].mxu0 %v2831
      %v2920 = vpop.f32.mrb[0].mxu0
      %v2921 = vadd.f32 0.0, %v2920
      %v2922 = vpop.f32.mrb[0].mxu0
      %2923 = vmatprep.mubr.f32.mxu0 0.0
      %2924 = vmatmul.mubr.f32.gmra.mrb[0].mxu0 %v2834
      %v2925 = vpop.f32.mrb[0].mxu0
      %v2926 = vadd.f32 0.0, %v2925
      %v2927 = vpop.f32.mrb[0].mxu0
      %2928 = vmatprep.mubr.f32.mxu0 0.0
      %2929 = vmatmul.mubr.f32.gmra.mrb[0].mxu0 %v2837
      %v2930 = vpop.f32.mrb[0].mxu0
      %v2931 = vadd.f32 0.0, %v2930
      %v2932 = vpop.f32.mrb[0].mxu0
      %2933 = vmatprep.mubr.f32.mxu0 0.0
      %2934 = vmatmul.mubr.f32.gmra.mrb[0].mxu0 %v2840
      %v2935 = vpop.f32.mrb[0].mxu0
      %v2936 = vadd.f32 0.0, %v2935
      %v2937 = vpop.f32.mrb[0].mxu0
      %2938 = vmatprep.mubr.f32.mxu0 0.0
      %2939 = vmatmul.mubr.f32.gmra.mrb[0].mxu0 %v2843
      %v2940 = vpop.f32.mrb[0].mxu0
      %v2941 = vadd.f32 0.0, %v2940
      %v2942 = vpop.f32.mrb[0].mxu0
      %2943 = vmatprep.mubr.f32.mxu0 0.0
      %2944 = vmatmul.mubr.f32.gmra.mrb[0].mxu0 %v2846
      %v2945 = vpop.f32.mrb[0].mxu0
      %v2946 = vadd.f32 0.0, %v2945
      %v2947 = vpop.f32.mrb[0].mxu0
      %2948 = vmatprep.mubr.f32.mxu0 0.0
      %2949 = vmatmul.mubr.f32.gmra.mrb[0].mxu0 %v2849
      %v2950 = vpop.f32.mrb[0].mxu0
      %v2951 = vadd.f32 0.0, %v2950
      %v2952 = vpop.f32.mrb[0].mxu0
      %2953 = vmatprep.mubr.f32.mxu0 0.0
      %2954 = vmatmul.mubr.f32.gmra.mrb[0].mxu0 %v2852
      %v2955 = vpop.f32.mrb[0].mxu0
      %v2956 = vadd.f32 0.0, %v2955
      %v2957 = vpop.f32.mrb[0].mxu0
      %2958 = vdwg.mxu0
      %s2959 = scalar_lea.vmem %s9, 32
      %v2960 = vld [vmem:[%s2959] sm:$0xff]
      %v2961 = vld [vmem:[%s2959 + $0x8] sm:$0xff]
      %v2962 = vld [vmem:[%s2959 + $0x10] sm:$0xff]
      %v2963 = vld [vmem:[%s2959 + $0x18] sm:$0xff]
      %s2964 = scalar_lea.vmem %s10, 1
      %v2965 = vld [vmem:[%s2964] sm:$0x1]
      %v2967 = vlaneseq
      %v2968 = vshrl.u32 %v2967, 7
      %v2969 = vsub.s32 0, %v2968
      %v2970 = vrot.slane %v2965, %v2969
      %v2973 = vsel %vm907, %v2921, 0
      %v2976 = vsel %vm907, %v2926, 0
      %v2979 = vsel %vm907, %v2931, 0
      %v2982 = vsel %vm907, %v2936, 0
      %v2985 = vsel %vm907, %v2941, 0
      %v2988 = vsel %vm907, %v2946, 0
      %v2991 = vsel %vm907, %v2951, 0
      %v2994 = vsel %vm907, %v2956, 0
      %2996 = vmatprep.subr.mxu0 0.0
      %2997 = vmatpush1.msra.mxu0 %v2960
      %2998 = vmatprep.subr.mxu0 0.0
      %2999 = vmatpush1.msra.mxu0 %v2961
      %3000 = vmatprep.subr.mxu0 0.0
      %3001 = vmatpush1.msra.mxu0 %v2962
      %3002 = vmatprep.subr.mxu0 0.0
      %3003 = vmatpush1.msra.mxu0 %v2963
      %3004 = vmatprep.subr.mxu0 0.0
      %3005 = vmatpush1.msra.mxu0 0.0
      %3006 = vmatprep.subr.mxu0 0.0
      %3007 = vmatpush1.msra.mxu0 0.0
      %3008 = vmatprep.subr.mxu0 0.0
      %3009 = vmatpush1.msra.mxu0 0.0
      %3010 = vmatprep.subr.mxu0 0.0
      %3011 = vmatpush1.msra.mxu0 0.0
      %3012 = vmatprep.subr.mxu0 0.0
      %3013 = vmatpush1.msra.mxu0 0.0
      %3014 = vmatprep.subr.mxu0 0.0
      %3015 = vmatpush1.msra.mxu0 0.0
      %3016 = vmatprep.subr.mxu0 0.0
      %3017 = vmatpush1.msra.mxu0 0.0
      %3018 = vmatprep.subr.mxu0 0.0
      %3019 = vmatpush1.msra.mxu0 0.0
      %3020 = vmatprep.subr.mxu0 0.0
      %3021 = vmatpush1.msra.mxu0 0.0
      %3022 = vmatprep.subr.mxu0 0.0
      %3023 = vmatpush1.msra.mxu0 0.0
      %3024 = vmatprep.subr.mxu0 0.0
      %3025 = vmatpush1.msra.mxu0 0.0
      %3026 = vmatprep.subr.mxu0 0.0
      %3027 = vmatpush1.msra.mxu0 0.0
      %3028 = vmatprep.subr.mxu0 0.0
      %3029 = vmatpush1.msra.mxu0 0.0
      %3030 = vmatprep.subr.mxu0 0.0
      %3031 = vmatpush1.msra.mxu0 0.0
      %3032 = vmatprep.subr.mxu0 0.0
      %3033 = vmatpush1.msra.mxu0 0.0
      %3034 = vmatprep.subr.mxu0 0.0
      %3035 = vmatpush1.msra.mxu0 0.0
      %3036 = vmatprep.subr.mxu0 0.0
      %3037 = vmatpush1.msra.mxu0 0.0
      %3038 = vmatprep.subr.mxu0 0.0
      %3039 = vmatpush1.msra.mxu0 0.0
      %3040 = vmatprep.subr.mxu0 0.0
      %3041 = vmatpush1.msra.mxu0 0.0
      %3042 = vmatprep.subr.mxu0 0.0
      %3043 = vmatpush1.msra.mxu0 0.0
      %3044 = vmatprep.subr.mxu0 0.0
      %3045 = vmatpush1.msra.mxu0 0.0
      %3046 = vmatprep.subr.mxu0 0.0
      %3047 = vmatpush1.msra.mxu0 0.0
      %3048 = vmatprep.subr.mxu0 0.0
      %3049 = vmatpush1.msra.mxu0 0.0
      %3050 = vmatprep.subr.mxu0 0.0
      %3051 = vmatpush1.msra.mxu0 0.0
      %3052 = vmatprep.subr.mxu0 0.0
      %3053 = vmatpush1.msra.mxu0 0.0
      %3054 = vmatprep.subr.mxu0 0.0
      %3055 = vmatpush1.msra.mxu0 0.0
      %3056 = vmatprep.subr.mxu0 0.0
      %3057 = vmatpush1.msra.mxu0 0.0
      %3058 = vmatprep.subr.mxu0 0.0
      %3059 = vmatpush1.msra.mxu0 0.0
      %3060 = vmatprep.mubr.f32.mxu0 0.0
      %3061 = vmatmul.mubr.f32.gmra.mrb[0].mxu0 %v2973
      %v3062 = vpop.f32.mrb[0].mxu0
      %v3063 = vadd.f32 %v2970, %v3062
      %v3064 = vpop.f32.mrb[0].mxu0
      %3065 = vmatprep.mubr.f32.mxu0 0.0
      %3066 = vmatmul.mubr.f32.gmra.mrb[0].mxu0 %v2976
      %v3067 = vpop.f32.mrb[0].mxu0
      %v3068 = vadd.f32 %v2970, %v3067
      %v3069 = vpop.f32.mrb[0].mxu0
      %3070 = vmatprep.mubr.f32.mxu0 0.0
      %3071 = vmatmul.mubr.f32.gmra.mrb[0].mxu0 %v2979
      %v3072 = vpop.f32.mrb[0].mxu0
      %v3073 = vadd.f32 %v2970, %v3072
      %v3074 = vpop.f32.mrb[0].mxu0
      %3075 = vmatprep.mubr.f32.mxu0 0.0
      %3076 = vmatmul.mubr.f32.gmra.mrb[0].mxu0 %v2982
      %v3077 = vpop.f32.mrb[0].mxu0
      %v3078 = vadd.f32 %v2970, %v3077
      %v3079 = vpop.f32.mrb[0].mxu0
      %3080 = vmatprep.mubr.f32.mxu0 0.0
      %3081 = vmatmul.mubr.f32.gmra.mrb[0].mxu0 %v2985
      %v3082 = vpop.f32.mrb[0].mxu0
      %v3083 = vadd.f32 %v2970, %v3082
      %v3084 = vpop.f32.mrb[0].mxu0
      %3085 = vmatprep.mubr.f32.mxu0 0.0
      %3086 = vmatmul.mubr.f32.gmra.mrb[0].mxu0 %v2988
      %v3087 = vpop.f32.mrb[0].mxu0
      %v3088 = vadd.f32 %v2970, %v3087
      %v3089 = vpop.f32.mrb[0].mxu0
      %3090 = vmatprep.mubr.f32.mxu0 0.0
      %3091 = vmatmul.mubr.f32.gmra.mrb[0].mxu0 %v2991
      %v3092 = vpop.f32.mrb[0].mxu0
      %v3093 = vadd.f32 %v2970, %v3092
      %v3094 = vpop.f32.mrb[0].mxu0
      %3095 = vmatprep.mubr.f32.mxu0 0.0
      %3096 = vmatmul.mubr.f32.gmra.mrb[0].mxu0 %v2994
      %v3097 = vpop.f32.mrb[0].mxu0
      %v3098 = vadd.f32 %v2970, %v3097
      %v3099 = vpop.f32.mrb[0].mxu0
      %3100 = vdwg.mxu0
      %v3101 = vadd.f32 %v2273, %v3063
      %v3102 = vadd.f32 %v2274, %v3068
      %v3103 = vadd.f32 %v2275, %v3073
      %v3104 = vadd.f32 %v2276, %v3078
      %v3105 = vadd.f32 %v2277, %v3083
      %v3106 = vadd.f32 %v2278, %v3088
      %v3107 = vadd.f32 %v2279, %v3093
      %v3108 = vadd.f32 %v2280, %v3098
      %s3109 = scalar_lea.vmem %s15, 1
      %v3110 = vld [vmem:[%s3109] sm:$0x1]
      %s3111 = scalar_lea.vmem %s16, 1
      %v3112 = vld [vmem:[%s3111] sm:$0x1]
      %v3113 = vsel %vm907, %v3101, 0.0
      %3114 = vadd.xlane.f32.xlu0 %v3113
      %v3115 = vpop.xlane.xlu0 %3114
      %v3116 = vsel %vm907, %v3102, 0.0
      %3117 = vadd.xlane.f32.xlu0 %v3116
      %v3118 = vpop.xlane.xlu0 %3117
      %v3119 = vsel %vm907, %v3103, 0.0
      %3120 = vadd.xlane.f32.xlu0 %v3119
      %v3121 = vpop.xlane.xlu0 %3120
      %v3122 = vsel %vm907, %v3104, 0.0
      %3123 = vadd.xlane.f32.xlu0 %v3122
      %v3124 = vpop.xlane.xlu0 %3123
      %v3125 = vsel %vm907, %v3105, 0.0
      %3126 = vadd.xlane.f32.xlu0 %v3125
      %v3127 = vpop.xlane.xlu0 %3126
      %v3128 = vsel %vm907, %v3106, 0.0
      %3129 = vadd.xlane.f32.xlu0 %v3128
      %v3130 = vpop.xlane.xlu0 %3129
      %v3131 = vsel %vm907, %v3107, 0.0
      %3132 = vadd.xlane.f32.xlu0 %v3131
      %v3133 = vpop.xlane.xlu0 %3132
      %v3134 = vsel %vm907, %v3108, 0.0
      %3135 = vadd.xlane.f32.xlu0 %v3134
      %v3136 = vpop.xlane.xlu0 %3135
      %v3137 = vmul.f32 %v3115, %v1738
      %v3138 = vmul.f32 %v3118, %v1738
      %v3139 = vmul.f32 %v3121, %v1738
      %v3140 = vmul.f32 %v3124, %v1738
      %v3141 = vmul.f32 %v3127, %v1738
      %v3142 = vmul.f32 %v3130, %v1738
      %v3143 = vmul.f32 %v3133, %v1738
      %v3144 = vmul.f32 %v3136, %v1738
      %v3145 = vsub.f32 %v3101, %v3137
      %v3146 = vsub.f32 %v3102, %v3138
      %v3147 = vsub.f32 %v3103, %v3139
      %v3148 = vsub.f32 %v3104, %v3140
      %v3149 = vsub.f32 %v3105, %v3141
      %v3150 = vsub.f32 %v3106, %v3142
      %v3151 = vsub.f32 %v3107, %v3143
      %v3152 = vsub.f32 %v3108, %v3144
      %v3153 = vmul.f32 %v3145, %v3145
      %v3154 = vmul.f32 %v3146, %v3146
      %v3155 = vmul.f32 %v3147, %v3147
      %v3156 = vmul.f32 %v3148, %v3148
      %v3157 = vmul.f32 %v3149, %v3149
      %v3158 = vmul.f32 %v3150, %v3150
      %v3159 = vmul.f32 %v3151, %v3151
      %v3160 = vmul.f32 %v3152, %v3152
      %v3161 = vsel %vm907, %v3153, 0.0
      %3162 = vadd.xlane.f32.xlu0 %v3161
      %v3163 = vpop.xlane.xlu0 %3162
      %v3164 = vsel %vm907, %v3154, 0.0
      %3165 = vadd.xlane.f32.xlu0 %v3164
      %v3166 = vpop.xlane.xlu0 %3165
      %v3167 = vsel %vm907, %v3155, 0.0
      %3168 = vadd.xlane.f32.xlu0 %v3167
      %v3169 = vpop.xlane.xlu0 %3168
      %v3170 = vsel %vm907, %v3156, 0.0
      %3171 = vadd.xlane.f32.xlu0 %v3170
      %v3172 = vpop.xlane.xlu0 %3171
      %v3173 = vsel %vm907, %v3157, 0.0
      %3174 = vadd.xlane.f32.xlu0 %v3173
      %v3175 = vpop.xlane.xlu0 %3174
      %v3176 = vsel %vm907, %v3158, 0.0
      %3177 = vadd.xlane.f32.xlu0 %v3176
      %v3178 = vpop.xlane.xlu0 %3177
      %v3179 = vsel %vm907, %v3159, 0.0
      %3180 = vadd.xlane.f32.xlu0 %v3179
      %v3181 = vpop.xlane.xlu0 %3180
      %v3182 = vsel %vm907, %v3160, 0.0
      %3183 = vadd.xlane.f32.xlu0 %v3182
      %v3184 = vpop.xlane.xlu0 %3183
      %v3185 = vmul.f32 %v3163, %v1738
      %v3186 = vmul.f32 %v3166, %v1738
      %v3187 = vmul.f32 %v3169, %v1738
      %v3188 = vmul.f32 %v3172, %v1738
      %v3189 = vmul.f32 %v3175, %v1738
      %v3190 = vmul.f32 %v3178, %v1738
      %v3191 = vmul.f32 %v3181, %v1738
      %v3192 = vmul.f32 %v3184, %v1738
      %v3193 = vadd.f32 %v3185, 1e-05
      %v3194 = vadd.f32 %v3186, 1e-05
      %v3195 = vadd.f32 %v3187, 1e-05
      %v3196 = vadd.f32 %v3188, 1e-05
      %v3197 = vadd.f32 %v3189, 1e-05
      %v3198 = vadd.f32 %v3190, 1e-05
      %v3199 = vadd.f32 %v3191, 1e-05
      %v3200 = vadd.f32 %v3192, 1e-05
      %v3201 = vrsqrt.pop %v3193
      %v3202 = vrsqrt.pop %v3194
      %v3203 = vrsqrt.pop %v3195
      %v3204 = vrsqrt.pop %v3196
      %v3205 = vrsqrt.pop %v3197
      %v3206 = vrsqrt.pop %v3198
      %v3207 = vrsqrt.pop %v3199
      %v3208 = vrsqrt.pop %v3200
      %v3209 = vmul.f32 %v3145, %v3201
      %v3210 = vmul.f32 %v3146, %v3202
      %v3211 = vmul.f32 %v3147, %v3203
      %v3212 = vmul.f32 %v3148, %v3204
      %v3213 = vmul.f32 %v3149, %v3205
      %v3214 = vmul.f32 %v3150, %v3206
      %v3215 = vmul.f32 %v3151, %v3207
      %v3216 = vmul.f32 %v3152, %v3208
      %v3218 = vlaneseq
      %v3219 = vshrl.u32 %v3218, 7
      %v3220 = vsub.s32 0, %v3219
      %v3221 = vrot.slane %v3110, %v3220
      %v3223 = vmul.f32 %v3209, %v3221
      %v3224 = vmul.f32 %v3210, %v3221
      %v3225 = vmul.f32 %v3211, %v3221
      %v3226 = vmul.f32 %v3212, %v3221
      %v3227 = vmul.f32 %v3213, %v3221
      %v3228 = vmul.f32 %v3214, %v3221
      %v3229 = vmul.f32 %v3215, %v3221
      %v3230 = vmul.f32 %v3216, %v3221
      %v3232 = vlaneseq
      %v3233 = vshrl.u32 %v3232, 7
      %v3234 = vsub.s32 0, %v3233
      %v3235 = vrot.slane %v3112, %v3234
      %v3237 = vadd.f32 %v3223, %v3235
      %v3238 = vadd.f32 %v3224, %v3235
      %v3239 = vadd.f32 %v3225, %v3235
      %v3240 = vadd.f32 %v3226, %v3235
      %v3241 = vadd.f32 %v3227, %v3235
      %v3242 = vadd.f32 %v3228, %v3235
      %v3243 = vadd.f32 %v3229, %v3235
      %v3244 = vadd.f32 %v3230, %v3235
      %s3245 = scalar_lea.vmem %s11, 32
      %v3246 = vld [vmem:[%s3245] sm:$0xff]
      %v3247 = vld [vmem:[%s3245 + $0x8] sm:$0xff]
      %v3248 = vld [vmem:[%s3245 + $0x10] sm:$0xff]
      %v3249 = vld [vmem:[%s3245 + $0x18] sm:$0xff]
      %s3250 = scalar_lea.vmem %s12, 1
      %v3251 = vld [vmem:[%s3250] sm:$0x1]
      %v3253 = vlaneseq
      %v3254 = vshrl.u32 %v3253, 7
      %v3255 = vsub.s32 0, %v3254
      %v3256 = vrot.slane %v3251, %v3255
      %v3259 = vsel %vm907, %v3237, 0
      %v3262 = vsel %vm907, %v3238, 0
      %v3265 = vsel %vm907, %v3239, 0
      %v3268 = vsel %vm907, %v3240, 0
      %v3271 = vsel %vm907, %v3241, 0
      %v3274 = vsel %vm907, %v3242, 0
      %v3277 = vsel %vm907, %v3243, 0
      %v3280 = vsel %vm907, %v3244, 0
      %3282 = vmatprep.subr.mxu0 0.0
      %3283 = vmatpush1.msra.mxu0 %v3246
      %3284 = vmatprep.subr.mxu0 0.0
      %3285 = vmatpush1.msra.mxu0 %v3247
      %3286 = vmatprep.subr.mxu0 0.0
      %3287 = vmatpush1.msra.mxu0 %v3248
      %3288 = vmatprep.subr.mxu0 0.0
      %3289 = vmatpush1.msra.mxu0 %v3249
      %3290 = vmatprep.subr.mxu0 0.0
      %3291 = vmatpush1.msra.mxu0 0.0
      %3292 = vmatprep.subr.mxu0 0.0
      %3293 = vmatpush1.msra.mxu0 0.0
      %3294 = vmatprep.subr.mxu0 0.0
      %3295 = vmatpush1.msra.mxu0 0.0
      %3296 = vmatprep.subr.mxu0 0.0
      %3297 = vmatpush1.msra.mxu0 0.0
      %3298 = vmatprep.subr.mxu0 0.0
      %3299 = vmatpush1.msra.mxu0 0.0
      %3300 = vmatprep.subr.mxu0 0.0
      %3301 = vmatpush1.msra.mxu0 0.0
      %3302 = vmatprep.subr.mxu0 0.0
      %3303 = vmatpush1.msra.mxu0 0.0
      %3304 = vmatprep.subr.mxu0 0.0
      %3305 = vmatpush1.msra.mxu0 0.0
      %3306 = vmatprep.subr.mxu0 0.0
      %3307 = vmatpush1.msra.mxu0 0.0
      %3308 = vmatprep.subr.mxu0 0.0
      %3309 = vmatpush1.msra.mxu0 0.0
      %3310 = vmatprep.subr.mxu0 0.0
      %3311 = vmatpush1.msra.mxu0 0.0
      %3312 = vmatprep.subr.mxu0 0.0
      %3313 = vmatpush1.msra.mxu0 0.0
      %3314 = vmatprep.subr.mxu0 0.0
      %3315 = vmatpush1.msra.mxu0 0.0
      %3316 = vmatprep.subr.mxu0 0.0
      %3317 = vmatpush1.msra.mxu0 0.0
      %3318 = vmatprep.subr.mxu0 0.0
      %3319 = vmatpush1.msra.mxu0 0.0
      %3320 = vmatprep.subr.mxu0 0.0
      %3321 = vmatpush1.msra.mxu0 0.0
      %3322 = vmatprep.subr.mxu0 0.0
      %3323 = vmatpush1.msra.mxu0 0.0
      %3324 = vmatprep.subr.mxu0 0.0
      %3325 = vmatpush1.msra.mxu0 0.0
      %3326 = vmatprep.subr.mxu0 0.0
      %3327 = vmatpush1.msra.mxu0 0.0
      %3328 = vmatprep.subr.mxu0 0.0
      %3329 = vmatpush1.msra.mxu0 0.0
      %3330 = vmatprep.subr.mxu0 0.0
      %3331 = vmatpush1.msra.mxu0 0.0
      %3332 = vmatprep.subr.mxu0 0.0
      %3333 = vmatpush1.msra.mxu0 0.0
      %3334 = vmatprep.subr.mxu0 0.0
      %3335 = vmatpush1.msra.mxu0 0.0
      %3336 = vmatprep.subr.mxu0 0.0
      %3337 = vmatpush1.msra.mxu0 0.0
      %3338 = vmatprep.subr.mxu0 0.0
      %3339 = vmatpush1.msra.mxu0 0.0
      %3340 = vmatprep.subr.mxu0 0.0
      %3341 = vmatpush1.msra.mxu0 0.0
      %3342 = vmatprep.subr.mxu0 0.0
      %3343 = vmatpush1.msra.mxu0 0.0
      %3344 = vmatprep.subr.mxu0 0.0
      %3345 = vmatpush1.msra.mxu0 0.0
      %3346 = vmatprep.mubr.f32.mxu0 0.0
      %3347 = vmatmul.mubr.f32.gmra.mrb[0].mxu0 %v3259
      %v3348 = vpop.f32.mrb[0].mxu0
      %v3349 = vadd.f32 %v3256, %v3348
      %v3350 = vpop.f32.mrb[0].mxu0
      %3351 = vmatprep.mubr.f32.mxu0 0.0
      %3352 = vmatmul.mubr.f32.gmra.mrb[0].mxu0 %v3262
      %v3353 = vpop.f32.mrb[0].mxu0
      %v3354 = vadd.f32 %v3256, %v3353
      %v3355 = vpop.f32.mrb[0].mxu0
      %3356 = vmatprep.mubr.f32.mxu0 0.0
      %3357 = vmatmul.mubr.f32.gmra.mrb[0].mxu0 %v3265
      %v3358 = vpop.f32.mrb[0].mxu0
      %v3359 = vadd.f32 %v3256, %v3358
      %v3360 = vpop.f32.mrb[0].mxu0
      %3361 = vmatprep.mubr.f32.mxu0 0.0
      %3362 = vmatmul.mubr.f32.gmra.mrb[0].mxu0 %v3268
      %v3363 = vpop.f32.mrb[0].mxu0
      %v3364 = vadd.f32 %v3256, %v3363
      %v3365 = vpop.f32.mrb[0].mxu0
      %3366 = vmatprep.mubr.f32.mxu0 0.0
      %3367 = vmatmul.mubr.f32.gmra.mrb[0].mxu0 %v3271
      %v3368 = vpop.f32.mrb[0].mxu0
      %v3369 = vadd.f32 %v3256, %v3368
      %v3370 = vpop.f32.mrb[0].mxu0
      %3371 = vmatprep.mubr.f32.mxu0 0.0
      %3372 = vmatmul.mubr.f32.gmra.mrb[0].mxu0 %v3274
      %v3373 = vpop.f32.mrb[0].mxu0
      %v3374 = vadd.f32 %v3256, %v3373
      %v3375 = vpop.f32.mrb[0].mxu0
      %3376 = vmatprep.mubr.f32.mxu0 0.0
      %3377 = vmatmul.mubr.f32.gmra.mrb[0].mxu0 %v3277
      %v3378 = vpop.f32.mrb[0].mxu0
      %v3379 = vadd.f32 %v3256, %v3378
      %v3380 = vpop.f32.mrb[0].mxu0
      %3381 = vmatprep.mubr.f32.mxu0 0.0
      %3382 = vmatmul.mubr.f32.gmra.mrb[0].mxu0 %v3280
      %v3383 = vpop.f32.mrb[0].mxu0
      %v3384 = vadd.f32 %v3256, %v3383
      %v3385 = vpop.f32.mrb[0].mxu0
      %3386 = vdwg.mxu0
      %v3387 = vmax.f32 %v3349, 0.0
      %v3388 = vmax.f32 %v3354, 0.0
      %v3389 = vmax.f32 %v3359, 0.0
      %v3390 = vmax.f32 %v3364, 0.0
      %v3391 = vmax.f32 %v3369, 0.0
      %v3392 = vmax.f32 %v3374, 0.0
      %v3393 = vmax.f32 %v3379, 0.0
      %v3394 = vmax.f32 %v3384, 0.0
      %s3395 = scalar_lea.vmem %s13, 64
      %v3396 = vld [vmem:[%s3395] sm:$0xff]
      %v3397 = vld [vmem:[%s3395 + $0x8] sm:$0xff]
      %v3398 = vld [vmem:[%s3395 + $0x10] sm:$0xff]
      %v3399 = vld [vmem:[%s3395 + $0x18] sm:$0xff]
      %v3400 = vld [vmem:[%s3395 + $0x20] sm:$0xff]
      %v3401 = vld [vmem:[%s3395 + $0x28] sm:$0xff]
      %v3402 = vld [vmem:[%s3395 + $0x30] sm:$0xff]
      %v3403 = vld [vmem:[%s3395 + $0x38] sm:$0xff]
      %s3404 = scalar_lea.vmem %s14, 1
      %v3405 = vld [vmem:[%s3404] sm:$0x1]
      %v3407 = vlaneseq
      %v3408 = vshrl.u32 %v3407, 7
      %v3409 = vsub.s32 0, %v3408
      %v3410 = vrot.slane %v3405, %v3409
      %v3413 = vsel %vm1346, %v3387, 0
      %v3416 = vsel %vm1346, %v3388, 0
      %v3419 = vsel %vm1346, %v3389, 0
      %v3422 = vsel %vm1346, %v3390, 0
      %v3425 = vsel %vm1346, %v3391, 0
      %v3428 = vsel %vm1346, %v3392, 0
      %v3431 = vsel %vm1346, %v3393, 0
      %v3434 = vsel %vm1346, %v3394, 0
      %3436 = vmatprep.subr.mxu0 0.0
      %3437 = vmatpush1.msra.mxu0 %v3396
      %3438 = vmatprep.subr.mxu0 0.0
      %3439 = vmatpush1.msra.mxu0 %v3397
      %3440 = vmatprep.subr.mxu0 0.0
      %3441 = vmatpush1.msra.mxu0 %v3398
      %3442 = vmatprep.subr.mxu0 0.0
      %3443 = vmatpush1.msra.mxu0 %v3399
      %3444 = vmatprep.subr.mxu0 0.0
      %3445 = vmatpush1.msra.mxu0 %v3400
      %3446 = vmatprep.subr.mxu0 0.0
      %3447 = vmatpush1.msra.mxu0 %v3401
      %3448 = vmatprep.subr.mxu0 0.0
      %3449 = vmatpush1.msra.mxu0 %v3402
      %3450 = vmatprep.subr.mxu0 0.0
      %3451 = vmatpush1.msra.mxu0 %v3403
      %3452 = vmatprep.subr.mxu0 0.0
      %3453 = vmatpush1.msra.mxu0 0.0
      %3454 = vmatprep.subr.mxu0 0.0
      %3455 = vmatpush1.msra.mxu0 0.0
      %3456 = vmatprep.subr.mxu0 0.0
      %3457 = vmatpush1.msra.mxu0 0.0
      %3458 = vmatprep.subr.mxu0 0.0
      %3459 = vmatpush1.msra.mxu0 0.0
      %3460 = vmatprep.subr.mxu0 0.0
      %3461 = vmatpush1.msra.mxu0 0.0
      %3462 = vmatprep.subr.mxu0 0.0
      %3463 = vmatpush1.msra.mxu0 0.0
      %3464 = vmatprep.subr.mxu0 0.0
      %3465 = vmatpush1.msra.mxu0 0.0
      %3466 = vmatprep.subr.mxu0 0.0
      %3467 = vmatpush1.msra.mxu0 0.0
      %3468 = vmatprep.subr.mxu0 0.0
      %3469 = vmatpush1.msra.mxu0 0.0
      %3470 = vmatprep.subr.mxu0 0.0
      %3471 = vmatpush1.msra.mxu0 0.0
      %3472 = vmatprep.subr.mxu0 0.0
      %3473 = vmatpush1.msra.mxu0 0.0
      %3474 = vmatprep.subr.mxu0 0.0
      %3475 = vmatpush1.msra.mxu0 0.0
      %3476 = vmatprep.subr.mxu0 0.0
      %3477 = vmatpush1.msra.mxu0 0.0
      %3478 = vmatprep.subr.mxu0 0.0
      %3479 = vmatpush1.msra.mxu0 0.0
      %3480 = vmatprep.subr.mxu0 0.0
      %3481 = vmatpush1.msra.mxu0 0.0
      %3482 = vmatprep.subr.mxu0 0.0
      %3483 = vmatpush1.msra.mxu0 0.0
      %3484 = vmatprep.subr.mxu0 0.0
      %3485 = vmatpush1.msra.mxu0 0.0
      %3486 = vmatprep.subr.mxu0 0.0
      %3487 = vmatpush1.msra.mxu0 0.0
      %3488 = vmatprep.subr.mxu0 0.0
      %3489 = vmatpush1.msra.mxu0 0.0
      %3490 = vmatprep.subr.mxu0 0.0
      %3491 = vmatpush1.msra.mxu0 0.0
      %3492 = vmatprep.subr.mxu0 0.0
      %3493 = vmatpush1.msra.mxu0 0.0
      %3494 = vmatprep.subr.mxu0 0.0
      %3495 = vmatpush1.msra.mxu0 0.0
      %3496 = vmatprep.subr.mxu0 0.0
      %3497 = vmatpush1.msra.mxu0 0.0
      %3498 = vmatprep.subr.mxu0 0.0
      %3499 = vmatpush1.msra.mxu0 0.0
      %3500 = vmatprep.mubr.f32.mxu0 0.0
      %3501 = vmatmul.mubr.f32.gmra.mrb[0].mxu0 %v3413
      %v3502 = vpop.f32.mrb[0].mxu0
      %v3503 = vadd.f32 %v3410, %v3502
      %v3504 = vpop.f32.mrb[0].mxu0
      %3505 = vmatprep.mubr.f32.mxu0 0.0
      %3506 = vmatmul.mubr.f32.gmra.mrb[0].mxu0 %v3416
      %v3507 = vpop.f32.mrb[0].mxu0
      %v3508 = vadd.f32 %v3410, %v3507
      %v3509 = vpop.f32.mrb[0].mxu0
      %3510 = vmatprep.mubr.f32.mxu0 0.0
      %3511 = vmatmul.mubr.f32.gmra.mrb[0].mxu0 %v3419
      %v3512 = vpop.f32.mrb[0].mxu0
      %v3513 = vadd.f32 %v3410, %v3512
      %v3514 = vpop.f32.mrb[0].mxu0
      %3515 = vmatprep.mubr.f32.mxu0 0.0
      %3516 = vmatmul.mubr.f32.gmra.mrb[0].mxu0 %v3422
      %v3517 = vpop.f32.mrb[0].mxu0
      %v3518 = vadd.f32 %v3410, %v3517
      %v3519 = vpop.f32.mrb[0].mxu0
      %3520 = vmatprep.mubr.f32.mxu0 0.0
      %3521 = vmatmul.mubr.f32.gmra.mrb[0].mxu0 %v3425
      %v3522 = vpop.f32.mrb[0].mxu0
      %v3523 = vadd.f32 %v3410, %v3522
      %v3524 = vpop.f32.mrb[0].mxu0
      %3525 = vmatprep.mubr.f32.mxu0 0.0
      %3526 = vmatmul.mubr.f32.gmra.mrb[0].mxu0 %v3428
      %v3527 = vpop.f32.mrb[0].mxu0
      %v3528 = vadd.f32 %v3410, %v3527
      %v3529 = vpop.f32.mrb[0].mxu0
      %3530 = vmatprep.mubr.f32.mxu0 0.0
      %3531 = vmatmul.mubr.f32.gmra.mrb[0].mxu0 %v3431
      %v3532 = vpop.f32.mrb[0].mxu0
      %v3533 = vadd.f32 %v3410, %v3532
      %v3534 = vpop.f32.mrb[0].mxu0
      %3535 = vmatprep.mubr.f32.mxu0 0.0
      %3536 = vmatmul.mubr.f32.gmra.mrb[0].mxu0 %v3434
      %v3537 = vpop.f32.mrb[0].mxu0
      %v3538 = vadd.f32 %v3410, %v3537
      %v3539 = vpop.f32.mrb[0].mxu0
      %3540 = vdwg.mxu0
      %v3541 = vadd.f32 %v3237, %v3503
      %v3542 = vadd.f32 %v3238, %v3508
      %v3543 = vadd.f32 %v3239, %v3513
      %v3544 = vadd.f32 %v3240, %v3518
      %v3545 = vadd.f32 %v3241, %v3523
      %v3546 = vadd.f32 %v3242, %v3528
      %v3547 = vadd.f32 %v3243, %v3533
      %v3548 = vadd.f32 %v3244, %v3538
      %s3549 = scalar_lea.vmem %s17, 1
      %v3550 = vld [vmem:[%s3549] sm:$0x1]
      %s3551 = scalar_lea.vmem %s18, 1
      %v3552 = vld [vmem:[%s3551] sm:$0x1]
      %v3553 = vsel %vm907, %v3541, 0.0
      %3554 = vadd.xlane.f32.xlu0 %v3553
      %v3555 = vpop.xlane.xlu0 %3554
      %v3556 = vsel %vm907, %v3542, 0.0
      %3557 = vadd.xlane.f32.xlu0 %v3556
      %v3558 = vpop.xlane.xlu0 %3557
      %v3559 = vsel %vm907, %v3543, 0.0
      %3560 = vadd.xlane.f32.xlu0 %v3559
      %v3561 = vpop.xlane.xlu0 %3560
      %v3562 = vsel %vm907, %v3544, 0.0
      %3563 = vadd.xlane.f32.xlu0 %v3562
      %v3564 = vpop.xlane.xlu0 %3563
      %v3565 = vsel %vm907, %v3545, 0.0
      %3566 = vadd.xlane.f32.xlu0 %v3565
      %v3567 = vpop.xlane.xlu0 %3566
      %v3568 = vsel %vm907, %v3546, 0.0
      %3569 = vadd.xlane.f32.xlu0 %v3568
      %v3570 = vpop.xlane.xlu0 %3569
      %v3571 = vsel %vm907, %v3547, 0.0
      %3572 = vadd.xlane.f32.xlu0 %v3571
      %v3573 = vpop.xlane.xlu0 %3572
      %v3574 = vsel %vm907, %v3548, 0.0
      %3575 = vadd.xlane.f32.xlu0 %v3574
      %v3576 = vpop.xlane.xlu0 %3575
      %v3577 = vmul.f32 %v3555, %v1738
      %v3578 = vmul.f32 %v3558, %v1738
      %v3579 = vmul.f32 %v3561, %v1738
      %v3580 = vmul.f32 %v3564, %v1738
      %v3581 = vmul.f32 %v3567, %v1738
      %v3582 = vmul.f32 %v3570, %v1738
      %v3583 = vmul.f32 %v3573, %v1738
      %v3584 = vmul.f32 %v3576, %v1738
      %v3585 = vsub.f32 %v3541, %v3577
      %v3586 = vsub.f32 %v3542, %v3578
      %v3587 = vsub.f32 %v3543, %v3579
      %v3588 = vsub.f32 %v3544, %v3580
      %v3589 = vsub.f32 %v3545, %v3581
      %v3590 = vsub.f32 %v3546, %v3582
      %v3591 = vsub.f32 %v3547, %v3583
      %v3592 = vsub.f32 %v3548, %v3584
      %v3593 = vmul.f32 %v3585, %v3585
      %v3594 = vmul.f32 %v3586, %v3586
      %v3595 = vmul.f32 %v3587, %v3587
      %v3596 = vmul.f32 %v3588, %v3588
      %v3597 = vmul.f32 %v3589, %v3589
      %v3598 = vmul.f32 %v3590, %v3590
      %v3599 = vmul.f32 %v3591, %v3591
      %v3600 = vmul.f32 %v3592, %v3592
      %v3601 = vsel %vm907, %v3593, 0.0
      %3602 = vadd.xlane.f32.xlu0 %v3601
      %v3603 = vpop.xlane.xlu0 %3602
      %v3604 = vsel %vm907, %v3594, 0.0
      %3605 = vadd.xlane.f32.xlu0 %v3604
      %v3606 = vpop.xlane.xlu0 %3605
      %v3607 = vsel %vm907, %v3595, 0.0
      %3608 = vadd.xlane.f32.xlu0 %v3607
      %v3609 = vpop.xlane.xlu0 %3608
      %v3610 = vsel %vm907, %v3596, 0.0
      %3611 = vadd.xlane.f32.xlu0 %v3610
      %v3612 = vpop.xlane.xlu0 %3611
      %v3613 = vsel %vm907, %v3597, 0.0
      %3614 = vadd.xlane.f32.xlu0 %v3613
      %v3615 = vpop.xlane.xlu0 %3614
      %v3616 = vsel %vm907, %v3598, 0.0
      %3617 = vadd.xlane.f32.xlu0 %v3616
      %v3618 = vpop.xlane.xlu0 %3617
      %v3619 = vsel %vm907, %v3599, 0.0
      %3620 = vadd.xlane.f32.xlu0 %v3619
      %v3621 = vpop.xlane.xlu0 %3620
      %v3622 = vsel %vm907, %v3600, 0.0
      %3623 = vadd.xlane.f32.xlu0 %v3622
      %v3624 = vpop.xlane.xlu0 %3623
      %v3625 = vmul.f32 %v3603, %v1738
      %v3626 = vmul.f32 %v3606, %v1738
      %v3627 = vmul.f32 %v3609, %v1738
      %v3628 = vmul.f32 %v3612, %v1738
      %v3629 = vmul.f32 %v3615, %v1738
      %v3630 = vmul.f32 %v3618, %v1738
      %v3631 = vmul.f32 %v3621, %v1738
      %v3632 = vmul.f32 %v3624, %v1738
      %v3633 = vadd.f32 %v3625, 1e-05
      %v3634 = vadd.f32 %v3626, 1e-05
      %v3635 = vadd.f32 %v3627, 1e-05
      %v3636 = vadd.f32 %v3628, 1e-05
      %v3637 = vadd.f32 %v3629, 1e-05
      %v3638 = vadd.f32 %v3630, 1e-05
      %v3639 = vadd.f32 %v3631, 1e-05
      %v3640 = vadd.f32 %v3632, 1e-05
      %v3641 = vrsqrt.pop %v3633
      %v3642 = vrsqrt.pop %v3634
      %v3643 = vrsqrt.pop %v3635
      %v3644 = vrsqrt.pop %v3636
      %v3645 = vrsqrt.pop %v3637
      %v3646 = vrsqrt.pop %v3638
      %v3647 = vrsqrt.pop %v3639
      %v3648 = vrsqrt.pop %v3640
      %v3649 = vmul.f32 %v3585, %v3641
      %v3650 = vmul.f32 %v3586, %v3642
      %v3651 = vmul.f32 %v3587, %v3643
      %v3652 = vmul.f32 %v3588, %v3644
      %v3653 = vmul.f32 %v3589, %v3645
      %v3654 = vmul.f32 %v3590, %v3646
      %v3655 = vmul.f32 %v3591, %v3647
      %v3656 = vmul.f32 %v3592, %v3648
      %v3658 = vlaneseq
      %v3659 = vshrl.u32 %v3658, 7
      %v3660 = vsub.s32 0, %v3659
      %v3661 = vrot.slane %v3550, %v3660
      %v3663 = vmul.f32 %v3649, %v3661
      %v3664 = vmul.f32 %v3650, %v3661
      %v3665 = vmul.f32 %v3651, %v3661
      %v3666 = vmul.f32 %v3652, %v3661
      %v3667 = vmul.f32 %v3653, %v3661
      %v3668 = vmul.f32 %v3654, %v3661
      %v3669 = vmul.f32 %v3655, %v3661
      %v3670 = vmul.f32 %v3656, %v3661
      %v3672 = vlaneseq
      %v3673 = vshrl.u32 %v3672, 7
      %v3674 = vsub.s32 0, %v3673
      %v3675 = vrot.slane %v3552, %v3674
      %v3677 = vadd.f32 %v3663, %v3675
      %v3678 = vadd.f32 %v3664, %v3675
      %v3679 = vadd.f32 %v3665, %v3675
      %v3680 = vadd.f32 %v3666, %v3675
      %v3681 = vadd.f32 %v3667, %v3675
      %v3682 = vadd.f32 %v3668, %v3675
      %v3683 = vadd.f32 %v3669, %v3675
      %v3684 = vadd.f32 %v3670, %v3675
      %3685 = vst.msk [vmem:[%s711] sm:$0xff] %vm907, %v3677
      %3686 = vst.msk [vmem:[%s711 + $0x8] sm:$0xff] %vm907, %v3678
      %3687 = vst.msk [vmem:[%s711 + $0x10] sm:$0xff] %vm907, %v3679
      %3688 = vst.msk [vmem:[%s711 + $0x18] sm:$0xff] %vm907, %v3680
      %3689 = vst.msk [vmem:[%s711 + $0x20] sm:$0xff] %vm907, %v3681
      %3690 = vst.msk [vmem:[%s711 + $0x28] sm:$0xff] %vm907, %v3682
      %3691 = vst.msk [vmem:[%s711 + $0x30] sm:$0xff] %vm907, %v3683
      %3692 = vst.msk [vmem:[%s711 + $0x38] sm:$0xff] %vm907, %v3684
      %3693 = vxpose.xlu0.b32.start [1/16] %v2822, 128
      %3694 = vxpose.xlu0.b32.cont [2/16] %v2823, 128
      %3695 = vxpose.xlu0.b32.cont [3/16] %v2824, 128
      %3696 = vxpose.xlu0.b32.cont [4/16] %v2825, 128
      %3697 = vxpose.xlu0.b32.cont [5/16] %v2826, 128
      %3698 = vxpose.xlu0.b32.cont [6/16] %v2827, 128
      %3699 = vxpose.xlu0.b32.cont [7/16] %v2828, 128
      %3700 = vxpose.xlu0.b32.cont [8/16] %v2829, 128
      %3701 = vxpose.xlu0.b32.cont [9/16] 0.0, 128
      %3702 = vxpose.xlu0.b32.cont [10/16] 0.0, 128
      %3703 = vxpose.xlu0.b32.cont [11/16] 0.0, 128
      %3704 = vxpose.xlu0.b32.cont [12/16] 0.0, 128
      %3705 = vxpose.xlu0.b32.cont [13/16] 0.0, 128
      %3706 = vxpose.xlu0.b32.cont [14/16] 0.0, 128
      %3707 = vxpose.xlu0.b32.cont [15/16] 0.0, 128
      %3708 = vxpose.xlu0.b32.end [16/16] 0.0, 128
      %v3709 = vpop.trf.xlu0
      %v3710 = vpop.trf.xlu0
      %v3711 = vpop.trf.xlu0
      %v3712 = vpop.trf.xlu0
      %v3713 = vpop.trf.xlu0
      %v3714 = vpop.trf.xlu0
      %v3715 = vpop.trf.xlu0
      %v3716 = vpop.trf.xlu0
      %v3717 = vpop.trf.xlu0
      %v3718 = vpop.trf.xlu0
      %v3719 = vpop.trf.xlu0
      %v3720 = vpop.trf.xlu0
      %v3721 = vpop.trf.xlu0
      %v3722 = vpop.trf.xlu0
      %v3723 = vpop.trf.xlu0
      %v3724 = vpop.trf.xlu0
      %3725 = vst.msk [vmem:[%s716] sm:$0xff] %vm1346, %v3709
      %3726 = vst.msk [vmem:[%s716 + $0x8] sm:$0xff] %vm1346, %v3710
      %3727 = vst.msk [vmem:[%s716 + $0x10] sm:$0xff] %vm1346, %v3711
      %3728 = vst.msk [vmem:[%s716 + $0x18] sm:$0xff] %vm1346, %v3712
      %3729 = vst.msk [vmem:[%s716 + $0x20] sm:$0xff] %vm1346, %v3713
      %3730 = vst.msk [vmem:[%s716 + $0x28] sm:$0xff] %vm1346, %v3714
      %3731 = vst.msk [vmem:[%s716 + $0x30] sm:$0xff] %vm1346, %v3715
      %3732 = vst.msk [vmem:[%s716 + $0x38] sm:$0xff] %vm1346, %v3716
      %v3733 = vld [vmem:[%s706] sm:$0xff]
      %v3734 = vld [vmem:[%s706 + $0x8] sm:$0xff]
      %v3735 = vld [vmem:[%s706 + $0x10] sm:$0xff]
      %v3736 = vld [vmem:[%s706 + $0x18] sm:$0xff]
      %v3737 = vld [vmem:[%s706 + $0x20] sm:$0xff]
      %v3738 = vld [vmem:[%s706 + $0x28] sm:$0xff]
      %v3739 = vld [vmem:[%s706 + $0x30] sm:$0xff]
      %v3740 = vld [vmem:[%s706 + $0x38] sm:$0xff]
      %v3741 = vmul.f32 %v3709, %v3733
      %v3742 = vmul.f32 %v3710, %v3734
      %v3743 = vmul.f32 %v3711, %v3735
      %v3744 = vmul.f32 %v3712, %v3736
      %v3745 = vmul.f32 %v3713, %v3737
      %v3746 = vmul.f32 %v3714, %v3738
      %v3747 = vmul.f32 %v3715, %v3739
      %v3748 = vmul.f32 %v3716, %v3740
      %3749 = vst.msk [vmem:[%s721] sm:$0xff] %vm1346, %v3741
      %3750 = vst.msk [vmem:[%s721 + $0x8] sm:$0xff] %vm1346, %v3742
      %3751 = vst.msk [vmem:[%s721 + $0x10] sm:$0xff] %vm1346, %v3743
      %3752 = vst.msk [vmem:[%s721 + $0x18] sm:$0xff] %vm1346, %v3744
      %3753 = vst.msk [vmem:[%s721 + $0x20] sm:$0xff] %vm1346, %v3745
      %3754 = vst.msk [vmem:[%s721 + $0x28] sm:$0xff] %vm1346, %v3746
      %3755 = vst.msk [vmem:[%s721 + $0x30] sm:$0xff] %vm1346, %v3747
      %3756 = vst.msk [vmem:[%s721 + $0x38] sm:$0xff] %vm1346, %v3748
      %p3757 = scmp.lt.s32.totalorder %s33, 1
      %s3758 = scalar_select %p3757, %s33, 1
      %s3759 = smul.addr %s3758, 8
      %s3760 = smul.addr %s3759, 8
      %s3761 = scalar_lea.vmem %s19, %s3760
      %p3762 = scmp.lt.s32.totalorder %s33, 1
      %s3763 = scalar_select %p3762, %s33, 1
      %s3764 = smul.addr %s3763, 8
      %s3765 = smul.addr %s3764, 8
      %s3766 = scalar_lea.vmem %s20, %s3765
      %p3767 = scmp.lt.s32.totalorder %s33, 1
      %s3768 = scalar_select %p3767, %s33, 1
      %s3769 = smul.addr %s3768, 8
      %s3770 = smul.addr %s3769, 8
      %s3771 = scalar_lea.vmem %s21, %s3770
      // Predicated region
      $region97: #{joiner_forward.2} parent=95 // pred_check
        %p3772 = pneg %p465
      $region98: #{joiner_forward.2} parent=95 // pred_check_branch
        %3774 = sbr.rel (%p3772) target = $region100
      $region99: #{joiner_forward.2} parent=95 // pred_region
        _
      $region100: #{joiner_forward.2} parent=95 // pred_fallthru
        _
      // Predicated region
      $region101: #{joiner_forward.2} parent=95 // pred_check
        %p3775 = pneg %p491
      $region102: #{joiner_forward.2} parent=95 // pred_check_branch
        %3777 = sbr.rel (%p3775) target = $region104
      $region103: #{joiner_forward.2} parent=95 // pred_region
        _
      $region104: #{joiner_forward.2} parent=95 // pred_fallthru
        _
      // Predicated region
      $region105: #{joiner_forward.2} parent=95 // pred_check
        %p3778 = pneg %p517
      $region106: #{joiner_forward.2} parent=95 // pred_check_branch
        %3780 = sbr.rel (%p3778) target = $region108
      $region107: #{joiner_forward.2} parent=95 // pred_region
        _
      $region108: #{joiner_forward.2} parent=95 // pred_fallthru
        _
    $region96: #{joiner_forward.2} parent=5 // pred_fallthru
      _
    %p3781 = scmp.le.s32.totalorder 2, %s28
    // Predicated region
    $region109: #{joiner_forward.2} parent=5 // pred_check
      %p3782 = pneg %p3781
    $region110: #{joiner_forward.2} parent=5 // pred_check_branch
      %3784 = sbr.rel (%p3782) target = $region112
    $region111: #{joiner_forward.2} parent=5 // pred_region
      %s3785 = ssub.s32 %s28, 2
      // Predicated region
      $region113: #{joiner_forward.2} parent=111 // pred_check
        %p3786 = pneg %p471
      $region114: #{joiner_forward.2} parent=111 // pred_check_branch
        %3788 = sbr.rel (%p3786) target = $region116
      $region115: #{joiner_forward.2} parent=111 // pred_region
        %p3789 = scmp.lt.s32.totalorder %s34, 1
        %s3790 = scalar_select %p3789, %s34, 1
        %s3791 = smul.addr %s3790, 8
        %s3792 = smul.addr %s3791, 8
        %s3793 = scalar_lea.vmem %s19, %s3792
      $region116: #{joiner_forward.2} parent=111 // pred_fallthru
        _
      // Predicated region
      $region117: #{joiner_forward.2} parent=111 // pred_check
        %p3794 = pneg %p497
      $region118: #{joiner_forward.2} parent=111 // pred_check_branch
        %3796 = sbr.rel (%p3794) target = $region120
      $region119: #{joiner_forward.2} parent=111 // pred_region
        %p3797 = scmp.lt.s32.totalorder %s34, 1
        %s3798 = scalar_select %p3797, %s34, 1
        %s3799 = smul.addr %s3798, 8
        %s3800 = smul.addr %s3799, 8
        %s3801 = scalar_lea.vmem %s20, %s3800
      $region120: #{joiner_forward.2} parent=111 // pred_fallthru
        _
      // Predicated region
      $region121: #{joiner_forward.2} parent=111 // pred_check
        %p3802 = pneg %p523
      $region122: #{joiner_forward.2} parent=111 // pred_check_branch
        %3804 = sbr.rel (%p3802) target = $region124
      $region123: #{joiner_forward.2} parent=111 // pred_region
        %p3805 = scmp.lt.s32.totalorder %s34, 1
        %s3806 = scalar_select %p3805, %s34, 1
        %s3807 = smul.addr %s3806, 8
        %s3808 = smul.addr %s3807, 8
        %s3809 = scalar_lea.vmem %s21, %s3808
      $region124: #{joiner_forward.2} parent=111 // pred_fallthru
        _
    $region112: #{joiner_forward.2} parent=5 // pred_fallthru
      _
  $region6: #{joiner_forward.2} parent=0 // loop_footer
    %s32 = sadd.s32 1, %s28
  $region7: #{joiner_forward.2} parent=0 // loop_footer_branch
    %27 = sbr.rel target = $region3
  $region8: #{joiner_forward.2} parent=0 // loop_exit
    _

</llo_original>
